<compile_context>
chip_gen: v7x
topology: tpu7x:2x2x1
jax: 0.10.0
libtpu: 0.0.40
codegen_flags: <defaults>
</compile_context>

<pallas_src>
import jax
import jax.numpy as jnp
from jax import lax
from jax.experimental import pallas as pl
from jax.experimental.pallas import tpu as pltpu

HIDDEN_SIZE = 16
INPUT_SIZE = 1
OUTPUT_SIZE = 1


def _lstm_kernel(x_ref, wih_ref, whh_ref, b_ref, fcw_ref, fcb_ref, out_ref):
    """x_ref: (T, B, 1); wih_ref: (1, 4H); whh_ref: (H, 4H); b_ref: (1, 4H);
    fcw_ref: (1, H); fcb_ref: (1, 1); out_ref: (B, 1).

    Gate-column layout is [i, f, o, g]; the i/f/o columns of W_ih, W_hh and
    the bias were pre-scaled by 0.5 in prepare_kernel_params, so a single
    tanh over the full (B, 4H) gate slab yields all four activations.
    """
    T, B, _ = x_ref.shape
    H = whh_ref.shape[0]
    H3 = 3 * H

    # Tiny (<10 KB) weights: load once, stay VMEM/vreg resident.
    wih = wih_ref[...]           # (1, 4H)
    whh = whh_ref[...]           # (H, 4H)
    bias = b_ref[...]            # (1, 4H)

    # Hoisted input projection for ALL timesteps (input_size == 1, so this is
    # a broadcast multiply, not a matmul): (T, B, 1)*(1, 1, 4H) + (1, 1, 4H).
    xg = x_ref[...] * wih[None, :, :] + bias[None, :, :]    # (T, B, 4H)

    h = jnp.zeros((B, H), jnp.float32)
    c = jnp.zeros((B, H), jnp.float32)

    # T is small & static -> fully unrolled serial recurrence in one kernel
    # invocation (no per-step grid dispatch / DMA overhead).
    for t in range(T):
        # Single MXU matmul on the h->h critical path (exact f32 precision).
        gates = xg[t] + jnp.dot(h, whh,
                                preferred_element_type=jnp.float32,
                                precision=lax.Precision.HIGHEST)   # (B, 4H)
        # One EUP push covers all four gates.
        tg = jnp.tanh(gates)                                       # (B, 4H)
        sg = 0.5 * tg[:, :H3] + 0.5       # sigmoid(i,f,o) via tanh identity
        i = sg[:, 0 * H:1 * H]
        f = sg[:, 1 * H:2 * H]
        o = sg[:, 2 * H:H3]
        g = tg[:, H3:]                                             # tanh gate
        c = f * c + i * g
        h = o * jnp.tanh(c)               # second (and last) EUP push / step

    # fc head (output_size == 1): VPU multiply + lane reduction, no MXU.
    out_ref[...] = (jnp.sum(h * fcw_ref[...], axis=1, keepdims=True)
                    + fcb_ref[...])


def lstm_forward(x, kernel_params):
    """x: (B, T) float32 -> (B, output_size); matches LSTM.forward(x)."""
    wih_row, whh_t, bias, fcw, fcb = kernel_params
    B, T = x.shape
    out_size = fcw.shape[0]                    # == 1 for this module
    x_tm = jnp.transpose(x)[:, :, None]        # time-major (T, B, 1)

    return pl.pallas_call(
        _lstm_kernel,
        out_shape=jax.ShapeDtypeStruct((B, out_size), jnp.float32),
        in_specs=[pl.BlockSpec(memory_space=pltpu.MemorySpace.VMEM)] * 6,
        out_specs=pl.BlockSpec(memory_space=pltpu.MemorySpace.VMEM),
    )(x_tm, wih_row, whh_t, bias, fcw, fcb)


def init_params(key, input_size=INPUT_SIZE, hidden_size=HIDDEN_SIZE,
                output_size=OUTPUT_SIZE):
    """Canonical PyTorch-layout params (gate order i, f, g, o); init mimics
    nn.LSTM / nn.Linear U(-1/sqrt(H), 1/sqrt(H))."""
    H = hidden_size
    k = 1.0 / jnp.sqrt(jnp.float32(H))
    keys = jax.random.split(key, 6)
    w_ih = jax.random.uniform(keys[0], (4 * H, input_size), jnp.float32, -k, k)
    w_hh = jax.random.uniform(keys[1], (4 * H, H), jnp.float32, -k, k)
    b_ih = jax.random.uniform(keys[2], (4 * H,), jnp.float32, -k, k)
    b_hh = jax.random.uniform(keys[3], (4 * H,), jnp.float32, -k, k)
    fc_w = jax.random.uniform(keys[4], (output_size, H), jnp.float32, -k, k)
    fc_b = jax.random.uniform(keys[5], (output_size,), jnp.float32, -k, k)
    return (w_ih, w_hh, b_ih, b_hh, fc_w, fc_b)


def prepare_kernel_params(params):
    """Kernel layout: gate order permuted (i,f,g,o) -> (i,f,o,g), weights
    pre-transposed, biases combined, and the sigmoid (i,f,o) gate columns
    pre-scaled by 0.5 so sigmoid == 0.5*tanh(pre_activation) + 0.5 in-kernel."""
    w_ih, w_hh, b_ih, b_hh, fc_w, fc_b = params
    H = w_hh.shape[1]
    perm = jnp.concatenate([jnp.arange(0, 2 * H),          # i, f
                            jnp.arange(3 * H, 4 * H),      # o
                            jnp.arange(2 * H, 3 * H)])     # g
    scale = jnp.concatenate([jnp.full((3 * H,), 0.5, jnp.float32),
                             jnp.ones((H,), jnp.float32)])
    w_ih_k = w_ih[perm] * scale[:, None]       # (4H, in)
    w_hh_k = w_hh[perm] * scale[:, None]       # (4H, H)
    b_k = (b_ih + b_hh)[perm] * scale          # (4H,)
    wih_row = jnp.transpose(w_ih_k)            # (in, 4H) == (1, 4H)
    whh_t = jnp.transpose(w_hh_k)              # (H, 4H)
    bias = b_k[None, :]                        # (1, 4H)
    fcw = fc_w                                 # (out, H) == (1, H)
    fcb = fc_b[None, :]                        # (1, out)
    return (wih_row, whh_t, bias, fcw, fcb)


def lstm_reference(x, params):
    """Pure-JAX reference of the PyTorch forward (canonical i,f,g,o layout,
    jax.nn.sigmoid / jnp.tanh) -- independent of the kernel's layout tricks."""
    w_ih, w_hh, b_ih, b_hh, fc_w, fc_b = params
    B, T = x.shape
    H = w_hh.shape[1]

    def step(carry, x_t):
        h, c = carry
        gates = (x_t[:, None] * w_ih[:, 0][None, :]
                 + jnp.dot(h, w_hh.T, precision=lax.Precision.HIGHEST)
                 + b_ih + b_hh)                                     # (B, 4H)
        i = jax.nn.sigmoid(gates[:, 0 * H:1 * H])
        f = jax.nn.sigmoid(gates[:, 1 * H:2 * H])
        g = jnp.tanh(gates[:, 2 * H:3 * H])
        o = jax.nn.sigmoid(gates[:, 3 * H:4 * H])
        c = f * c + i * g
        h = o * jnp.tanh(c)
        return (h, c), None

    h0 = jnp.zeros((B, H), jnp.float32)
    c0 = jnp.zeros((B, H), jnp.float32)
    (h, _), _ = lax.scan(step, (h0, c0), jnp.transpose(x))
    return jnp.dot(h, fc_w.T, precision=lax.Precision.HIGHEST) + fc_b


if __name__ == "__main__":
    key = jax.random.PRNGKey(0)
    pkey, xkey = jax.random.split(key)

    params = init_params(pkey)
    kernel_params = prepare_kernel_params(params)

    B, T = 2, 8
    x = jax.random.normal(xkey, (B, T), jnp.float32)   # (batch, seq) like torch

    out = jax.block_until_ready(lstm_forward(x, kernel_params))
    ref = jax.block_until_ready(lstm_reference(x, params))

    assert out.shape == (B, OUTPUT_SIZE)
    assert jnp.allclose(out, ref, atol=1e-5, rtol=1e-5), (out, ref)

    print("KERNEL_OK")
</pallas_src>

<mosaic_0001>
module attributes {stable_mosaic.version = 11 : i64} {
  func.func @_lstm_kernel(%arg0: memref<8x2x1xf32, #tpu.memory_space<vmem>>, %arg1: memref<1x64xf32, #tpu.memory_space<vmem>>, %arg2: memref<16x64xf32, #tpu.memory_space<vmem>>, %arg3: memref<1x64xf32, #tpu.memory_space<vmem>>, %arg4: memref<1x16xf32, #tpu.memory_space<vmem>>, %arg5: memref<1x1xf32, #tpu.memory_space<vmem>>, %arg6: memref<2x1xf32, #tpu.memory_space<vmem>>) attributes {dimension_semantics = [], scalar_prefetch = 0 : i64, scratch_operands = 0 : i64, tpu.core_type = #tpu.core_type<tc>} {
    %c0 = arith.constant 0 : index
    %c0_0 = arith.constant 0 : index
    %0 = vector.load %arg1[%c0, %c0_0] : memref<1x64xf32, #tpu.memory_space<vmem>>, vector<1x64xf32>
    %c0_1 = arith.constant 0 : index
    %c0_2 = arith.constant 0 : index
    %1 = vector.load %arg2[%c0_1, %c0_2] : memref<16x64xf32, #tpu.memory_space<vmem>>, vector<16x64xf32>
    %c0_3 = arith.constant 0 : index
    %c0_4 = arith.constant 0 : index
    %2 = vector.load %arg3[%c0_3, %c0_4] : memref<1x64xf32, #tpu.memory_space<vmem>>, vector<1x64xf32>
    %c0_5 = arith.constant 0 : index
    %c0_6 = arith.constant 0 : index
    %c0_7 = arith.constant 0 : index
    %3 = vector.load %arg0[%c0_5, %c0_6, %c0_7] : memref<8x2x1xf32, #tpu.memory_space<vmem>>, vector<8x2x1xf32>
    %4 = vector.shape_cast %0 : vector<1x64xf32> to vector<1x1x64xf32>
    %5 = vector.broadcast %3 : vector<8x2x1xf32> to vector<8x2x64xf32>
    %6 = vector.broadcast %4 : vector<1x1x64xf32> to vector<8x2x64xf32>
    %7 = arith.mulf %5, %6 : vector<8x2x64xf32>
    %8 = vector.shape_cast %2 : vector<1x64xf32> to vector<1x1x64xf32>
    %9 = vector.broadcast %8 : vector<1x1x64xf32> to vector<8x2x64xf32>
    %10 = arith.addf %7, %9 : vector<8x2x64xf32>
    %cst = arith.constant 0.000000e+00 : f32
    %11 = vector.broadcast %cst : f32 to vector<2x16xf32>
    %cst_8 = arith.constant 0.000000e+00 : f32
    %12 = vector.broadcast %cst_8 : f32 to vector<2x16xf32>
    %13 = vector.extract_strided_slice %10 {offsets = [0, 0, 0], sizes = [1, 2, 64], strides = [1, 1, 1]} : vector<8x2x64xf32> to vector<1x2x64xf32>
    %14 = vector.shape_cast %13 : vector<1x2x64xf32> to vector<2x64xf32>
    %cst_9 = arith.constant dense<0.000000e+00> : vector<2x64xf32>
    %15 = tpu.matmul %11, %1, %cst_9 {dimension_numbers = #tpu.dot_dimension_numbers<[1], [0], [0], [1], [0, 0, 1, 1], [], []>, precision = #tpu.contract_precision<fp32>} : vector<2x16xf32>, vector<16x64xf32>, vector<2x64xf32> -> vector<2x64xf32>
    %16 = arith.addf %14, %15 : vector<2x64xf32>
    %17 = math.tanh %16 : vector<2x64xf32>
    %18 = vector.extract_strided_slice %17 {offsets = [0, 0], sizes = [2, 48], strides = [1, 1]} : vector<2x64xf32> to vector<2x48xf32>
    %cst_10 = arith.constant 5.000000e-01 : f32
    %19 = vector.broadcast %cst_10 : f32 to vector<2x48xf32>
    %20 = arith.mulf %19, %18 : vector<2x48xf32>
    %cst_11 = arith.constant 5.000000e-01 : f32
    %21 = vector.broadcast %cst_11 : f32 to vector<2x48xf32>
    %22 = arith.addf %20, %21 : vector<2x48xf32>
    %23 = vector.extract_strided_slice %22 {offsets = [0, 0], sizes = [2, 16], strides = [1, 1]} : vector<2x48xf32> to vector<2x16xf32>
    %24 = vector.extract_strided_slice %22 {offsets = [0, 16], sizes = [2, 16], strides = [1, 1]} : vector<2x48xf32> to vector<2x16xf32>
    %25 = vector.extract_strided_slice %22 {offsets = [0, 32], sizes = [2, 16], strides = [1, 1]} : vector<2x48xf32> to vector<2x16xf32>
    %26 = vector.extract_strided_slice %17 {offsets = [0, 48], sizes = [2, 16], strides = [1, 1]} : vector<2x64xf32> to vector<2x16xf32>
    %27 = arith.mulf %24, %12 : vector<2x16xf32>
    %28 = arith.mulf %23, %26 : vector<2x16xf32>
    %29 = arith.addf %27, %28 : vector<2x16xf32>
    %30 = math.tanh %29 : vector<2x16xf32>
    %31 = arith.mulf %25, %30 : vector<2x16xf32>
    %32 = vector.extract_strided_slice %10 {offsets = [1, 0, 0], sizes = [1, 2, 64], strides = [1, 1, 1]} : vector<8x2x64xf32> to vector<1x2x64xf32>
    %33 = vector.shape_cast %32 : vector<1x2x64xf32> to vector<2x64xf32>
    %cst_12 = arith.constant dense<0.000000e+00> : vector<2x64xf32>
    %34 = tpu.matmul %31, %1, %cst_12 {dimension_numbers = #tpu.dot_dimension_numbers<[1], [0], [0], [1], [0, 0, 1, 1], [], []>, precision = #tpu.contract_precision<fp32>} : vector<2x16xf32>, vector<16x64xf32>, vector<2x64xf32> -> vector<2x64xf32>
    %35 = arith.addf %33, %34 : vector<2x64xf32>
    %36 = math.tanh %35 : vector<2x64xf32>
    %37 = vector.extract_strided_slice %36 {offsets = [0, 0], sizes = [2, 48], strides = [1, 1]} : vector<2x64xf32> to vector<2x48xf32>
    %cst_13 = arith.constant 5.000000e-01 : f32
    %38 = vector.broadcast %cst_13 : f32 to vector<2x48xf32>
    %39 = arith.mulf %38, %37 : vector<2x48xf32>
    %cst_14 = arith.constant 5.000000e-01 : f32
    %40 = vector.broadcast %cst_14 : f32 to vector<2x48xf32>
    %41 = arith.addf %39, %40 : vector<2x48xf32>
    %42 = vector.extract_strided_slice %41 {offsets = [0, 0], sizes = [2, 16], strides = [1, 1]} : vector<2x48xf32> to vector<2x16xf32>
    %43 = vector.extract_strided_slice %41 {offsets = [0, 16], sizes = [2, 16], strides = [1, 1]} : vector<2x48xf32> to vector<2x16xf32>
    %44 = vector.extract_strided_slice %41 {offsets = [0, 32], sizes = [2, 16], strides = [1, 1]} : vector<2x48xf32> to vector<2x16xf32>
    %45 = vector.extract_strided_slice %36 {offsets = [0, 48], sizes = [2, 16], strides = [1, 1]} : vector<2x64xf32> to vector<2x16xf32>
    %46 = arith.mulf %43, %29 : vector<2x16xf32>
    %47 = arith.mulf %42, %45 : vector<2x16xf32>
    %48 = arith.addf %46, %47 : vector<2x16xf32>
    %49 = math.tanh %48 : vector<2x16xf32>
    %50 = arith.mulf %44, %49 : vector<2x16xf32>
    %51 = vector.extract_strided_slice %10 {offsets = [2, 0, 0], sizes = [1, 2, 64], strides = [1, 1, 1]} : vector<8x2x64xf32> to vector<1x2x64xf32>
    %52 = vector.shape_cast %51 : vector<1x2x64xf32> to vector<2x64xf32>
    %cst_15 = arith.constant dense<0.000000e+00> : vector<2x64xf32>
    %53 = tpu.matmul %50, %1, %cst_15 {dimension_numbers = #tpu.dot_dimension_numbers<[1], [0], [0], [1], [0, 0, 1, 1], [], []>, precision = #tpu.contract_precision<fp32>} : vector<2x16xf32>, vector<16x64xf32>, vector<2x64xf32> -> vector<2x64xf32>
    %54 = arith.addf %52, %53 : vector<2x64xf32>
    %55 = math.tanh %54 : vector<2x64xf32>
    %56 = vector.extract_strided_slice %55 {offsets = [0, 0], sizes = [2, 48], strides = [1, 1]} : vector<2x64xf32> to vector<2x48xf32>
    %cst_16 = arith.constant 5.000000e-01 : f32
    %57 = vector.broadcast %cst_16 : f32 to vector<2x48xf32>
    %58 = arith.mulf %57, %56 : vector<2x48xf32>
    %cst_17 = arith.constant 5.000000e-01 : f32
    %59 = vector.broadcast %cst_17 : f32 to vector<2x48xf32>
    %60 = arith.addf %58, %59 : vector<2x48xf32>
    %61 = vector.extract_strided_slice %60 {offsets = [0, 0], sizes = [2, 16], strides = [1, 1]} : vector<2x48xf32> to vector<2x16xf32>
    %62 = vector.extract_strided_slice %60 {offsets = [0, 16], sizes = [2, 16], strides = [1, 1]} : vector<2x48xf32> to vector<2x16xf32>
    %63 = vector.extract_strided_slice %60 {offsets = [0, 32], sizes = [2, 16], strides = [1, 1]} : vector<2x48xf32> to vector<2x16xf32>
    %64 = vector.extract_strided_slice %55 {offsets = [0, 48], sizes = [2, 16], strides = [1, 1]} : vector<2x64xf32> to vector<2x16xf32>
    %65 = arith.mulf %62, %48 : vector<2x16xf32>
    %66 = arith.mulf %61, %64 : vector<2x16xf32>
    %67 = arith.addf %65, %66 : vector<2x16xf32>
    %68 = math.tanh %67 : vector<2x16xf32>
    %69 = arith.mulf %63, %68 : vector<2x16xf32>
    %70 = vector.extract_strided_slice %10 {offsets = [3, 0, 0], sizes = [1, 2, 64], strides = [1, 1, 1]} : vector<8x2x64xf32> to vector<1x2x64xf32>
    %71 = vector.shape_cast %70 : vector<1x2x64xf32> to vector<2x64xf32>
    %cst_18 = arith.constant dense<0.000000e+00> : vector<2x64xf32>
    %72 = tpu.matmul %69, %1, %cst_18 {dimension_numbers = #tpu.dot_dimension_numbers<[1], [0], [0], [1], [0, 0, 1, 1], [], []>, precision = #tpu.contract_precision<fp32>} : vector<2x16xf32>, vector<16x64xf32>, vector<2x64xf32> -> vector<2x64xf32>
    %73 = arith.addf %71, %72 : vector<2x64xf32>
    %74 = math.tanh %73 : vector<2x64xf32>
    %75 = vector.extract_strided_slice %74 {offsets = [0, 0], sizes = [2, 48], strides = [1, 1]} : vector<2x64xf32> to vector<2x48xf32>
    %cst_19 = arith.constant 5.000000e-01 : f32
    %76 = vector.broadcast %cst_19 : f32 to vector<2x48xf32>
    %77 = arith.mulf %76, %75 : vector<2x48xf32>
    %cst_20 = arith.constant 5.000000e-01 : f32
    %78 = vector.broadcast %cst_20 : f32 to vector<2x48xf32>
    %79 = arith.addf %77, %78 : vector<2x48xf32>
    %80 = vector.extract_strided_slice %79 {offsets = [0, 0], sizes = [2, 16], strides = [1, 1]} : vector<2x48xf32> to vector<2x16xf32>
    %81 = vector.extract_strided_slice %79 {offsets = [0, 16], sizes = [2, 16], strides = [1, 1]} : vector<2x48xf32> to vector<2x16xf32>
    %82 = vector.extract_strided_slice %79 {offsets = [0, 32], sizes = [2, 16], strides = [1, 1]} : vector<2x48xf32> to vector<2x16xf32>
    %83 = vector.extract_strided_slice %74 {offsets = [0, 48], sizes = [2, 16], strides = [1, 1]} : vector<2x64xf32> to vector<2x16xf32>
    %84 = arith.mulf %81, %67 : vector<2x16xf32>
    %85 = arith.mulf %80, %83 : vector<2x16xf32>
    %86 = arith.addf %84, %85 : vector<2x16xf32>
    %87 = math.tanh %86 : vector<2x16xf32>
    %88 = arith.mulf %82, %87 : vector<2x16xf32>
    %89 = vector.extract_strided_slice %10 {offsets = [4, 0, 0], sizes = [1, 2, 64], strides = [1, 1, 1]} : vector<8x2x64xf32> to vector<1x2x64xf32>
    %90 = vector.shape_cast %89 : vector<1x2x64xf32> to vector<2x64xf32>
    %cst_21 = arith.constant dense<0.000000e+00> : vector<2x64xf32>
    %91 = tpu.matmul %88, %1, %cst_21 {dimension_numbers = #tpu.dot_dimension_numbers<[1], [0], [0], [1], [0, 0, 1, 1], [], []>, precision = #tpu.contract_precision<fp32>} : vector<2x16xf32>, vector<16x64xf32>, vector<2x64xf32> -> vector<2x64xf32>
    %92 = arith.addf %90, %91 : vector<2x64xf32>
    %93 = math.tanh %92 : vector<2x64xf32>
    %94 = vector.extract_strided_slice %93 {offsets = [0, 0], sizes = [2, 48], strides = [1, 1]} : vector<2x64xf32> to vector<2x48xf32>
    %cst_22 = arith.constant 5.000000e-01 : f32
    %95 = vector.broadcast %cst_22 : f32 to vector<2x48xf32>
    %96 = arith.mulf %95, %94 : vector<2x48xf32>
    %cst_23 = arith.constant 5.000000e-01 : f32
    %97 = vector.broadcast %cst_23 : f32 to vector<2x48xf32>
    %98 = arith.addf %96, %97 : vector<2x48xf32>
    %99 = vector.extract_strided_slice %98 {offsets = [0, 0], sizes = [2, 16], strides = [1, 1]} : vector<2x48xf32> to vector<2x16xf32>
    %100 = vector.extract_strided_slice %98 {offsets = [0, 16], sizes = [2, 16], strides = [1, 1]} : vector<2x48xf32> to vector<2x16xf32>
    %101 = vector.extract_strided_slice %98 {offsets = [0, 32], sizes = [2, 16], strides = [1, 1]} : vector<2x48xf32> to vector<2x16xf32>
    %102 = vector.extract_strided_slice %93 {offsets = [0, 48], sizes = [2, 16], strides = [1, 1]} : vector<2x64xf32> to vector<2x16xf32>
    %103 = arith.mulf %100, %86 : vector<2x16xf32>
    %104 = arith.mulf %99, %102 : vector<2x16xf32>
    %105 = arith.addf %103, %104 : vector<2x16xf32>
    %106 = math.tanh %105 : vector<2x16xf32>
    %107 = arith.mulf %101, %106 : vector<2x16xf32>
    %108 = vector.extract_strided_slice %10 {offsets = [5, 0, 0], sizes = [1, 2, 64], strides = [1, 1, 1]} : vector<8x2x64xf32> to vector<1x2x64xf32>
    %109 = vector.shape_cast %108 : vector<1x2x64xf32> to vector<2x64xf32>
    %cst_24 = arith.constant dense<0.000000e+00> : vector<2x64xf32>
    %110 = tpu.matmul %107, %1, %cst_24 {dimension_numbers = #tpu.dot_dimension_numbers<[1], [0], [0], [1], [0, 0, 1, 1], [], []>, precision = #tpu.contract_precision<fp32>} : vector<2x16xf32>, vector<16x64xf32>, vector<2x64xf32> -> vector<2x64xf32>
    %111 = arith.addf %109, %110 : vector<2x64xf32>
    %112 = math.tanh %111 : vector<2x64xf32>
    %113 = vector.extract_strided_slice %112 {offsets = [0, 0], sizes = [2, 48], strides = [1, 1]} : vector<2x64xf32> to vector<2x48xf32>
    %cst_25 = arith.constant 5.000000e-01 : f32
    %114 = vector.broadcast %cst_25 : f32 to vector<2x48xf32>
    %115 = arith.mulf %114, %113 : vector<2x48xf32>
    %cst_26 = arith.constant 5.000000e-01 : f32
    %116 = vector.broadcast %cst_26 : f32 to vector<2x48xf32>
    %117 = arith.addf %115, %116 : vector<2x48xf32>
    %118 = vector.extract_strided_slice %117 {offsets = [0, 0], sizes = [2, 16], strides = [1, 1]} : vector<2x48xf32> to vector<2x16xf32>
    %119 = vector.extract_strided_slice %117 {offsets = [0, 16], sizes = [2, 16], strides = [1, 1]} : vector<2x48xf32> to vector<2x16xf32>
    %120 = vector.extract_strided_slice %117 {offsets = [0, 32], sizes = [2, 16], strides = [1, 1]} : vector<2x48xf32> to vector<2x16xf32>
    %121 = vector.extract_strided_slice %112 {offsets = [0, 48], sizes = [2, 16], strides = [1, 1]} : vector<2x64xf32> to vector<2x16xf32>
    %122 = arith.mulf %119, %105 : vector<2x16xf32>
    %123 = arith.mulf %118, %121 : vector<2x16xf32>
    %124 = arith.addf %122, %123 : vector<2x16xf32>
    %125 = math.tanh %124 : vector<2x16xf32>
    %126 = arith.mulf %120, %125 : vector<2x16xf32>
    %127 = vector.extract_strided_slice %10 {offsets = [6, 0, 0], sizes = [1, 2, 64], strides = [1, 1, 1]} : vector<8x2x64xf32> to vector<1x2x64xf32>
    %128 = vector.shape_cast %127 : vector<1x2x64xf32> to vector<2x64xf32>
    %cst_27 = arith.constant dense<0.000000e+00> : vector<2x64xf32>
    %129 = tpu.matmul %126, %1, %cst_27 {dimension_numbers = #tpu.dot_dimension_numbers<[1], [0], [0], [1], [0, 0, 1, 1], [], []>, precision = #tpu.contract_precision<fp32>} : vector<2x16xf32>, vector<16x64xf32>, vector<2x64xf32> -> vector<2x64xf32>
    %130 = arith.addf %128, %129 : vector<2x64xf32>
    %131 = math.tanh %130 : vector<2x64xf32>
    %132 = vector.extract_strided_slice %131 {offsets = [0, 0], sizes = [2, 48], strides = [1, 1]} : vector<2x64xf32> to vector<2x48xf32>
    %cst_28 = arith.constant 5.000000e-01 : f32
    %133 = vector.broadcast %cst_28 : f32 to vector<2x48xf32>
    %134 = arith.mulf %133, %132 : vector<2x48xf32>
    %cst_29 = arith.constant 5.000000e-01 : f32
    %135 = vector.broadcast %cst_29 : f32 to vector<2x48xf32>
    %136 = arith.addf %134, %135 : vector<2x48xf32>
    %137 = vector.extract_strided_slice %136 {offsets = [0, 0], sizes = [2, 16], strides = [1, 1]} : vector<2x48xf32> to vector<2x16xf32>
    %138 = vector.extract_strided_slice %136 {offsets = [0, 16], sizes = [2, 16], strides = [1, 1]} : vector<2x48xf32> to vector<2x16xf32>
    %139 = vector.extract_strided_slice %136 {offsets = [0, 32], sizes = [2, 16], strides = [1, 1]} : vector<2x48xf32> to vector<2x16xf32>
    %140 = vector.extract_strided_slice %131 {offsets = [0, 48], sizes = [2, 16], strides = [1, 1]} : vector<2x64xf32> to vector<2x16xf32>
    %141 = arith.mulf %138, %124 : vector<2x16xf32>
    %142 = arith.mulf %137, %140 : vector<2x16xf32>
    %143 = arith.addf %141, %142 : vector<2x16xf32>
    %144 = math.tanh %143 : vector<2x16xf32>
    %145 = arith.mulf %139, %144 : vector<2x16xf32>
    %146 = vector.extract_strided_slice %10 {offsets = [7, 0, 0], sizes = [1, 2, 64], strides = [1, 1, 1]} : vector<8x2x64xf32> to vector<1x2x64xf32>
    %147 = vector.shape_cast %146 : vector<1x2x64xf32> to vector<2x64xf32>
    %cst_30 = arith.constant dense<0.000000e+00> : vector<2x64xf32>
    %148 = tpu.matmul %145, %1, %cst_30 {dimension_numbers = #tpu.dot_dimension_numbers<[1], [0], [0], [1], [0, 0, 1, 1], [], []>, precision = #tpu.contract_precision<fp32>} : vector<2x16xf32>, vector<16x64xf32>, vector<2x64xf32> -> vector<2x64xf32>
    %149 = arith.addf %147, %148 : vector<2x64xf32>
    %150 = math.tanh %149 : vector<2x64xf32>
    %151 = vector.extract_strided_slice %150 {offsets = [0, 0], sizes = [2, 48], strides = [1, 1]} : vector<2x64xf32> to vector<2x48xf32>
    %cst_31 = arith.constant 5.000000e-01 : f32
    %152 = vector.broadcast %cst_31 : f32 to vector<2x48xf32>
    %153 = arith.mulf %152, %151 : vector<2x48xf32>
    %cst_32 = arith.constant 5.000000e-01 : f32
    %154 = vector.broadcast %cst_32 : f32 to vector<2x48xf32>
    %155 = arith.addf %153, %154 : vector<2x48xf32>
    %156 = vector.extract_strided_slice %155 {offsets = [0, 0], sizes = [2, 16], strides = [1, 1]} : vector<2x48xf32> to vector<2x16xf32>
    %157 = vector.extract_strided_slice %155 {offsets = [0, 16], sizes = [2, 16], strides = [1, 1]} : vector<2x48xf32> to vector<2x16xf32>
    %158 = vector.extract_strided_slice %155 {offsets = [0, 32], sizes = [2, 16], strides = [1, 1]} : vector<2x48xf32> to vector<2x16xf32>
    %159 = vector.extract_strided_slice %150 {offsets = [0, 48], sizes = [2, 16], strides = [1, 1]} : vector<2x64xf32> to vector<2x16xf32>
    %160 = arith.mulf %157, %143 : vector<2x16xf32>
    %161 = arith.mulf %156, %159 : vector<2x16xf32>
    %162 = arith.addf %160, %161 : vector<2x16xf32>
    %163 = math.tanh %162 : vector<2x16xf32>
    %164 = arith.mulf %158, %163 : vector<2x16xf32>
    %c0_33 = arith.constant 0 : index
    %c0_34 = arith.constant 0 : index
    %165 = vector.load %arg4[%c0_33, %c0_34] : memref<1x16xf32, #tpu.memory_space<vmem>>, vector<1x16xf32>
    %166 = vector.broadcast %165 : vector<1x16xf32> to vector<2x16xf32>
    %167 = arith.mulf %164, %166 : vector<2x16xf32>
    %cst_35 = arith.constant dense<0.000000e+00> : vector<2xf32>
    %168 = vector.multi_reduction <add>, %167, %cst_35 [1] : vector<2x16xf32> to vector<2xf32>
    %169 = vector.shape_cast %168 : vector<2xf32> to vector<2x1xf32>
    %c0_36 = arith.constant 0 : index
    %c0_37 = arith.constant 0 : index
    %170 = vector.load %arg5[%c0_36, %c0_37] : memref<1x1xf32, #tpu.memory_space<vmem>>, vector<1x1xf32>
    %171 = vector.broadcast %170 : vector<1x1xf32> to vector<2x1xf32>
    %172 = arith.addf %169, %171 : vector<2x1xf32>
    %c0_38 = arith.constant 0 : index
    %c0_39 = arith.constant 0 : index
    %173 = vector.load %arg6[%c0_38, %c0_39] : memref<2x1xf32, #tpu.memory_space<vmem>>, vector<2x1xf32>
    tpu.vector_store %arg6[%c0_38, %c0_39], %172 {strides = array<i32>} : memref<2x1xf32, #tpu.memory_space<vmem>>, vector<2x1xf32>,
    return
  }
}

</mosaic_0001>

<llo_original>
// kernel: tpu_custom_call.1
$region0: #{tpu_custom_call.1}
  #allocation0 [shape = 'u32[]', space=smem, size = 0x4, offset = 0x4, fixed_abs, tag = 'smem constant byte address 0x4 - core index']
  #allocation1 [shape = 'u32[144,128]{1,0:T(1,128)}', space=vmem, size = 0x12000, scoped, tag = 'internal scratch']
  #allocation2 [shape = 'f32[1,1]{1,0:T(1,128)S(1)}', space=vmem, size = 0x200, scoped, tag = 'scoped memory for tpu_custom_call.1']
  %s0 = inlined_call_operand.vmem [shape: f32[8,2,1], index: 0, kind: input, shape index: {}]
  %s1 = inlined_call_operand.vmem [shape: f32[1,64], index: 1, kind: input, shape index: {}]
  %s2 = inlined_call_operand.vmem [shape: f32[16,64], index: 2, kind: input, shape index: {}]
  %s3 = inlined_call_operand.vmem [shape: f32[1,64], index: 3, kind: input, shape index: {}]
  %s4 = inlined_call_operand.vmem [shape: f32[1,16], index: 4, kind: input, shape index: {}]
  %s5 = inlined_call_operand.<no memory space> [shape: f32[1,1], index: 5, kind: input, shape index: {}]
  %s6 = inlined_call_operand.vmem [shape: f32[2,1], index: 6, kind: output, shape index: {}]
  %s7 = sld [smem:[#allocation0]]
  $region34: #{tpu_custom_call.1} parent=0
    _
  %s9 = ssub.s32 1, %s7
  %s10 = scalar_select 0, %s9, %s7
  %v11 = vstv %s5
  %12 = vst [vmem:[#allocation2] sm:$0x1] %v11
  // Predicated region
  $region2: #{tpu_custom_call.1} parent=0 // pred_check
    _
  $region3: #{tpu_custom_call.1} parent=0 // pred_check_branch
    %14 = sbr.rel (0) target = $region5
  $region4: #{tpu_custom_call.1} parent=0 // pred_region
    _
  $region5: #{tpu_custom_call.1} parent=0 // pred_fallthru
    _
  // Predicated region
  $region6: #{tpu_custom_call.1} parent=0 // pred_check
    _
  $region7: #{tpu_custom_call.1} parent=0 // pred_check_branch
    %16 = sbr.rel (0) target = $region9
  $region8: #{tpu_custom_call.1} parent=0 // pred_region
    _
  $region9: #{tpu_custom_call.1} parent=0 // pred_fallthru
    _
  // Predicated region
  $region10: #{tpu_custom_call.1} parent=0 // pred_check
    _
  $region11: #{tpu_custom_call.1} parent=0 // pred_check_branch
    %18 = sbr.rel (0) target = $region13
  $region12: #{tpu_custom_call.1} parent=0 // pred_region
    _
  $region13: #{tpu_custom_call.1} parent=0 // pred_fallthru
    _
  // Predicated region
  $region14: #{tpu_custom_call.1} parent=0 // pred_check
    _
  $region15: #{tpu_custom_call.1} parent=0 // pred_check_branch
    %20 = sbr.rel (0) target = $region17
  $region16: #{tpu_custom_call.1} parent=0 // pred_region
    _
  $region17: #{tpu_custom_call.1} parent=0 // pred_fallthru
    _
  // Predicated region
  $region18: #{tpu_custom_call.1} parent=0 // pred_check
    _
  $region19: #{tpu_custom_call.1} parent=0 // pred_check_branch
    %22 = sbr.rel (0) target = $region21
  $region20: #{tpu_custom_call.1} parent=0 // pred_region
    _
  $region21: #{tpu_custom_call.1} parent=0 // pred_fallthru
    _
  // Predicated region
  $region22: #{tpu_custom_call.1} parent=0 // pred_check
    _
  $region23: #{tpu_custom_call.1} parent=0 // pred_check_branch
    %24 = sbr.rel (0) target = $region25
  $region24: #{tpu_custom_call.1} parent=0 // pred_region
    _
  $region25: #{tpu_custom_call.1} parent=0 // pred_fallthru
    _
  %v25 = vld [vmem:[%s1] sm:$0x1]
  %v26 = vld [vmem:[%s2] sm:$0xff]
  %v27 = vld [vmem:[%s2 + $0x8] sm:$0xff]
  %v28 = vld [vmem:[%s3] sm:$0x1]
  %v29 = vld [vmem:[%s0] sm:$0x3]
  %v30 = vld [vmem:[%s0 + $0x2] sm:$0x3]
  %v31 = vld [vmem:[%s0 + $0x4] sm:$0x3]
  %v32 = vld [vmem:[%s0 + $0x6] sm:$0x3]
  %v33 = vld [vmem:[%s0 + $0x8] sm:$0x3]
  %v34 = vld [vmem:[%s0 + $0xa] sm:$0x3]
  %v35 = vld [vmem:[%s0 + $0xc] sm:$0x3]
  %v36 = vld [vmem:[%s0 + $0xe] sm:$0x3]
  %38 = vset.pattern.permute.xlu0 0
  %39 = vperm.xlu0 %38, %v29
  %v40 = vpop.permute.xlu0 %39
  %43 = vset.pattern.permute.xlu0 0
  %44 = vperm.xlu0 %43, %v30
  %v45 = vpop.permute.xlu0 %44
  %48 = vset.pattern.permute.xlu0 0
  %49 = vperm.xlu0 %48, %v31
  %v50 = vpop.permute.xlu0 %49
  %53 = vset.pattern.permute.xlu0 0
  %54 = vperm.xlu0 %53, %v32
  %v55 = vpop.permute.xlu0 %54
  %58 = vset.pattern.permute.xlu0 0
  %59 = vperm.xlu0 %58, %v33
  %v60 = vpop.permute.xlu0 %59
  %63 = vset.pattern.permute.xlu0 0
  %64 = vperm.xlu0 %63, %v34
  %v65 = vpop.permute.xlu0 %64
  %68 = vset.pattern.permute.xlu0 0
  %69 = vperm.xlu0 %68, %v35
  %v70 = vpop.permute.xlu0 %69
  %73 = vset.pattern.permute.xlu0 0
  %74 = vperm.xlu0 %73, %v36
  %v75 = vpop.permute.xlu0 %74
  %v78 = vlaneseq
  %v79 = vshrl.u32 %v78, 7
  %v80 = vsub.s32 0, %v79
  %v81 = vrot.slane %v25, %v80
  %v83 = vmul.f32 %v40, %v81
  %v84 = vmul.f32 %v45, %v81
  %v85 = vmul.f32 %v50, %v81
  %v86 = vmul.f32 %v55, %v81
  %v87 = vmul.f32 %v60, %v81
  %v88 = vmul.f32 %v65, %v81
  %v89 = vmul.f32 %v70, %v81
  %v90 = vmul.f32 %v75, %v81
  %v92 = vlaneseq
  %v93 = vshrl.u32 %v92, 7
  %v94 = vsub.s32 0, %v93
  %v95 = vrot.slane %v28, %v94
  %v97 = vadd.f32 %v83, %v95
  %v98 = vadd.f32 %v84, %v95
  %v99 = vadd.f32 %v85, %v95
  %v100 = vadd.f32 %v86, %v95
  %v101 = vadd.f32 %v87, %v95
  %v102 = vadd.f32 %v88, %v95
  %v103 = vadd.f32 %v89, %v95
  %v104 = vadd.f32 %v90, %v95
  %vm105 = vcmask 130048
  %v107 = vsel %vm105, 0.0, 0
  %109 = vmatprep.subr.mxu0 0.0
  %v110 = vand.u32 %v26, 4294901760
  %111 = vmatpush1.msra.mxu0 %v110
  %112 = vmatprep.subr.mxu0 0.0
  %v113 = vand.u32 %v27, 4294901760
  %114 = vmatpush1.msra.mxu0 %v113
  %115 = vmatprep.subr.mxu0 0.0
  %116 = vmatpush1.msra.mxu0 0.0
  %117 = vmatprep.subr.mxu0 0.0
  %118 = vmatpush1.msra.mxu0 0.0
  %119 = vmatprep.subr.mxu0 0.0
  %120 = vmatpush1.msra.mxu0 0.0
  %121 = vmatprep.subr.mxu0 0.0
  %122 = vmatpush1.msra.mxu0 0.0
  %123 = vmatprep.subr.mxu0 0.0
  %124 = vmatpush1.msra.mxu0 0.0
  %125 = vmatprep.subr.mxu0 0.0
  %126 = vmatpush1.msra.mxu0 0.0
  %127 = vmatprep.subr.mxu0 0.0
  %128 = vmatpush1.msra.mxu0 0.0
  %129 = vmatprep.subr.mxu0 0.0
  %130 = vmatpush1.msra.mxu0 0.0
  %131 = vmatprep.subr.mxu0 0.0
  %132 = vmatpush1.msra.mxu0 0.0
  %133 = vmatprep.subr.mxu0 0.0
  %134 = vmatpush1.msra.mxu0 0.0
  %135 = vmatprep.subr.mxu0 0.0
  %136 = vmatpush1.msra.mxu0 0.0
  %137 = vmatprep.subr.mxu0 0.0
  %138 = vmatpush1.msra.mxu0 0.0
  %139 = vmatprep.subr.mxu0 0.0
  %140 = vmatpush1.msra.mxu0 0.0
  %141 = vmatprep.subr.mxu0 0.0
  %142 = vmatpush1.msra.mxu0 0.0
  %143 = vmatprep.subr.mxu0 0.0
  %144 = vmatpush1.msra.mxu0 0.0
  %145 = vmatprep.subr.mxu0 0.0
  %146 = vmatpush1.msra.mxu0 0.0
  %147 = vmatprep.subr.mxu0 0.0
  %148 = vmatpush1.msra.mxu0 0.0
  %149 = vmatprep.subr.mxu0 0.0
  %150 = vmatpush1.msra.mxu0 0.0
  %151 = vmatprep.subr.mxu0 0.0
  %152 = vmatpush1.msra.mxu0 0.0
  %153 = vmatprep.subr.mxu0 0.0
  %154 = vmatpush1.msra.mxu0 0.0
  %155 = vmatprep.subr.mxu0 0.0
  %156 = vmatpush1.msra.mxu0 0.0
  %157 = vmatprep.subr.mxu0 0.0
  %158 = vmatpush1.msra.mxu0 0.0
  %159 = vmatprep.subr.mxu0 0.0
  %160 = vmatpush1.msra.mxu0 0.0
  %161 = vmatprep.subr.mxu0 0.0
  %162 = vmatpush1.msra.mxu0 0.0
  %163 = vmatprep.subr.mxu0 0.0
  %164 = vmatpush1.msra.mxu0 0.0
  %165 = vmatprep.subr.mxu0 0.0
  %166 = vmatpush1.msra.mxu0 0.0
  %167 = vmatprep.subr.mxu0 0.0
  %168 = vmatpush1.msra.mxu0 0.0
  %169 = vmatprep.subr.mxu0 0.0
  %170 = vmatpush1.msra.mxu0 0.0
  %171 = vmatprep.subr.mxu0 0.0
  %172 = vmatpush1.msra.mxu0 0.0
  %173 = vmatprep.subr.mxu0 0.0
  %174 = vmatpush1.msra.mxu0 0.0
  %175 = vmatprep.mubr.f32.mxu0 0.0
  %v176 = vand.u32 %v107, 4294901760
  %v177 = vsub.f32 %v107, %v176
  %v178 = vand.u32 %v177, 4294901760
  %v179 = vsub.f32 %v177, %v178
  %v180 = vand.u32 %v179, 4294901760
  %181 = vmatmul.mubr.f32.gmra.mrb[0].mxu0 %v180
  %v182 = vpop.f32.mrb[0].mxu0
  %v183 = vadd.f32 0.0, %v182
  %v184 = vpop.f32.mrb[0].mxu0
  %185 = vdwg.mxu0
  %186 = vmatprep.subr.mxu0 0.0
  %v187 = vand.u32 %v26, 4294901760
  %v188 = vsub.f32 %v26, %v187
  %v189 = vand.u32 %v188, 4294901760
  %v190 = vsub.f32 %v188, %v189
  %v191 = vand.u32 %v190, 4294901760
  %192 = vmatpush1.msra.mxu0 %v191
  %193 = vmatprep.subr.mxu0 0.0
  %v194 = vand.u32 %v27, 4294901760
  %v195 = vsub.f32 %v27, %v194
  %v196 = vand.u32 %v195, 4294901760
  %v197 = vsub.f32 %v195, %v196
  %v198 = vand.u32 %v197, 4294901760
  %199 = vmatpush1.msra.mxu0 %v198
  %200 = vmatprep.subr.mxu0 0.0
  %201 = vmatpush1.msra.mxu0 0.0
  %202 = vmatprep.subr.mxu0 0.0
  %203 = vmatpush1.msra.mxu0 0.0
  %204 = vmatprep.subr.mxu0 0.0
  %205 = vmatpush1.msra.mxu0 0.0
  %206 = vmatprep.subr.mxu0 0.0
  %207 = vmatpush1.msra.mxu0 0.0
  %208 = vmatprep.subr.mxu0 0.0
  %209 = vmatpush1.msra.mxu0 0.0
  %210 = vmatprep.subr.mxu0 0.0
  %211 = vmatpush1.msra.mxu0 0.0
  %212 = vmatprep.subr.mxu0 0.0
  %213 = vmatpush1.msra.mxu0 0.0
  %214 = vmatprep.subr.mxu0 0.0
  %215 = vmatpush1.msra.mxu0 0.0
  %216 = vmatprep.subr.mxu0 0.0
  %217 = vmatpush1.msra.mxu0 0.0
  %218 = vmatprep.subr.mxu0 0.0
  %219 = vmatpush1.msra.mxu0 0.0
  %220 = vmatprep.subr.mxu0 0.0
  %221 = vmatpush1.msra.mxu0 0.0
  %222 = vmatprep.subr.mxu0 0.0
  %223 = vmatpush1.msra.mxu0 0.0
  %224 = vmatprep.subr.mxu0 0.0
  %225 = vmatpush1.msra.mxu0 0.0
  %226 = vmatprep.subr.mxu0 0.0
  %227 = vmatpush1.msra.mxu0 0.0
  %228 = vmatprep.subr.mxu0 0.0
  %229 = vmatpush1.msra.mxu0 0.0
  %230 = vmatprep.subr.mxu0 0.0
  %231 = vmatpush1.msra.mxu0 0.0
  %232 = vmatprep.subr.mxu0 0.0
  %233 = vmatpush1.msra.mxu0 0.0
  %234 = vmatprep.subr.mxu0 0.0
  %235 = vmatpush1.msra.mxu0 0.0
  %236 = vmatprep.subr.mxu0 0.0
  %237 = vmatpush1.msra.mxu0 0.0
  %238 = vmatprep.subr.mxu0 0.0
  %239 = vmatpush1.msra.mxu0 0.0
  %240 = vmatprep.subr.mxu0 0.0
  %241 = vmatpush1.msra.mxu0 0.0
  %242 = vmatprep.subr.mxu0 0.0
  %243 = vmatpush1.msra.mxu0 0.0
  %244 = vmatprep.subr.mxu0 0.0
  %245 = vmatpush1.msra.mxu0 0.0
  %246 = vmatprep.subr.mxu0 0.0
  %247 = vmatpush1.msra.mxu0 0.0
  %248 = vmatprep.subr.mxu0 0.0
  %249 = vmatpush1.msra.mxu0 0.0
  %250 = vmatprep.subr.mxu0 0.0
  %251 = vmatpush1.msra.mxu0 0.0
  %252 = vmatprep.subr.mxu0 0.0
  %253 = vmatpush1.msra.mxu0 0.0
  %254 = vmatprep.subr.mxu0 0.0
  %255 = vmatpush1.msra.mxu0 0.0
  %256 = vmatprep.subr.mxu0 0.0
  %257 = vmatpush1.msra.mxu0 0.0
  %258 = vmatprep.subr.mxu0 0.0
  %259 = vmatpush1.msra.mxu0 0.0
  %260 = vmatprep.mubr.f32.mxu0 0.0
  %v261 = vand.u32 %v107, 4294901760
  %262 = vmatmul.mubr.f32.gmra.mrb[0].mxu0 %v261
  %v263 = vpop.f32.mrb[0].mxu0
  %v264 = vadd.f32 %v183, %v263
  %v265 = vpop.f32.mrb[0].mxu0
  %266 = vdwg.mxu0
  %267 = vmatprep.subr.mxu0 0.0
  %v268 = vand.u32 %v26, 4294901760
  %v269 = vsub.f32 %v26, %v268
  %270 = vmatpush1.msra.mxu0 %v269
  %271 = vmatprep.subr.mxu0 0.0
  %v272 = vand.u32 %v27, 4294901760
  %v273 = vsub.f32 %v27, %v272
  %274 = vmatpush1.msra.mxu0 %v273
  %275 = vmatprep.subr.mxu0 0.0
  %276 = vmatpush1.msra.mxu0 0.0
  %277 = vmatprep.subr.mxu0 0.0
  %278 = vmatpush1.msra.mxu0 0.0
  %279 = vmatprep.subr.mxu0 0.0
  %280 = vmatpush1.msra.mxu0 0.0
  %281 = vmatprep.subr.mxu0 0.0
  %282 = vmatpush1.msra.mxu0 0.0
  %283 = vmatprep.subr.mxu0 0.0
  %284 = vmatpush1.msra.mxu0 0.0
  %285 = vmatprep.subr.mxu0 0.0
  %286 = vmatpush1.msra.mxu0 0.0
  %287 = vmatprep.subr.mxu0 0.0
  %288 = vmatpush1.msra.mxu0 0.0
  %289 = vmatprep.subr.mxu0 0.0
  %290 = vmatpush1.msra.mxu0 0.0
  %291 = vmatprep.subr.mxu0 0.0
  %292 = vmatpush1.msra.mxu0 0.0
  %293 = vmatprep.subr.mxu0 0.0
  %294 = vmatpush1.msra.mxu0 0.0
  %295 = vmatprep.subr.mxu0 0.0
  %296 = vmatpush1.msra.mxu0 0.0
  %297 = vmatprep.subr.mxu0 0.0
  %298 = vmatpush1.msra.mxu0 0.0
  %299 = vmatprep.subr.mxu0 0.0
  %300 = vmatpush1.msra.mxu0 0.0
  %301 = vmatprep.subr.mxu0 0.0
  %302 = vmatpush1.msra.mxu0 0.0
  %303 = vmatprep.subr.mxu0 0.0
  %304 = vmatpush1.msra.mxu0 0.0
  %305 = vmatprep.subr.mxu0 0.0
  %306 = vmatpush1.msra.mxu0 0.0
  %307 = vmatprep.subr.mxu0 0.0
  %308 = vmatpush1.msra.mxu0 0.0
  %309 = vmatprep.subr.mxu0 0.0
  %310 = vmatpush1.msra.mxu0 0.0
  %311 = vmatprep.subr.mxu0 0.0
  %312 = vmatpush1.msra.mxu0 0.0
  %313 = vmatprep.subr.mxu0 0.0
  %314 = vmatpush1.msra.mxu0 0.0
  %315 = vmatprep.subr.mxu0 0.0
  %316 = vmatpush1.msra.mxu0 0.0
  %317 = vmatprep.subr.mxu0 0.0
  %318 = vmatpush1.msra.mxu0 0.0
  %319 = vmatprep.subr.mxu0 0.0
  %320 = vmatpush1.msra.mxu0 0.0
  %321 = vmatprep.subr.mxu0 0.0
  %322 = vmatpush1.msra.mxu0 0.0
  %323 = vmatprep.subr.mxu0 0.0
  %324 = vmatpush1.msra.mxu0 0.0
  %325 = vmatprep.subr.mxu0 0.0
  %326 = vmatpush1.msra.mxu0 0.0
  %327 = vmatprep.subr.mxu0 0.0
  %328 = vmatpush1.msra.mxu0 0.0
  %329 = vmatprep.subr.mxu0 0.0
  %330 = vmatpush1.msra.mxu0 0.0
  %331 = vmatprep.subr.mxu0 0.0
  %332 = vmatpush1.msra.mxu0 0.0
  %333 = vmatprep.subr.mxu0 0.0
  %334 = vmatpush1.msra.mxu0 0.0
  %335 = vmatprep.mubr.f32.mxu0 0.0
  %v336 = vand.u32 %v107, 4294901760
  %v337 = vsub.f32 %v107, %v336
  %338 = vmatmul.mubr.f32.gmra.mrb[0].mxu0 %v337
  %v339 = vpop.f32.mrb[0].mxu0
  %v340 = vadd.f32 %v264, %v339
  %v341 = vpop.f32.mrb[0].mxu0
  %342 = vdwg.mxu0
  %343 = vmatprep.subr.mxu0 0.0
  %v344 = vand.u32 %v26, 4294901760
  %345 = vmatpush1.msra.mxu0 %v344
  %346 = vmatprep.subr.mxu0 0.0
  %v347 = vand.u32 %v27, 4294901760
  %348 = vmatpush1.msra.mxu0 %v347
  %349 = vmatprep.subr.mxu0 0.0
  %350 = vmatpush1.msra.mxu0 0.0
  %351 = vmatprep.subr.mxu0 0.0
  %352 = vmatpush1.msra.mxu0 0.0
  %353 = vmatprep.subr.mxu0 0.0
  %354 = vmatpush1.msra.mxu0 0.0
  %355 = vmatprep.subr.mxu0 0.0
  %356 = vmatpush1.msra.mxu0 0.0
  %357 = vmatprep.subr.mxu0 0.0
  %358 = vmatpush1.msra.mxu0 0.0
  %359 = vmatprep.subr.mxu0 0.0
  %360 = vmatpush1.msra.mxu0 0.0
  %361 = vmatprep.subr.mxu0 0.0
  %362 = vmatpush1.msra.mxu0 0.0
  %363 = vmatprep.subr.mxu0 0.0
  %364 = vmatpush1.msra.mxu0 0.0
  %365 = vmatprep.subr.mxu0 0.0
  %366 = vmatpush1.msra.mxu0 0.0
  %367 = vmatprep.subr.mxu0 0.0
  %368 = vmatpush1.msra.mxu0 0.0
  %369 = vmatprep.subr.mxu0 0.0
  %370 = vmatpush1.msra.mxu0 0.0
  %371 = vmatprep.subr.mxu0 0.0
  %372 = vmatpush1.msra.mxu0 0.0
  %373 = vmatprep.subr.mxu0 0.0
  %374 = vmatpush1.msra.mxu0 0.0
  %375 = vmatprep.subr.mxu0 0.0
  %376 = vmatpush1.msra.mxu0 0.0
  %377 = vmatprep.subr.mxu0 0.0
  %378 = vmatpush1.msra.mxu0 0.0
  %379 = vmatprep.subr.mxu0 0.0
  %380 = vmatpush1.msra.mxu0 0.0
  %381 = vmatprep.subr.mxu0 0.0
  %382 = vmatpush1.msra.mxu0 0.0
  %383 = vmatprep.subr.mxu0 0.0
  %384 = vmatpush1.msra.mxu0 0.0
  %385 = vmatprep.subr.mxu0 0.0
  %386 = vmatpush1.msra.mxu0 0.0
  %387 = vmatprep.subr.mxu0 0.0
  %388 = vmatpush1.msra.mxu0 0.0
  %389 = vmatprep.subr.mxu0 0.0
  %390 = vmatpush1.msra.mxu0 0.0
  %391 = vmatprep.subr.mxu0 0.0
  %392 = vmatpush1.msra.mxu0 0.0
  %393 = vmatprep.subr.mxu0 0.0
  %394 = vmatpush1.msra.mxu0 0.0
  %395 = vmatprep.subr.mxu0 0.0
  %396 = vmatpush1.msra.mxu0 0.0
  %397 = vmatprep.subr.mxu0 0.0
  %398 = vmatpush1.msra.mxu0 0.0
  %399 = vmatprep.subr.mxu0 0.0
  %400 = vmatpush1.msra.mxu0 0.0
  %401 = vmatprep.subr.mxu0 0.0
  %402 = vmatpush1.msra.mxu0 0.0
  %403 = vmatprep.subr.mxu0 0.0
  %404 = vmatpush1.msra.mxu0 0.0
  %405 = vmatprep.subr.mxu0 0.0
  %406 = vmatpush1.msra.mxu0 0.0
  %407 = vmatprep.subr.mxu0 0.0
  %408 = vmatpush1.msra.mxu0 0.0
  %409 = vmatprep.mubr.f32.mxu0 0.0
  %v410 = vand.u32 %v107, 4294901760
  %v411 = vsub.f32 %v107, %v410
  %v412 = vand.u32 %v411, 4294901760
  %413 = vmatmul.mubr.f32.gmra.mrb[0].mxu0 %v412
  %v414 = vpop.f32.mrb[0].mxu0
  %v415 = vadd.f32 %v340, %v414
  %v416 = vpop.f32.mrb[0].mxu0
  %417 = vdwg.mxu0
  %418 = vmatprep.subr.mxu0 0.0
  %v419 = vand.u32 %v26, 4294901760
  %v420 = vsub.f32 %v26, %v419
  %v421 = vand.u32 %v420, 4294901760
  %422 = vmatpush1.msra.mxu0 %v421
  %423 = vmatprep.subr.mxu0 0.0
  %v424 = vand.u32 %v27, 4294901760
  %v425 = vsub.f32 %v27, %v424
  %v426 = vand.u32 %v425, 4294901760
  %427 = vmatpush1.msra.mxu0 %v426
  %428 = vmatprep.subr.mxu0 0.0
  %429 = vmatpush1.msra.mxu0 0.0
  %430 = vmatprep.subr.mxu0 0.0
  %431 = vmatpush1.msra.mxu0 0.0
  %432 = vmatprep.subr.mxu0 0.0
  %433 = vmatpush1.msra.mxu0 0.0
  %434 = vmatprep.subr.mxu0 0.0
  %435 = vmatpush1.msra.mxu0 0.0
  %436 = vmatprep.subr.mxu0 0.0
  %437 = vmatpush1.msra.mxu0 0.0
  %438 = vmatprep.subr.mxu0 0.0
  %439 = vmatpush1.msra.mxu0 0.0
  %440 = vmatprep.subr.mxu0 0.0
  %441 = vmatpush1.msra.mxu0 0.0
  %442 = vmatprep.subr.mxu0 0.0
  %443 = vmatpush1.msra.mxu0 0.0
  %444 = vmatprep.subr.mxu0 0.0
  %445 = vmatpush1.msra.mxu0 0.0
  %446 = vmatprep.subr.mxu0 0.0
  %447 = vmatpush1.msra.mxu0 0.0
  %448 = vmatprep.subr.mxu0 0.0
  %449 = vmatpush1.msra.mxu0 0.0
  %450 = vmatprep.subr.mxu0 0.0
  %451 = vmatpush1.msra.mxu0 0.0
  %452 = vmatprep.subr.mxu0 0.0
  %453 = vmatpush1.msra.mxu0 0.0
  %454 = vmatprep.subr.mxu0 0.0
  %455 = vmatpush1.msra.mxu0 0.0
  %456 = vmatprep.subr.mxu0 0.0
  %457 = vmatpush1.msra.mxu0 0.0
  %458 = vmatprep.subr.mxu0 0.0
  %459 = vmatpush1.msra.mxu0 0.0
  %460 = vmatprep.subr.mxu0 0.0
  %461 = vmatpush1.msra.mxu0 0.0
  %462 = vmatprep.subr.mxu0 0.0
  %463 = vmatpush1.msra.mxu0 0.0
  %464 = vmatprep.subr.mxu0 0.0
  %465 = vmatpush1.msra.mxu0 0.0
  %466 = vmatprep.subr.mxu0 0.0
  %467 = vmatpush1.msra.mxu0 0.0
  %468 = vmatprep.subr.mxu0 0.0
  %469 = vmatpush1.msra.mxu0 0.0
  %470 = vmatprep.subr.mxu0 0.0
  %471 = vmatpush1.msra.mxu0 0.0
  %472 = vmatprep.subr.mxu0 0.0
  %473 = vmatpush1.msra.mxu0 0.0
  %474 = vmatprep.subr.mxu0 0.0
  %475 = vmatpush1.msra.mxu0 0.0
  %476 = vmatprep.subr.mxu0 0.0
  %477 = vmatpush1.msra.mxu0 0.0
  %478 = vmatprep.subr.mxu0 0.0
  %479 = vmatpush1.msra.mxu0 0.0
  %480 = vmatprep.subr.mxu0 0.0
  %481 = vmatpush1.msra.mxu0 0.0
  %482 = vmatprep.subr.mxu0 0.0
  %483 = vmatpush1.msra.mxu0 0.0
  %484 = vmatprep.subr.mxu0 0.0
  %485 = vmatpush1.msra.mxu0 0.0
  %486 = vmatprep.subr.mxu0 0.0
  %487 = vmatpush1.msra.mxu0 0.0
  %488 = vmatprep.mubr.f32.mxu0 0.0
  %v489 = vand.u32 %v107, 4294901760
  %490 = vmatmul.mubr.f32.gmra.mrb[0].mxu0 %v489
  %v491 = vpop.f32.mrb[0].mxu0
  %v492 = vadd.f32 %v415, %v491
  %v493 = vpop.f32.mrb[0].mxu0
  %494 = vdwg.mxu0
  %495 = vmatprep.subr.mxu0 0.0
  %v496 = vand.u32 %v26, 4294901760
  %497 = vmatpush1.msra.mxu0 %v496
  %498 = vmatprep.subr.mxu0 0.0
  %v499 = vand.u32 %v27, 4294901760
  %500 = vmatpush1.msra.mxu0 %v499
  %501 = vmatprep.subr.mxu0 0.0
  %502 = vmatpush1.msra.mxu0 0.0
  %503 = vmatprep.subr.mxu0 0.0
  %504 = vmatpush1.msra.mxu0 0.0
  %505 = vmatprep.subr.mxu0 0.0
  %506 = vmatpush1.msra.mxu0 0.0
  %507 = vmatprep.subr.mxu0 0.0
  %508 = vmatpush1.msra.mxu0 0.0
  %509 = vmatprep.subr.mxu0 0.0
  %510 = vmatpush1.msra.mxu0 0.0
  %511 = vmatprep.subr.mxu0 0.0
  %512 = vmatpush1.msra.mxu0 0.0
  %513 = vmatprep.subr.mxu0 0.0
  %514 = vmatpush1.msra.mxu0 0.0
  %515 = vmatprep.subr.mxu0 0.0
  %516 = vmatpush1.msra.mxu0 0.0
  %517 = vmatprep.subr.mxu0 0.0
  %518 = vmatpush1.msra.mxu0 0.0
  %519 = vmatprep.subr.mxu0 0.0
  %520 = vmatpush1.msra.mxu0 0.0
  %521 = vmatprep.subr.mxu0 0.0
  %522 = vmatpush1.msra.mxu0 0.0
  %523 = vmatprep.subr.mxu0 0.0
  %524 = vmatpush1.msra.mxu0 0.0
  %525 = vmatprep.subr.mxu0 0.0
  %526 = vmatpush1.msra.mxu0 0.0
  %527 = vmatprep.subr.mxu0 0.0
  %528 = vmatpush1.msra.mxu0 0.0
  %529 = vmatprep.subr.mxu0 0.0
  %530 = vmatpush1.msra.mxu0 0.0
  %531 = vmatprep.subr.mxu0 0.0
  %532 = vmatpush1.msra.mxu0 0.0
  %533 = vmatprep.subr.mxu0 0.0
  %534 = vmatpush1.msra.mxu0 0.0
  %535 = vmatprep.subr.mxu0 0.0
  %536 = vmatpush1.msra.mxu0 0.0
  %537 = vmatprep.subr.mxu0 0.0
  %538 = vmatpush1.msra.mxu0 0.0
  %539 = vmatprep.subr.mxu0 0.0
  %540 = vmatpush1.msra.mxu0 0.0
  %541 = vmatprep.subr.mxu0 0.0
  %542 = vmatpush1.msra.mxu0 0.0
  %543 = vmatprep.subr.mxu0 0.0
  %544 = vmatpush1.msra.mxu0 0.0
  %545 = vmatprep.subr.mxu0 0.0
  %546 = vmatpush1.msra.mxu0 0.0
  %547 = vmatprep.subr.mxu0 0.0
  %548 = vmatpush1.msra.mxu0 0.0
  %549 = vmatprep.subr.mxu0 0.0
  %550 = vmatpush1.msra.mxu0 0.0
  %551 = vmatprep.subr.mxu0 0.0
  %552 = vmatpush1.msra.mxu0 0.0
  %553 = vmatprep.subr.mxu0 0.0
  %554 = vmatpush1.msra.mxu0 0.0
  %555 = vmatprep.subr.mxu0 0.0
  %556 = vmatpush1.msra.mxu0 0.0
  %557 = vmatprep.subr.mxu0 0.0
  %558 = vmatpush1.msra.mxu0 0.0
  %559 = vmatprep.subr.mxu0 0.0
  %560 = vmatpush1.msra.mxu0 0.0
  %561 = vmatprep.mubr.f32.mxu0 0.0
  %v562 = vand.u32 %v107, 4294901760
  %563 = vmatmul.mubr.f32.gmra.mrb[0].mxu0 %v562
  %v564 = vpop.f32.mrb[0].mxu0
  %v565 = vadd.f32 %v492, %v564
  %v566 = vpop.f32.mrb[0].mxu0
  %567 = vdwg.mxu0
  %v568 = vadd.f32 %v97, %v565
  %v569 = vtanh.pop %v568
  %v570 = vmul.f32 %v569, 0.5
  %v571 = vadd.f32 %v570, 0.5
  %v572 = vmul.f32 %v571, 0.0
  %574 = vrot.lane.b32.xlu0 %v569, 80
  %v575 = vpop.permute.xlu0 %574
  %v577 = vmul.f32 %v571, %v575
  %579 = vrot.lane.b32.xlu0 %v577, 16
  %v580 = vpop.permute.xlu0 %579
  %v582 = vadd.f32 %v572, %v580
  %v583 = vtanh.pop %v582
  %585 = vrot.lane.b32.xlu0 %v583, 16
  %v586 = vpop.permute.xlu0 %585
  %v588 = vmul.f32 %v571, %v586
  %590 = vrot.lane.b32.xlu0 %v588, 96
  %v591 = vpop.permute.xlu0 %590
  %v592 = vsel %vm105, %v591, 0
  %594 = vmatprep.subr.mxu0 0.0
  %v595 = vand.u32 %v26, 4294901760
  %596 = vmatpush1.msra.mxu0 %v595
  %597 = vmatprep.subr.mxu0 0.0
  %v598 = vand.u32 %v27, 4294901760
  %599 = vmatpush1.msra.mxu0 %v598
  %600 = vmatprep.subr.mxu0 0.0
  %601 = vmatpush1.msra.mxu0 0.0
  %602 = vmatprep.subr.mxu0 0.0
  %603 = vmatpush1.msra.mxu0 0.0
  %604 = vmatprep.subr.mxu0 0.0
  %605 = vmatpush1.msra.mxu0 0.0
  %606 = vmatprep.subr.mxu0 0.0
  %607 = vmatpush1.msra.mxu0 0.0
  %608 = vmatprep.subr.mxu0 0.0
  %609 = vmatpush1.msra.mxu0 0.0
  %610 = vmatprep.subr.mxu0 0.0
  %611 = vmatpush1.msra.mxu0 0.0
  %612 = vmatprep.subr.mxu0 0.0
  %613 = vmatpush1.msra.mxu0 0.0
  %614 = vmatprep.subr.mxu0 0.0
  %615 = vmatpush1.msra.mxu0 0.0
  %616 = vmatprep.subr.mxu0 0.0
  %617 = vmatpush1.msra.mxu0 0.0
  %618 = vmatprep.subr.mxu0 0.0
  %619 = vmatpush1.msra.mxu0 0.0
  %620 = vmatprep.subr.mxu0 0.0
  %621 = vmatpush1.msra.mxu0 0.0
  %622 = vmatprep.subr.mxu0 0.0
  %623 = vmatpush1.msra.mxu0 0.0
  %624 = vmatprep.subr.mxu0 0.0
  %625 = vmatpush1.msra.mxu0 0.0
  %626 = vmatprep.subr.mxu0 0.0
  %627 = vmatpush1.msra.mxu0 0.0
  %628 = vmatprep.subr.mxu0 0.0
  %629 = vmatpush1.msra.mxu0 0.0
  %630 = vmatprep.subr.mxu0 0.0
  %631 = vmatpush1.msra.mxu0 0.0
  %632 = vmatprep.subr.mxu0 0.0
  %633 = vmatpush1.msra.mxu0 0.0
  %634 = vmatprep.subr.mxu0 0.0
  %635 = vmatpush1.msra.mxu0 0.0
  %636 = vmatprep.subr.mxu0 0.0
  %637 = vmatpush1.msra.mxu0 0.0
  %638 = vmatprep.subr.mxu0 0.0
  %639 = vmatpush1.msra.mxu0 0.0
  %640 = vmatprep.subr.mxu0 0.0
  %641 = vmatpush1.msra.mxu0 0.0
  %642 = vmatprep.subr.mxu0 0.0
  %643 = vmatpush1.msra.mxu0 0.0
  %644 = vmatprep.subr.mxu0 0.0
  %645 = vmatpush1.msra.mxu0 0.0
  %646 = vmatprep.subr.mxu0 0.0
  %647 = vmatpush1.msra.mxu0 0.0
  %648 = vmatprep.subr.mxu0 0.0
  %649 = vmatpush1.msra.mxu0 0.0
  %650 = vmatprep.subr.mxu0 0.0
  %651 = vmatpush1.msra.mxu0 0.0
  %652 = vmatprep.subr.mxu0 0.0
  %653 = vmatpush1.msra.mxu0 0.0
  %654 = vmatprep.subr.mxu0 0.0
  %655 = vmatpush1.msra.mxu0 0.0
  %656 = vmatprep.subr.mxu0 0.0
  %657 = vmatpush1.msra.mxu0 0.0
  %658 = vmatprep.subr.mxu0 0.0
  %659 = vmatpush1.msra.mxu0 0.0
  %660 = vmatprep.mubr.f32.mxu0 0.0
  %v661 = vand.u32 %v592, 4294901760
  %v662 = vsub.f32 %v592, %v661
  %v663 = vand.u32 %v662, 4294901760
  %v664 = vsub.f32 %v662, %v663
  %v665 = vand.u32 %v664, 4294901760
  %666 = vmatmul.mubr.f32.gmra.mrb[0].mxu0 %v665
  %v667 = vpop.f32.mrb[0].mxu0
  %v668 = vadd.f32 0.0, %v667
  %v669 = vpop.f32.mrb[0].mxu0
  %670 = vdwg.mxu0
  %671 = vmatprep.subr.mxu0 0.0
  %v672 = vand.u32 %v26, 4294901760
  %v673 = vsub.f32 %v26, %v672
  %v674 = vand.u32 %v673, 4294901760
  %v675 = vsub.f32 %v673, %v674
  %v676 = vand.u32 %v675, 4294901760
  %677 = vmatpush1.msra.mxu0 %v676
  %678 = vmatprep.subr.mxu0 0.0
  %v679 = vand.u32 %v27, 4294901760
  %v680 = vsub.f32 %v27, %v679
  %v681 = vand.u32 %v680, 4294901760
  %v682 = vsub.f32 %v680, %v681
  %v683 = vand.u32 %v682, 4294901760
  %684 = vmatpush1.msra.mxu0 %v683
  %685 = vmatprep.subr.mxu0 0.0
  %686 = vmatpush1.msra.mxu0 0.0
  %687 = vmatprep.subr.mxu0 0.0
  %688 = vmatpush1.msra.mxu0 0.0
  %689 = vmatprep.subr.mxu0 0.0
  %690 = vmatpush1.msra.mxu0 0.0
  %691 = vmatprep.subr.mxu0 0.0
  %692 = vmatpush1.msra.mxu0 0.0
  %693 = vmatprep.subr.mxu0 0.0
  %694 = vmatpush1.msra.mxu0 0.0
  %695 = vmatprep.subr.mxu0 0.0
  %696 = vmatpush1.msra.mxu0 0.0
  %697 = vmatprep.subr.mxu0 0.0
  %698 = vmatpush1.msra.mxu0 0.0
  %699 = vmatprep.subr.mxu0 0.0
  %700 = vmatpush1.msra.mxu0 0.0
  %701 = vmatprep.subr.mxu0 0.0
  %702 = vmatpush1.msra.mxu0 0.0
  %703 = vmatprep.subr.mxu0 0.0
  %704 = vmatpush1.msra.mxu0 0.0
  %705 = vmatprep.subr.mxu0 0.0
  %706 = vmatpush1.msra.mxu0 0.0
  %707 = vmatprep.subr.mxu0 0.0
  %708 = vmatpush1.msra.mxu0 0.0
  %709 = vmatprep.subr.mxu0 0.0
  %710 = vmatpush1.msra.mxu0 0.0
  %711 = vmatprep.subr.mxu0 0.0
  %712 = vmatpush1.msra.mxu0 0.0
  %713 = vmatprep.subr.mxu0 0.0
  %714 = vmatpush1.msra.mxu0 0.0
  %715 = vmatprep.subr.mxu0 0.0
  %716 = vmatpush1.msra.mxu0 0.0
  %717 = vmatprep.subr.mxu0 0.0
  %718 = vmatpush1.msra.mxu0 0.0
  %719 = vmatprep.subr.mxu0 0.0
  %720 = vmatpush1.msra.mxu0 0.0
  %721 = vmatprep.subr.mxu0 0.0
  %722 = vmatpush1.msra.mxu0 0.0
  %723 = vmatprep.subr.mxu0 0.0
  %724 = vmatpush1.msra.mxu0 0.0
  %725 = vmatprep.subr.mxu0 0.0
  %726 = vmatpush1.msra.mxu0 0.0
  %727 = vmatprep.subr.mxu0 0.0
  %728 = vmatpush1.msra.mxu0 0.0
  %729 = vmatprep.subr.mxu0 0.0
  %730 = vmatpush1.msra.mxu0 0.0
  %731 = vmatprep.subr.mxu0 0.0
  %732 = vmatpush1.msra.mxu0 0.0
  %733 = vmatprep.subr.mxu0 0.0
  %734 = vmatpush1.msra.mxu0 0.0
  %735 = vmatprep.subr.mxu0 0.0
  %736 = vmatpush1.msra.mxu0 0.0
  %737 = vmatprep.subr.mxu0 0.0
  %738 = vmatpush1.msra.mxu0 0.0
  %739 = vmatprep.subr.mxu0 0.0
  %740 = vmatpush1.msra.mxu0 0.0
  %741 = vmatprep.subr.mxu0 0.0
  %742 = vmatpush1.msra.mxu0 0.0
  %743 = vmatprep.subr.mxu0 0.0
  %744 = vmatpush1.msra.mxu0 0.0
  %745 = vmatprep.mubr.f32.mxu0 0.0
  %v746 = vand.u32 %v592, 4294901760
  %747 = vmatmul.mubr.f32.gmra.mrb[0].mxu0 %v746
  %v748 = vpop.f32.mrb[0].mxu0
  %v749 = vadd.f32 %v668, %v748
  %v750 = vpop.f32.mrb[0].mxu0
  %751 = vdwg.mxu0
  %752 = vmatprep.subr.mxu0 0.0
  %v753 = vand.u32 %v26, 4294901760
  %v754 = vsub.f32 %v26, %v753
  %755 = vmatpush1.msra.mxu0 %v754
  %756 = vmatprep.subr.mxu0 0.0
  %v757 = vand.u32 %v27, 4294901760
  %v758 = vsub.f32 %v27, %v757
  %759 = vmatpush1.msra.mxu0 %v758
  %760 = vmatprep.subr.mxu0 0.0
  %761 = vmatpush1.msra.mxu0 0.0
  %762 = vmatprep.subr.mxu0 0.0
  %763 = vmatpush1.msra.mxu0 0.0
  %764 = vmatprep.subr.mxu0 0.0
  %765 = vmatpush1.msra.mxu0 0.0
  %766 = vmatprep.subr.mxu0 0.0
  %767 = vmatpush1.msra.mxu0 0.0
  %768 = vmatprep.subr.mxu0 0.0
  %769 = vmatpush1.msra.mxu0 0.0
  %770 = vmatprep.subr.mxu0 0.0
  %771 = vmatpush1.msra.mxu0 0.0
  %772 = vmatprep.subr.mxu0 0.0
  %773 = vmatpush1.msra.mxu0 0.0
  %774 = vmatprep.subr.mxu0 0.0
  %775 = vmatpush1.msra.mxu0 0.0
  %776 = vmatprep.subr.mxu0 0.0
  %777 = vmatpush1.msra.mxu0 0.0
  %778 = vmatprep.subr.mxu0 0.0
  %779 = vmatpush1.msra.mxu0 0.0
  %780 = vmatprep.subr.mxu0 0.0
  %781 = vmatpush1.msra.mxu0 0.0
  %782 = vmatprep.subr.mxu0 0.0
  %783 = vmatpush1.msra.mxu0 0.0
  %784 = vmatprep.subr.mxu0 0.0
  %785 = vmatpush1.msra.mxu0 0.0
  %786 = vmatprep.subr.mxu0 0.0
  %787 = vmatpush1.msra.mxu0 0.0
  %788 = vmatprep.subr.mxu0 0.0
  %789 = vmatpush1.msra.mxu0 0.0
  %790 = vmatprep.subr.mxu0 0.0
  %791 = vmatpush1.msra.mxu0 0.0
  %792 = vmatprep.subr.mxu0 0.0
  %793 = vmatpush1.msra.mxu0 0.0
  %794 = vmatprep.subr.mxu0 0.0
  %795 = vmatpush1.msra.mxu0 0.0
  %796 = vmatprep.subr.mxu0 0.0
  %797 = vmatpush1.msra.mxu0 0.0
  %798 = vmatprep.subr.mxu0 0.0
  %799 = vmatpush1.msra.mxu0 0.0
  %800 = vmatprep.subr.mxu0 0.0
  %801 = vmatpush1.msra.mxu0 0.0
  %802 = vmatprep.subr.mxu0 0.0
  %803 = vmatpush1.msra.mxu0 0.0
  %804 = vmatprep.subr.mxu0 0.0
  %805 = vmatpush1.msra.mxu0 0.0
  %806 = vmatprep.subr.mxu0 0.0
  %807 = vmatpush1.msra.mxu0 0.0
  %808 = vmatprep.subr.mxu0 0.0
  %809 = vmatpush1.msra.mxu0 0.0
  %810 = vmatprep.subr.mxu0 0.0
  %811 = vmatpush1.msra.mxu0 0.0
  %812 = vmatprep.subr.mxu0 0.0
  %813 = vmatpush1.msra.mxu0 0.0
  %814 = vmatprep.subr.mxu0 0.0
  %815 = vmatpush1.msra.mxu0 0.0
  %816 = vmatprep.subr.mxu0 0.0
  %817 = vmatpush1.msra.mxu0 0.0
  %818 = vmatprep.subr.mxu0 0.0
  %819 = vmatpush1.msra.mxu0 0.0
  %820 = vmatprep.mubr.f32.mxu0 0.0
  %v821 = vand.u32 %v592, 4294901760
  %v822 = vsub.f32 %v592, %v821
  %823 = vmatmul.mubr.f32.gmra.mrb[0].mxu0 %v822
  %v824 = vpop.f32.mrb[0].mxu0
  %v825 = vadd.f32 %v749, %v824
  %v826 = vpop.f32.mrb[0].mxu0
  %827 = vdwg.mxu0
  %828 = vmatprep.subr.mxu0 0.0
  %v829 = vand.u32 %v26, 4294901760
  %830 = vmatpush1.msra.mxu0 %v829
  %831 = vmatprep.subr.mxu0 0.0
  %v832 = vand.u32 %v27, 4294901760
  %833 = vmatpush1.msra.mxu0 %v832
  %834 = vmatprep.subr.mxu0 0.0
  %835 = vmatpush1.msra.mxu0 0.0
  %836 = vmatprep.subr.mxu0 0.0
  %837 = vmatpush1.msra.mxu0 0.0
  %838 = vmatprep.subr.mxu0 0.0
  %839 = vmatpush1.msra.mxu0 0.0
  %840 = vmatprep.subr.mxu0 0.0
  %841 = vmatpush1.msra.mxu0 0.0
  %842 = vmatprep.subr.mxu0 0.0
  %843 = vmatpush1.msra.mxu0 0.0
  %844 = vmatprep.subr.mxu0 0.0
  %845 = vmatpush1.msra.mxu0 0.0
  %846 = vmatprep.subr.mxu0 0.0
  %847 = vmatpush1.msra.mxu0 0.0
  %848 = vmatprep.subr.mxu0 0.0
  %849 = vmatpush1.msra.mxu0 0.0
  %850 = vmatprep.subr.mxu0 0.0
  %851 = vmatpush1.msra.mxu0 0.0
  %852 = vmatprep.subr.mxu0 0.0
  %853 = vmatpush1.msra.mxu0 0.0
  %854 = vmatprep.subr.mxu0 0.0
  %855 = vmatpush1.msra.mxu0 0.0
  %856 = vmatprep.subr.mxu0 0.0
  %857 = vmatpush1.msra.mxu0 0.0
  %858 = vmatprep.subr.mxu0 0.0
  %859 = vmatpush1.msra.mxu0 0.0
  %860 = vmatprep.subr.mxu0 0.0
  %861 = vmatpush1.msra.mxu0 0.0
  %862 = vmatprep.subr.mxu0 0.0
  %863 = vmatpush1.msra.mxu0 0.0
  %864 = vmatprep.subr.mxu0 0.0
  %865 = vmatpush1.msra.mxu0 0.0
  %866 = vmatprep.subr.mxu0 0.0
  %867 = vmatpush1.msra.mxu0 0.0
  %868 = vmatprep.subr.mxu0 0.0
  %869 = vmatpush1.msra.mxu0 0.0
  %870 = vmatprep.subr.mxu0 0.0
  %871 = vmatpush1.msra.mxu0 0.0
  %872 = vmatprep.subr.mxu0 0.0
  %873 = vmatpush1.msra.mxu0 0.0
  %874 = vmatprep.subr.mxu0 0.0
  %875 = vmatpush1.msra.mxu0 0.0
  %876 = vmatprep.subr.mxu0 0.0
  %877 = vmatpush1.msra.mxu0 0.0
  %878 = vmatprep.subr.mxu0 0.0
  %879 = vmatpush1.msra.mxu0 0.0
  %880 = vmatprep.subr.mxu0 0.0
  %881 = vmatpush1.msra.mxu0 0.0
  %882 = vmatprep.subr.mxu0 0.0
  %883 = vmatpush1.msra.mxu0 0.0
  %884 = vmatprep.subr.mxu0 0.0
  %885 = vmatpush1.msra.mxu0 0.0
  %886 = vmatprep.subr.mxu0 0.0
  %887 = vmatpush1.msra.mxu0 0.0
  %888 = vmatprep.subr.mxu0 0.0
  %889 = vmatpush1.msra.mxu0 0.0
  %890 = vmatprep.subr.mxu0 0.0
  %891 = vmatpush1.msra.mxu0 0.0
  %892 = vmatprep.subr.mxu0 0.0
  %893 = vmatpush1.msra.mxu0 0.0
  %894 = vmatprep.mubr.f32.mxu0 0.0
  %v895 = vand.u32 %v592, 4294901760
  %v896 = vsub.f32 %v592, %v895
  %v897 = vand.u32 %v896, 4294901760
  %898 = vmatmul.mubr.f32.gmra.mrb[0].mxu0 %v897
  %v899 = vpop.f32.mrb[0].mxu0
  %v900 = vadd.f32 %v825, %v899
  %v901 = vpop.f32.mrb[0].mxu0
  %902 = vdwg.mxu0
  %903 = vmatprep.subr.mxu0 0.0
  %v904 = vand.u32 %v26, 4294901760
  %v905 = vsub.f32 %v26, %v904
  %v906 = vand.u32 %v905, 4294901760
  %907 = vmatpush1.msra.mxu0 %v906
  %908 = vmatprep.subr.mxu0 0.0
  %v909 = vand.u32 %v27, 4294901760
  %v910 = vsub.f32 %v27, %v909
  %v911 = vand.u32 %v910, 4294901760
  %912 = vmatpush1.msra.mxu0 %v911
  %913 = vmatprep.subr.mxu0 0.0
  %914 = vmatpush1.msra.mxu0 0.0
  %915 = vmatprep.subr.mxu0 0.0
  %916 = vmatpush1.msra.mxu0 0.0
  %917 = vmatprep.subr.mxu0 0.0
  %918 = vmatpush1.msra.mxu0 0.0
  %919 = vmatprep.subr.mxu0 0.0
  %920 = vmatpush1.msra.mxu0 0.0
  %921 = vmatprep.subr.mxu0 0.0
  %922 = vmatpush1.msra.mxu0 0.0
  %923 = vmatprep.subr.mxu0 0.0
  %924 = vmatpush1.msra.mxu0 0.0
  %925 = vmatprep.subr.mxu0 0.0
  %926 = vmatpush1.msra.mxu0 0.0
  %927 = vmatprep.subr.mxu0 0.0
  %928 = vmatpush1.msra.mxu0 0.0
  %929 = vmatprep.subr.mxu0 0.0
  %930 = vmatpush1.msra.mxu0 0.0
  %931 = vmatprep.subr.mxu0 0.0
  %932 = vmatpush1.msra.mxu0 0.0
  %933 = vmatprep.subr.mxu0 0.0
  %934 = vmatpush1.msra.mxu0 0.0
  %935 = vmatprep.subr.mxu0 0.0
  %936 = vmatpush1.msra.mxu0 0.0
  %937 = vmatprep.subr.mxu0 0.0
  %938 = vmatpush1.msra.mxu0 0.0
  %939 = vmatprep.subr.mxu0 0.0
  %940 = vmatpush1.msra.mxu0 0.0
  %941 = vmatprep.subr.mxu0 0.0
  %942 = vmatpush1.msra.mxu0 0.0
  %943 = vmatprep.subr.mxu0 0.0
  %944 = vmatpush1.msra.mxu0 0.0
  %945 = vmatprep.subr.mxu0 0.0
  %946 = vmatpush1.msra.mxu0 0.0
  %947 = vmatprep.subr.mxu0 0.0
  %948 = vmatpush1.msra.mxu0 0.0
  %949 = vmatprep.subr.mxu0 0.0
  %950 = vmatpush1.msra.mxu0 0.0
  %951 = vmatprep.subr.mxu0 0.0
  %952 = vmatpush1.msra.mxu0 0.0
  %953 = vmatprep.subr.mxu0 0.0
  %954 = vmatpush1.msra.mxu0 0.0
  %955 = vmatprep.subr.mxu0 0.0
  %956 = vmatpush1.msra.mxu0 0.0
  %957 = vmatprep.subr.mxu0 0.0
  %958 = vmatpush1.msra.mxu0 0.0
  %959 = vmatprep.subr.mxu0 0.0
  %960 = vmatpush1.msra.mxu0 0.0
  %961 = vmatprep.subr.mxu0 0.0
  %962 = vmatpush1.msra.mxu0 0.0
  %963 = vmatprep.subr.mxu0 0.0
  %964 = vmatpush1.msra.mxu0 0.0
  %965 = vmatprep.subr.mxu0 0.0
  %966 = vmatpush1.msra.mxu0 0.0
  %967 = vmatprep.subr.mxu0 0.0
  %968 = vmatpush1.msra.mxu0 0.0
  %969 = vmatprep.subr.mxu0 0.0
  %970 = vmatpush1.msra.mxu0 0.0
  %971 = vmatprep.subr.mxu0 0.0
  %972 = vmatpush1.msra.mxu0 0.0
  %973 = vmatprep.mubr.f32.mxu0 0.0
  %v974 = vand.u32 %v592, 4294901760
  %975 = vmatmul.mubr.f32.gmra.mrb[0].mxu0 %v974
  %v976 = vpop.f32.mrb[0].mxu0
  %v977 = vadd.f32 %v900, %v976
  %v978 = vpop.f32.mrb[0].mxu0
  %979 = vdwg.mxu0
  %980 = vmatprep.subr.mxu0 0.0
  %v981 = vand.u32 %v26, 4294901760
  %982 = vmatpush1.msra.mxu0 %v981
  %983 = vmatprep.subr.mxu0 0.0
  %v984 = vand.u32 %v27, 4294901760
  %985 = vmatpush1.msra.mxu0 %v984
  %986 = vmatprep.subr.mxu0 0.0
  %987 = vmatpush1.msra.mxu0 0.0
  %988 = vmatprep.subr.mxu0 0.0
  %989 = vmatpush1.msra.mxu0 0.0
  %990 = vmatprep.subr.mxu0 0.0
  %991 = vmatpush1.msra.mxu0 0.0
  %992 = vmatprep.subr.mxu0 0.0
  %993 = vmatpush1.msra.mxu0 0.0
  %994 = vmatprep.subr.mxu0 0.0
  %995 = vmatpush1.msra.mxu0 0.0
  %996 = vmatprep.subr.mxu0 0.0
  %997 = vmatpush1.msra.mxu0 0.0
  %998 = vmatprep.subr.mxu0 0.0
  %999 = vmatpush1.msra.mxu0 0.0
  %1000 = vmatprep.subr.mxu0 0.0
  %1001 = vmatpush1.msra.mxu0 0.0
  %1002 = vmatprep.subr.mxu0 0.0
  %1003 = vmatpush1.msra.mxu0 0.0
  %1004 = vmatprep.subr.mxu0 0.0
  %1005 = vmatpush1.msra.mxu0 0.0
  %1006 = vmatprep.subr.mxu0 0.0
  %1007 = vmatpush1.msra.mxu0 0.0
  %1008 = vmatprep.subr.mxu0 0.0
  %1009 = vmatpush1.msra.mxu0 0.0
  %1010 = vmatprep.subr.mxu0 0.0
  %1011 = vmatpush1.msra.mxu0 0.0
  %1012 = vmatprep.subr.mxu0 0.0
  %1013 = vmatpush1.msra.mxu0 0.0
  %1014 = vmatprep.subr.mxu0 0.0
  %1015 = vmatpush1.msra.mxu0 0.0
  %1016 = vmatprep.subr.mxu0 0.0
  %1017 = vmatpush1.msra.mxu0 0.0
  %1018 = vmatprep.subr.mxu0 0.0
  %1019 = vmatpush1.msra.mxu0 0.0
  %1020 = vmatprep.subr.mxu0 0.0
  %1021 = vmatpush1.msra.mxu0 0.0
  %1022 = vmatprep.subr.mxu0 0.0
  %1023 = vmatpush1.msra.mxu0 0.0
  %1024 = vmatprep.subr.mxu0 0.0
  %1025 = vmatpush1.msra.mxu0 0.0
  %1026 = vmatprep.subr.mxu0 0.0
  %1027 = vmatpush1.msra.mxu0 0.0
  %1028 = vmatprep.subr.mxu0 0.0
  %1029 = vmatpush1.msra.mxu0 0.0
  %1030 = vmatprep.subr.mxu0 0.0
  %1031 = vmatpush1.msra.mxu0 0.0
  %1032 = vmatprep.subr.mxu0 0.0
  %1033 = vmatpush1.msra.mxu0 0.0
  %1034 = vmatprep.subr.mxu0 0.0
  %1035 = vmatpush1.msra.mxu0 0.0
  %1036 = vmatprep.subr.mxu0 0.0
  %1037 = vmatpush1.msra.mxu0 0.0
  %1038 = vmatprep.subr.mxu0 0.0
  %1039 = vmatpush1.msra.mxu0 0.0
  %1040 = vmatprep.subr.mxu0 0.0
  %1041 = vmatpush1.msra.mxu0 0.0
  %1042 = vmatprep.subr.mxu0 0.0
  %1043 = vmatpush1.msra.mxu0 0.0
  %1044 = vmatprep.subr.mxu0 0.0
  %1045 = vmatpush1.msra.mxu0 0.0
  %1046 = vmatprep.mubr.f32.mxu0 0.0
  %v1047 = vand.u32 %v592, 4294901760
  %1048 = vmatmul.mubr.f32.gmra.mrb[0].mxu0 %v1047
  %v1049 = vpop.f32.mrb[0].mxu0
  %v1050 = vadd.f32 %v977, %v1049
  %v1051 = vpop.f32.mrb[0].mxu0
  %1052 = vdwg.mxu0
  %v1053 = vadd.f32 %v98, %v1050
  %v1054 = vtanh.pop %v1053
  %v1055 = vmul.f32 %v1054, 0.5
  %v1056 = vadd.f32 %v1055, 0.5
  %v1057 = vmul.f32 %v1056, %v582
  %1059 = vrot.lane.b32.xlu0 %v1054, 80
  %v1060 = vpop.permute.xlu0 %1059
  %v1062 = vmul.f32 %v1056, %v1060
  %1064 = vrot.lane.b32.xlu0 %v1062, 16
  %v1065 = vpop.permute.xlu0 %1064
  %v1067 = vadd.f32 %v1057, %v1065
  %v1068 = vtanh.pop %v1067
  %1070 = vrot.lane.b32.xlu0 %v1068, 16
  %v1071 = vpop.permute.xlu0 %1070
  %v1073 = vmul.f32 %v1056, %v1071
  %1075 = vrot.lane.b32.xlu0 %v1073, 96
  %v1076 = vpop.permute.xlu0 %1075
  %v1077 = vsel %vm105, %v1076, 0
  %1079 = vmatprep.subr.mxu0 0.0
  %v1080 = vand.u32 %v26, 4294901760
  %1081 = vmatpush1.msra.mxu0 %v1080
  %1082 = vmatprep.subr.mxu0 0.0
  %v1083 = vand.u32 %v27, 4294901760
  %1084 = vmatpush1.msra.mxu0 %v1083
  %1085 = vmatprep.subr.mxu0 0.0
  %1086 = vmatpush1.msra.mxu0 0.0
  %1087 = vmatprep.subr.mxu0 0.0
  %1088 = vmatpush1.msra.mxu0 0.0
  %1089 = vmatprep.subr.mxu0 0.0
  %1090 = vmatpush1.msra.mxu0 0.0
  %1091 = vmatprep.subr.mxu0 0.0
  %1092 = vmatpush1.msra.mxu0 0.0
  %1093 = vmatprep.subr.mxu0 0.0
  %1094 = vmatpush1.msra.mxu0 0.0
  %1095 = vmatprep.subr.mxu0 0.0
  %1096 = vmatpush1.msra.mxu0 0.0
  %1097 = vmatprep.subr.mxu0 0.0
  %1098 = vmatpush1.msra.mxu0 0.0
  %1099 = vmatprep.subr.mxu0 0.0
  %1100 = vmatpush1.msra.mxu0 0.0
  %1101 = vmatprep.subr.mxu0 0.0
  %1102 = vmatpush1.msra.mxu0 0.0
  %1103 = vmatprep.subr.mxu0 0.0
  %1104 = vmatpush1.msra.mxu0 0.0
  %1105 = vmatprep.subr.mxu0 0.0
  %1106 = vmatpush1.msra.mxu0 0.0
  %1107 = vmatprep.subr.mxu0 0.0
  %1108 = vmatpush1.msra.mxu0 0.0
  %1109 = vmatprep.subr.mxu0 0.0
  %1110 = vmatpush1.msra.mxu0 0.0
  %1111 = vmatprep.subr.mxu0 0.0
  %1112 = vmatpush1.msra.mxu0 0.0
  %1113 = vmatprep.subr.mxu0 0.0
  %1114 = vmatpush1.msra.mxu0 0.0
  %1115 = vmatprep.subr.mxu0 0.0
  %1116 = vmatpush1.msra.mxu0 0.0
  %1117 = vmatprep.subr.mxu0 0.0
  %1118 = vmatpush1.msra.mxu0 0.0
  %1119 = vmatprep.subr.mxu0 0.0
  %1120 = vmatpush1.msra.mxu0 0.0
  %1121 = vmatprep.subr.mxu0 0.0
  %1122 = vmatpush1.msra.mxu0 0.0
  %1123 = vmatprep.subr.mxu0 0.0
  %1124 = vmatpush1.msra.mxu0 0.0
  %1125 = vmatprep.subr.mxu0 0.0
  %1126 = vmatpush1.msra.mxu0 0.0
  %1127 = vmatprep.subr.mxu0 0.0
  %1128 = vmatpush1.msra.mxu0 0.0
  %1129 = vmatprep.subr.mxu0 0.0
  %1130 = vmatpush1.msra.mxu0 0.0
  %1131 = vmatprep.subr.mxu0 0.0
  %1132 = vmatpush1.msra.mxu0 0.0
  %1133 = vmatprep.subr.mxu0 0.0
  %1134 = vmatpush1.msra.mxu0 0.0
  %1135 = vmatprep.subr.mxu0 0.0
  %1136 = vmatpush1.msra.mxu0 0.0
  %1137 = vmatprep.subr.mxu0 0.0
  %1138 = vmatpush1.msra.mxu0 0.0
  %1139 = vmatprep.subr.mxu0 0.0
  %1140 = vmatpush1.msra.mxu0 0.0
  %1141 = vmatprep.subr.mxu0 0.0
  %1142 = vmatpush1.msra.mxu0 0.0
  %1143 = vmatprep.subr.mxu0 0.0
  %1144 = vmatpush1.msra.mxu0 0.0
  %1145 = vmatprep.mubr.f32.mxu0 0.0
  %v1146 = vand.u32 %v1077, 4294901760
  %v1147 = vsub.f32 %v1077, %v1146
  %v1148 = vand.u32 %v1147, 4294901760
  %v1149 = vsub.f32 %v1147, %v1148
  %v1150 = vand.u32 %v1149, 4294901760
  %1151 = vmatmul.mubr.f32.gmra.mrb[0].mxu0 %v1150
  %v1152 = vpop.f32.mrb[0].mxu0
  %v1153 = vadd.f32 0.0, %v1152
  %v1154 = vpop.f32.mrb[0].mxu0
  %1155 = vdwg.mxu0
  %1156 = vmatprep.subr.mxu0 0.0
  %v1157 = vand.u32 %v26, 4294901760
  %v1158 = vsub.f32 %v26, %v1157
  %v1159 = vand.u32 %v1158, 4294901760
  %v1160 = vsub.f32 %v1158, %v1159
  %v1161 = vand.u32 %v1160, 4294901760
  %1162 = vmatpush1.msra.mxu0 %v1161
  %1163 = vmatprep.subr.mxu0 0.0
  %v1164 = vand.u32 %v27, 4294901760
  %v1165 = vsub.f32 %v27, %v1164
  %v1166 = vand.u32 %v1165, 4294901760
  %v1167 = vsub.f32 %v1165, %v1166
  %v1168 = vand.u32 %v1167, 4294901760
  %1169 = vmatpush1.msra.mxu0 %v1168
  %1170 = vmatprep.subr.mxu0 0.0
  %1171 = vmatpush1.msra.mxu0 0.0
  %1172 = vmatprep.subr.mxu0 0.0
  %1173 = vmatpush1.msra.mxu0 0.0
  %1174 = vmatprep.subr.mxu0 0.0
  %1175 = vmatpush1.msra.mxu0 0.0
  %1176 = vmatprep.subr.mxu0 0.0
  %1177 = vmatpush1.msra.mxu0 0.0
  %1178 = vmatprep.subr.mxu0 0.0
  %1179 = vmatpush1.msra.mxu0 0.0
  %1180 = vmatprep.subr.mxu0 0.0
  %1181 = vmatpush1.msra.mxu0 0.0
  %1182 = vmatprep.subr.mxu0 0.0
  %1183 = vmatpush1.msra.mxu0 0.0
  %1184 = vmatprep.subr.mxu0 0.0
  %1185 = vmatpush1.msra.mxu0 0.0
  %1186 = vmatprep.subr.mxu0 0.0
  %1187 = vmatpush1.msra.mxu0 0.0
  %1188 = vmatprep.subr.mxu0 0.0
  %1189 = vmatpush1.msra.mxu0 0.0
  %1190 = vmatprep.subr.mxu0 0.0
  %1191 = vmatpush1.msra.mxu0 0.0
  %1192 = vmatprep.subr.mxu0 0.0
  %1193 = vmatpush1.msra.mxu0 0.0
  %1194 = vmatprep.subr.mxu0 0.0
  %1195 = vmatpush1.msra.mxu0 0.0
  %1196 = vmatprep.subr.mxu0 0.0
  %1197 = vmatpush1.msra.mxu0 0.0
  %1198 = vmatprep.subr.mxu0 0.0
  %1199 = vmatpush1.msra.mxu0 0.0
  %1200 = vmatprep.subr.mxu0 0.0
  %1201 = vmatpush1.msra.mxu0 0.0
  %1202 = vmatprep.subr.mxu0 0.0
  %1203 = vmatpush1.msra.mxu0 0.0
  %1204 = vmatprep.subr.mxu0 0.0
  %1205 = vmatpush1.msra.mxu0 0.0
  %1206 = vmatprep.subr.mxu0 0.0
  %1207 = vmatpush1.msra.mxu0 0.0
  %1208 = vmatprep.subr.mxu0 0.0
  %1209 = vmatpush1.msra.mxu0 0.0
  %1210 = vmatprep.subr.mxu0 0.0
  %1211 = vmatpush1.msra.mxu0 0.0
  %1212 = vmatprep.subr.mxu0 0.0
  %1213 = vmatpush1.msra.mxu0 0.0
  %1214 = vmatprep.subr.mxu0 0.0
  %1215 = vmatpush1.msra.mxu0 0.0
  %1216 = vmatprep.subr.mxu0 0.0
  %1217 = vmatpush1.msra.mxu0 0.0
  %1218 = vmatprep.subr.mxu0 0.0
  %1219 = vmatpush1.msra.mxu0 0.0
  %1220 = vmatprep.subr.mxu0 0.0
  %1221 = vmatpush1.msra.mxu0 0.0
  %1222 = vmatprep.subr.mxu0 0.0
  %1223 = vmatpush1.msra.mxu0 0.0
  %1224 = vmatprep.subr.mxu0 0.0
  %1225 = vmatpush1.msra.mxu0 0.0
  %1226 = vmatprep.subr.mxu0 0.0
  %1227 = vmatpush1.msra.mxu0 0.0
  %1228 = vmatprep.subr.mxu0 0.0
  %1229 = vmatpush1.msra.mxu0 0.0
  %1230 = vmatprep.mubr.f32.mxu0 0.0
  %v1231 = vand.u32 %v1077, 4294901760
  %1232 = vmatmul.mubr.f32.gmra.mrb[0].mxu0 %v1231
  %v1233 = vpop.f32.mrb[0].mxu0
  %v1234 = vadd.f32 %v1153, %v1233
  %v1235 = vpop.f32.mrb[0].mxu0
  %1236 = vdwg.mxu0
  %1237 = vmatprep.subr.mxu0 0.0
  %v1238 = vand.u32 %v26, 4294901760
  %v1239 = vsub.f32 %v26, %v1238
  %1240 = vmatpush1.msra.mxu0 %v1239
  %1241 = vmatprep.subr.mxu0 0.0
  %v1242 = vand.u32 %v27, 4294901760
  %v1243 = vsub.f32 %v27, %v1242
  %1244 = vmatpush1.msra.mxu0 %v1243
  %1245 = vmatprep.subr.mxu0 0.0
  %1246 = vmatpush1.msra.mxu0 0.0
  %1247 = vmatprep.subr.mxu0 0.0
  %1248 = vmatpush1.msra.mxu0 0.0
  %1249 = vmatprep.subr.mxu0 0.0
  %1250 = vmatpush1.msra.mxu0 0.0
  %1251 = vmatprep.subr.mxu0 0.0
  %1252 = vmatpush1.msra.mxu0 0.0
  %1253 = vmatprep.subr.mxu0 0.0
  %1254 = vmatpush1.msra.mxu0 0.0
  %1255 = vmatprep.subr.mxu0 0.0
  %1256 = vmatpush1.msra.mxu0 0.0
  %1257 = vmatprep.subr.mxu0 0.0
  %1258 = vmatpush1.msra.mxu0 0.0
  %1259 = vmatprep.subr.mxu0 0.0
  %1260 = vmatpush1.msra.mxu0 0.0
  %1261 = vmatprep.subr.mxu0 0.0
  %1262 = vmatpush1.msra.mxu0 0.0
  %1263 = vmatprep.subr.mxu0 0.0
  %1264 = vmatpush1.msra.mxu0 0.0
  %1265 = vmatprep.subr.mxu0 0.0
  %1266 = vmatpush1.msra.mxu0 0.0
  %1267 = vmatprep.subr.mxu0 0.0
  %1268 = vmatpush1.msra.mxu0 0.0
  %1269 = vmatprep.subr.mxu0 0.0
  %1270 = vmatpush1.msra.mxu0 0.0
  %1271 = vmatprep.subr.mxu0 0.0
  %1272 = vmatpush1.msra.mxu0 0.0
  %1273 = vmatprep.subr.mxu0 0.0
  %1274 = vmatpush1.msra.mxu0 0.0
  %1275 = vmatprep.subr.mxu0 0.0
  %1276 = vmatpush1.msra.mxu0 0.0
  %1277 = vmatprep.subr.mxu0 0.0
  %1278 = vmatpush1.msra.mxu0 0.0
  %1279 = vmatprep.subr.mxu0 0.0
  %1280 = vmatpush1.msra.mxu0 0.0
  %1281 = vmatprep.subr.mxu0 0.0
  %1282 = vmatpush1.msra.mxu0 0.0
  %1283 = vmatprep.subr.mxu0 0.0
  %1284 = vmatpush1.msra.mxu0 0.0
  %1285 = vmatprep.subr.mxu0 0.0
  %1286 = vmatpush1.msra.mxu0 0.0
  %1287 = vmatprep.subr.mxu0 0.0
  %1288 = vmatpush1.msra.mxu0 0.0
  %1289 = vmatprep.subr.mxu0 0.0
  %1290 = vmatpush1.msra.mxu0 0.0
  %1291 = vmatprep.subr.mxu0 0.0
  %1292 = vmatpush1.msra.mxu0 0.0
  %1293 = vmatprep.subr.mxu0 0.0
  %1294 = vmatpush1.msra.mxu0 0.0
  %1295 = vmatprep.subr.mxu0 0.0
  %1296 = vmatpush1.msra.mxu0 0.0
  %1297 = vmatprep.subr.mxu0 0.0
  %1298 = vmatpush1.msra.mxu0 0.0
  %1299 = vmatprep.subr.mxu0 0.0
  %1300 = vmatpush1.msra.mxu0 0.0
  %1301 = vmatprep.subr.mxu0 0.0
  %1302 = vmatpush1.msra.mxu0 0.0
  %1303 = vmatprep.subr.mxu0 0.0
  %1304 = vmatpush1.msra.mxu0 0.0
  %1305 = vmatprep.mubr.f32.mxu0 0.0
  %v1306 = vand.u32 %v1077, 4294901760
  %v1307 = vsub.f32 %v1077, %v1306
  %1308 = vmatmul.mubr.f32.gmra.mrb[0].mxu0 %v1307
  %v1309 = vpop.f32.mrb[0].mxu0
  %v1310 = vadd.f32 %v1234, %v1309
  %v1311 = vpop.f32.mrb[0].mxu0
  %1312 = vdwg.mxu0
  %1313 = vmatprep.subr.mxu0 0.0
  %v1314 = vand.u32 %v26, 4294901760
  %1315 = vmatpush1.msra.mxu0 %v1314
  %1316 = vmatprep.subr.mxu0 0.0
  %v1317 = vand.u32 %v27, 4294901760
  %1318 = vmatpush1.msra.mxu0 %v1317
  %1319 = vmatprep.subr.mxu0 0.0
  %1320 = vmatpush1.msra.mxu0 0.0
  %1321 = vmatprep.subr.mxu0 0.0
  %1322 = vmatpush1.msra.mxu0 0.0
  %1323 = vmatprep.subr.mxu0 0.0
  %1324 = vmatpush1.msra.mxu0 0.0
  %1325 = vmatprep.subr.mxu0 0.0
  %1326 = vmatpush1.msra.mxu0 0.0
  %1327 = vmatprep.subr.mxu0 0.0
  %1328 = vmatpush1.msra.mxu0 0.0
  %1329 = vmatprep.subr.mxu0 0.0
  %1330 = vmatpush1.msra.mxu0 0.0
  %1331 = vmatprep.subr.mxu0 0.0
  %1332 = vmatpush1.msra.mxu0 0.0
  %1333 = vmatprep.subr.mxu0 0.0
  %1334 = vmatpush1.msra.mxu0 0.0
  %1335 = vmatprep.subr.mxu0 0.0
  %1336 = vmatpush1.msra.mxu0 0.0
  %1337 = vmatprep.subr.mxu0 0.0
  %1338 = vmatpush1.msra.mxu0 0.0
  %1339 = vmatprep.subr.mxu0 0.0
  %1340 = vmatpush1.msra.mxu0 0.0
  %1341 = vmatprep.subr.mxu0 0.0
  %1342 = vmatpush1.msra.mxu0 0.0
  %1343 = vmatprep.subr.mxu0 0.0
  %1344 = vmatpush1.msra.mxu0 0.0
  %1345 = vmatprep.subr.mxu0 0.0
  %1346 = vmatpush1.msra.mxu0 0.0
  %1347 = vmatprep.subr.mxu0 0.0
  %1348 = vmatpush1.msra.mxu0 0.0
  %1349 = vmatprep.subr.mxu0 0.0
  %1350 = vmatpush1.msra.mxu0 0.0
  %1351 = vmatprep.subr.mxu0 0.0
  %1352 = vmatpush1.msra.mxu0 0.0
  %1353 = vmatprep.subr.mxu0 0.0
  %1354 = vmatpush1.msra.mxu0 0.0
  %1355 = vmatprep.subr.mxu0 0.0
  %1356 = vmatpush1.msra.mxu0 0.0
  %1357 = vmatprep.subr.mxu0 0.0
  %1358 = vmatpush1.msra.mxu0 0.0
  %1359 = vmatprep.subr.mxu0 0.0
  %1360 = vmatpush1.msra.mxu0 0.0
  %1361 = vmatprep.subr.mxu0 0.0
  %1362 = vmatpush1.msra.mxu0 0.0
  %1363 = vmatprep.subr.mxu0 0.0
  %1364 = vmatpush1.msra.mxu0 0.0
  %1365 = vmatprep.subr.mxu0 0.0
  %1366 = vmatpush1.msra.mxu0 0.0
  %1367 = vmatprep.subr.mxu0 0.0
  %1368 = vmatpush1.msra.mxu0 0.0
  %1369 = vmatprep.subr.mxu0 0.0
  %1370 = vmatpush1.msra.mxu0 0.0
  %1371 = vmatprep.subr.mxu0 0.0
  %1372 = vmatpush1.msra.mxu0 0.0
  %1373 = vmatprep.subr.mxu0 0.0
  %1374 = vmatpush1.msra.mxu0 0.0
  %1375 = vmatprep.subr.mxu0 0.0
  %1376 = vmatpush1.msra.mxu0 0.0
  %1377 = vmatprep.subr.mxu0 0.0
  %1378 = vmatpush1.msra.mxu0 0.0
  %1379 = vmatprep.mubr.f32.mxu0 0.0
  %v1380 = vand.u32 %v1077, 4294901760
  %v1381 = vsub.f32 %v1077, %v1380
  %v1382 = vand.u32 %v1381, 4294901760
  %1383 = vmatmul.mubr.f32.gmra.mrb[0].mxu0 %v1382
  %v1384 = vpop.f32.mrb[0].mxu0
  %v1385 = vadd.f32 %v1310, %v1384
  %v1386 = vpop.f32.mrb[0].mxu0
  %1387 = vdwg.mxu0
  %1388 = vmatprep.subr.mxu0 0.0
  %v1389 = vand.u32 %v26, 4294901760
  %v1390 = vsub.f32 %v26, %v1389
  %v1391 = vand.u32 %v1390, 4294901760
  %1392 = vmatpush1.msra.mxu0 %v1391
  %1393 = vmatprep.subr.mxu0 0.0
  %v1394 = vand.u32 %v27, 4294901760
  %v1395 = vsub.f32 %v27, %v1394
  %v1396 = vand.u32 %v1395, 4294901760
  %1397 = vmatpush1.msra.mxu0 %v1396
  %1398 = vmatprep.subr.mxu0 0.0
  %1399 = vmatpush1.msra.mxu0 0.0
  %1400 = vmatprep.subr.mxu0 0.0
  %1401 = vmatpush1.msra.mxu0 0.0
  %1402 = vmatprep.subr.mxu0 0.0
  %1403 = vmatpush1.msra.mxu0 0.0
  %1404 = vmatprep.subr.mxu0 0.0
  %1405 = vmatpush1.msra.mxu0 0.0
  %1406 = vmatprep.subr.mxu0 0.0
  %1407 = vmatpush1.msra.mxu0 0.0
  %1408 = vmatprep.subr.mxu0 0.0
  %1409 = vmatpush1.msra.mxu0 0.0
  %1410 = vmatprep.subr.mxu0 0.0
  %1411 = vmatpush1.msra.mxu0 0.0
  %1412 = vmatprep.subr.mxu0 0.0
  %1413 = vmatpush1.msra.mxu0 0.0
  %1414 = vmatprep.subr.mxu0 0.0
  %1415 = vmatpush1.msra.mxu0 0.0
  %1416 = vmatprep.subr.mxu0 0.0
  %1417 = vmatpush1.msra.mxu0 0.0
  %1418 = vmatprep.subr.mxu0 0.0
  %1419 = vmatpush1.msra.mxu0 0.0
  %1420 = vmatprep.subr.mxu0 0.0
  %1421 = vmatpush1.msra.mxu0 0.0
  %1422 = vmatprep.subr.mxu0 0.0
  %1423 = vmatpush1.msra.mxu0 0.0
  %1424 = vmatprep.subr.mxu0 0.0
  %1425 = vmatpush1.msra.mxu0 0.0
  %1426 = vmatprep.subr.mxu0 0.0
  %1427 = vmatpush1.msra.mxu0 0.0
  %1428 = vmatprep.subr.mxu0 0.0
  %1429 = vmatpush1.msra.mxu0 0.0
  %1430 = vmatprep.subr.mxu0 0.0
  %1431 = vmatpush1.msra.mxu0 0.0
  %1432 = vmatprep.subr.mxu0 0.0
  %1433 = vmatpush1.msra.mxu0 0.0
  %1434 = vmatprep.subr.mxu0 0.0
  %1435 = vmatpush1.msra.mxu0 0.0
  %1436 = vmatprep.subr.mxu0 0.0
  %1437 = vmatpush1.msra.mxu0 0.0
  %1438 = vmatprep.subr.mxu0 0.0
  %1439 = vmatpush1.msra.mxu0 0.0
  %1440 = vmatprep.subr.mxu0 0.0
  %1441 = vmatpush1.msra.mxu0 0.0
  %1442 = vmatprep.subr.mxu0 0.0
  %1443 = vmatpush1.msra.mxu0 0.0
  %1444 = vmatprep.subr.mxu0 0.0
  %1445 = vmatpush1.msra.mxu0 0.0
  %1446 = vmatprep.subr.mxu0 0.0
  %1447 = vmatpush1.msra.mxu0 0.0
  %1448 = vmatprep.subr.mxu0 0.0
  %1449 = vmatpush1.msra.mxu0 0.0
  %1450 = vmatprep.subr.mxu0 0.0
  %1451 = vmatpush1.msra.mxu0 0.0
  %1452 = vmatprep.subr.mxu0 0.0
  %1453 = vmatpush1.msra.mxu0 0.0
  %1454 = vmatprep.subr.mxu0 0.0
  %1455 = vmatpush1.msra.mxu0 0.0
  %1456 = vmatprep.subr.mxu0 0.0
  %1457 = vmatpush1.msra.mxu0 0.0
  %1458 = vmatprep.mubr.f32.mxu0 0.0
  %v1459 = vand.u32 %v1077, 4294901760
  %1460 = vmatmul.mubr.f32.gmra.mrb[0].mxu0 %v1459
  %v1461 = vpop.f32.mrb[0].mxu0
  %v1462 = vadd.f32 %v1385, %v1461
  %v1463 = vpop.f32.mrb[0].mxu0
  %1464 = vdwg.mxu0
  %1465 = vmatprep.subr.mxu0 0.0
  %v1466 = vand.u32 %v26, 4294901760
  %1467 = vmatpush1.msra.mxu0 %v1466
  %1468 = vmatprep.subr.mxu0 0.0
  %v1469 = vand.u32 %v27, 4294901760
  %1470 = vmatpush1.msra.mxu0 %v1469
  %1471 = vmatprep.subr.mxu0 0.0
  %1472 = vmatpush1.msra.mxu0 0.0
  %1473 = vmatprep.subr.mxu0 0.0
  %1474 = vmatpush1.msra.mxu0 0.0
  %1475 = vmatprep.subr.mxu0 0.0
  %1476 = vmatpush1.msra.mxu0 0.0
  %1477 = vmatprep.subr.mxu0 0.0
  %1478 = vmatpush1.msra.mxu0 0.0
  %1479 = vmatprep.subr.mxu0 0.0
  %1480 = vmatpush1.msra.mxu0 0.0
  %1481 = vmatprep.subr.mxu0 0.0
  %1482 = vmatpush1.msra.mxu0 0.0
  %1483 = vmatprep.subr.mxu0 0.0
  %1484 = vmatpush1.msra.mxu0 0.0
  %1485 = vmatprep.subr.mxu0 0.0
  %1486 = vmatpush1.msra.mxu0 0.0
  %1487 = vmatprep.subr.mxu0 0.0
  %1488 = vmatpush1.msra.mxu0 0.0
  %1489 = vmatprep.subr.mxu0 0.0
  %1490 = vmatpush1.msra.mxu0 0.0
  %1491 = vmatprep.subr.mxu0 0.0
  %1492 = vmatpush1.msra.mxu0 0.0
  %1493 = vmatprep.subr.mxu0 0.0
  %1494 = vmatpush1.msra.mxu0 0.0
  %1495 = vmatprep.subr.mxu0 0.0
  %1496 = vmatpush1.msra.mxu0 0.0
  %1497 = vmatprep.subr.mxu0 0.0
  %1498 = vmatpush1.msra.mxu0 0.0
  %1499 = vmatprep.subr.mxu0 0.0
  %1500 = vmatpush1.msra.mxu0 0.0
  %1501 = vmatprep.subr.mxu0 0.0
  %1502 = vmatpush1.msra.mxu0 0.0
  %1503 = vmatprep.subr.mxu0 0.0
  %1504 = vmatpush1.msra.mxu0 0.0
  %1505 = vmatprep.subr.mxu0 0.0
  %1506 = vmatpush1.msra.mxu0 0.0
  %1507 = vmatprep.subr.mxu0 0.0
  %1508 = vmatpush1.msra.mxu0 0.0
  %1509 = vmatprep.subr.mxu0 0.0
  %1510 = vmatpush1.msra.mxu0 0.0
  %1511 = vmatprep.subr.mxu0 0.0
  %1512 = vmatpush1.msra.mxu0 0.0
  %1513 = vmatprep.subr.mxu0 0.0
  %1514 = vmatpush1.msra.mxu0 0.0
  %1515 = vmatprep.subr.mxu0 0.0
  %1516 = vmatpush1.msra.mxu0 0.0
  %1517 = vmatprep.subr.mxu0 0.0
  %1518 = vmatpush1.msra.mxu0 0.0
  %1519 = vmatprep.subr.mxu0 0.0
  %1520 = vmatpush1.msra.mxu0 0.0
  %1521 = vmatprep.subr.mxu0 0.0
  %1522 = vmatpush1.msra.mxu0 0.0
  %1523 = vmatprep.subr.mxu0 0.0
  %1524 = vmatpush1.msra.mxu0 0.0
  %1525 = vmatprep.subr.mxu0 0.0
  %1526 = vmatpush1.msra.mxu0 0.0
  %1527 = vmatprep.subr.mxu0 0.0
  %1528 = vmatpush1.msra.mxu0 0.0
  %1529 = vmatprep.subr.mxu0 0.0
  %1530 = vmatpush1.msra.mxu0 0.0
  %1531 = vmatprep.mubr.f32.mxu0 0.0
  %v1532 = vand.u32 %v1077, 4294901760
  %1533 = vmatmul.mubr.f32.gmra.mrb[0].mxu0 %v1532
  %v1534 = vpop.f32.mrb[0].mxu0
  %v1535 = vadd.f32 %v1462, %v1534
  %v1536 = vpop.f32.mrb[0].mxu0
  %1537 = vdwg.mxu0
  %v1538 = vadd.f32 %v99, %v1535
  %v1539 = vtanh.pop %v1538
  %v1540 = vmul.f32 %v1539, 0.5
  %v1541 = vadd.f32 %v1540, 0.5
  %v1542 = vmul.f32 %v1541, %v1067
  %1544 = vrot.lane.b32.xlu0 %v1539, 80
  %v1545 = vpop.permute.xlu0 %1544
  %v1547 = vmul.f32 %v1541, %v1545
  %1549 = vrot.lane.b32.xlu0 %v1547, 16
  %v1550 = vpop.permute.xlu0 %1549
  %v1552 = vadd.f32 %v1542, %v1550
  %v1553 = vtanh.pop %v1552
  %1555 = vrot.lane.b32.xlu0 %v1553, 16
  %v1556 = vpop.permute.xlu0 %1555
  %v1558 = vmul.f32 %v1541, %v1556
  %1560 = vrot.lane.b32.xlu0 %v1558, 96
  %v1561 = vpop.permute.xlu0 %1560
  %v1562 = vsel %vm105, %v1561, 0
  %1564 = vmatprep.subr.mxu0 0.0
  %v1565 = vand.u32 %v26, 4294901760
  %1566 = vmatpush1.msra.mxu0 %v1565
  %1567 = vmatprep.subr.mxu0 0.0
  %v1568 = vand.u32 %v27, 4294901760
  %1569 = vmatpush1.msra.mxu0 %v1568
  %1570 = vmatprep.subr.mxu0 0.0
  %1571 = vmatpush1.msra.mxu0 0.0
  %1572 = vmatprep.subr.mxu0 0.0
  %1573 = vmatpush1.msra.mxu0 0.0
  %1574 = vmatprep.subr.mxu0 0.0
  %1575 = vmatpush1.msra.mxu0 0.0
  %1576 = vmatprep.subr.mxu0 0.0
  %1577 = vmatpush1.msra.mxu0 0.0
  %1578 = vmatprep.subr.mxu0 0.0
  %1579 = vmatpush1.msra.mxu0 0.0
  %1580 = vmatprep.subr.mxu0 0.0
  %1581 = vmatpush1.msra.mxu0 0.0
  %1582 = vmatprep.subr.mxu0 0.0
  %1583 = vmatpush1.msra.mxu0 0.0
  %1584 = vmatprep.subr.mxu0 0.0
  %1585 = vmatpush1.msra.mxu0 0.0
  %1586 = vmatprep.subr.mxu0 0.0
  %1587 = vmatpush1.msra.mxu0 0.0
  %1588 = vmatprep.subr.mxu0 0.0
  %1589 = vmatpush1.msra.mxu0 0.0
  %1590 = vmatprep.subr.mxu0 0.0
  %1591 = vmatpush1.msra.mxu0 0.0
  %1592 = vmatprep.subr.mxu0 0.0
  %1593 = vmatpush1.msra.mxu0 0.0
  %1594 = vmatprep.subr.mxu0 0.0
  %1595 = vmatpush1.msra.mxu0 0.0
  %1596 = vmatprep.subr.mxu0 0.0
  %1597 = vmatpush1.msra.mxu0 0.0
  %1598 = vmatprep.subr.mxu0 0.0
  %1599 = vmatpush1.msra.mxu0 0.0
  %1600 = vmatprep.subr.mxu0 0.0
  %1601 = vmatpush1.msra.mxu0 0.0
  %1602 = vmatprep.subr.mxu0 0.0
  %1603 = vmatpush1.msra.mxu0 0.0
  %1604 = vmatprep.subr.mxu0 0.0
  %1605 = vmatpush1.msra.mxu0 0.0
  %1606 = vmatprep.subr.mxu0 0.0
  %1607 = vmatpush1.msra.mxu0 0.0
  %1608 = vmatprep.subr.mxu0 0.0
  %1609 = vmatpush1.msra.mxu0 0.0
  %1610 = vmatprep.subr.mxu0 0.0
  %1611 = vmatpush1.msra.mxu0 0.0
  %1612 = vmatprep.subr.mxu0 0.0
  %1613 = vmatpush1.msra.mxu0 0.0
  %1614 = vmatprep.subr.mxu0 0.0
  %1615 = vmatpush1.msra.mxu0 0.0
  %1616 = vmatprep.subr.mxu0 0.0
  %1617 = vmatpush1.msra.mxu0 0.0
  %1618 = vmatprep.subr.mxu0 0.0
  %1619 = vmatpush1.msra.mxu0 0.0
  %1620 = vmatprep.subr.mxu0 0.0
  %1621 = vmatpush1.msra.mxu0 0.0
  %1622 = vmatprep.subr.mxu0 0.0
  %1623 = vmatpush1.msra.mxu0 0.0
  %1624 = vmatprep.subr.mxu0 0.0
  %1625 = vmatpush1.msra.mxu0 0.0
  %1626 = vmatprep.subr.mxu0 0.0
  %1627 = vmatpush1.msra.mxu0 0.0
  %1628 = vmatprep.subr.mxu0 0.0
  %1629 = vmatpush1.msra.mxu0 0.0
  %1630 = vmatprep.mubr.f32.mxu0 0.0
  %v1631 = vand.u32 %v1562, 4294901760
  %v1632 = vsub.f32 %v1562, %v1631
  %v1633 = vand.u32 %v1632, 4294901760
  %v1634 = vsub.f32 %v1632, %v1633
  %v1635 = vand.u32 %v1634, 4294901760
  %1636 = vmatmul.mubr.f32.gmra.mrb[0].mxu0 %v1635
  %v1637 = vpop.f32.mrb[0].mxu0
  %v1638 = vadd.f32 0.0, %v1637
  %v1639 = vpop.f32.mrb[0].mxu0
  %1640 = vdwg.mxu0
  %1641 = vmatprep.subr.mxu0 0.0
  %v1642 = vand.u32 %v26, 4294901760
  %v1643 = vsub.f32 %v26, %v1642
  %v1644 = vand.u32 %v1643, 4294901760
  %v1645 = vsub.f32 %v1643, %v1644
  %v1646 = vand.u32 %v1645, 4294901760
  %1647 = vmatpush1.msra.mxu0 %v1646
  %1648 = vmatprep.subr.mxu0 0.0
  %v1649 = vand.u32 %v27, 4294901760
  %v1650 = vsub.f32 %v27, %v1649
  %v1651 = vand.u32 %v1650, 4294901760
  %v1652 = vsub.f32 %v1650, %v1651
  %v1653 = vand.u32 %v1652, 4294901760
  %1654 = vmatpush1.msra.mxu0 %v1653
  %1655 = vmatprep.subr.mxu0 0.0
  %1656 = vmatpush1.msra.mxu0 0.0
  %1657 = vmatprep.subr.mxu0 0.0
  %1658 = vmatpush1.msra.mxu0 0.0
  %1659 = vmatprep.subr.mxu0 0.0
  %1660 = vmatpush1.msra.mxu0 0.0
  %1661 = vmatprep.subr.mxu0 0.0
  %1662 = vmatpush1.msra.mxu0 0.0
  %1663 = vmatprep.subr.mxu0 0.0
  %1664 = vmatpush1.msra.mxu0 0.0
  %1665 = vmatprep.subr.mxu0 0.0
  %1666 = vmatpush1.msra.mxu0 0.0
  %1667 = vmatprep.subr.mxu0 0.0
  %1668 = vmatpush1.msra.mxu0 0.0
  %1669 = vmatprep.subr.mxu0 0.0
  %1670 = vmatpush1.msra.mxu0 0.0
  %1671 = vmatprep.subr.mxu0 0.0
  %1672 = vmatpush1.msra.mxu0 0.0
  %1673 = vmatprep.subr.mxu0 0.0
  %1674 = vmatpush1.msra.mxu0 0.0
  %1675 = vmatprep.subr.mxu0 0.0
  %1676 = vmatpush1.msra.mxu0 0.0
  %1677 = vmatprep.subr.mxu0 0.0
  %1678 = vmatpush1.msra.mxu0 0.0
  %1679 = vmatprep.subr.mxu0 0.0
  %1680 = vmatpush1.msra.mxu0 0.0
  %1681 = vmatprep.subr.mxu0 0.0
  %1682 = vmatpush1.msra.mxu0 0.0
  %1683 = vmatprep.subr.mxu0 0.0
  %1684 = vmatpush1.msra.mxu0 0.0
  %1685 = vmatprep.subr.mxu0 0.0
  %1686 = vmatpush1.msra.mxu0 0.0
  %1687 = vmatprep.subr.mxu0 0.0
  %1688 = vmatpush1.msra.mxu0 0.0
  %1689 = vmatprep.subr.mxu0 0.0
  %1690 = vmatpush1.msra.mxu0 0.0
  %1691 = vmatprep.subr.mxu0 0.0
  %1692 = vmatpush1.msra.mxu0 0.0
  %1693 = vmatprep.subr.mxu0 0.0
  %1694 = vmatpush1.msra.mxu0 0.0
  %1695 = vmatprep.subr.mxu0 0.0
  %1696 = vmatpush1.msra.mxu0 0.0
  %1697 = vmatprep.subr.mxu0 0.0
  %1698 = vmatpush1.msra.mxu0 0.0
  %1699 = vmatprep.subr.mxu0 0.0
  %1700 = vmatpush1.msra.mxu0 0.0
  %1701 = vmatprep.subr.mxu0 0.0
  %1702 = vmatpush1.msra.mxu0 0.0
  %1703 = vmatprep.subr.mxu0 0.0
  %1704 = vmatpush1.msra.mxu0 0.0
  %1705 = vmatprep.subr.mxu0 0.0
  %1706 = vmatpush1.msra.mxu0 0.0
  %1707 = vmatprep.subr.mxu0 0.0
  %1708 = vmatpush1.msra.mxu0 0.0
  %1709 = vmatprep.subr.mxu0 0.0
  %1710 = vmatpush1.msra.mxu0 0.0
  %1711 = vmatprep.subr.mxu0 0.0
  %1712 = vmatpush1.msra.mxu0 0.0
  %1713 = vmatprep.subr.mxu0 0.0
  %1714 = vmatpush1.msra.mxu0 0.0
  %1715 = vmatprep.mubr.f32.mxu0 0.0
  %v1716 = vand.u32 %v1562, 4294901760
  %1717 = vmatmul.mubr.f32.gmra.mrb[0].mxu0 %v1716
  %v1718 = vpop.f32.mrb[0].mxu0
  %v1719 = vadd.f32 %v1638, %v1718
  %v1720 = vpop.f32.mrb[0].mxu0
  %1721 = vdwg.mxu0
  %1722 = vmatprep.subr.mxu0 0.0
  %v1723 = vand.u32 %v26, 4294901760
  %v1724 = vsub.f32 %v26, %v1723
  %1725 = vmatpush1.msra.mxu0 %v1724
  %1726 = vmatprep.subr.mxu0 0.0
  %v1727 = vand.u32 %v27, 4294901760
  %v1728 = vsub.f32 %v27, %v1727
  %1729 = vmatpush1.msra.mxu0 %v1728
  %1730 = vmatprep.subr.mxu0 0.0
  %1731 = vmatpush1.msra.mxu0 0.0
  %1732 = vmatprep.subr.mxu0 0.0
  %1733 = vmatpush1.msra.mxu0 0.0
  %1734 = vmatprep.subr.mxu0 0.0
  %1735 = vmatpush1.msra.mxu0 0.0
  %1736 = vmatprep.subr.mxu0 0.0
  %1737 = vmatpush1.msra.mxu0 0.0
  %1738 = vmatprep.subr.mxu0 0.0
  %1739 = vmatpush1.msra.mxu0 0.0
  %1740 = vmatprep.subr.mxu0 0.0
  %1741 = vmatpush1.msra.mxu0 0.0
  %1742 = vmatprep.subr.mxu0 0.0
  %1743 = vmatpush1.msra.mxu0 0.0
  %1744 = vmatprep.subr.mxu0 0.0
  %1745 = vmatpush1.msra.mxu0 0.0
  %1746 = vmatprep.subr.mxu0 0.0
  %1747 = vmatpush1.msra.mxu0 0.0
  %1748 = vmatprep.subr.mxu0 0.0
  %1749 = vmatpush1.msra.mxu0 0.0
  %1750 = vmatprep.subr.mxu0 0.0
  %1751 = vmatpush1.msra.mxu0 0.0
  %1752 = vmatprep.subr.mxu0 0.0
  %1753 = vmatpush1.msra.mxu0 0.0
  %1754 = vmatprep.subr.mxu0 0.0
  %1755 = vmatpush1.msra.mxu0 0.0
  %1756 = vmatprep.subr.mxu0 0.0
  %1757 = vmatpush1.msra.mxu0 0.0
  %1758 = vmatprep.subr.mxu0 0.0
  %1759 = vmatpush1.msra.mxu0 0.0
  %1760 = vmatprep.subr.mxu0 0.0
  %1761 = vmatpush1.msra.mxu0 0.0
  %1762 = vmatprep.subr.mxu0 0.0
  %1763 = vmatpush1.msra.mxu0 0.0
  %1764 = vmatprep.subr.mxu0 0.0
  %1765 = vmatpush1.msra.mxu0 0.0
  %1766 = vmatprep.subr.mxu0 0.0
  %1767 = vmatpush1.msra.mxu0 0.0
  %1768 = vmatprep.subr.mxu0 0.0
  %1769 = vmatpush1.msra.mxu0 0.0
  %1770 = vmatprep.subr.mxu0 0.0
  %1771 = vmatpush1.msra.mxu0 0.0
  %1772 = vmatprep.subr.mxu0 0.0
  %1773 = vmatpush1.msra.mxu0 0.0
  %1774 = vmatprep.subr.mxu0 0.0
  %1775 = vmatpush1.msra.mxu0 0.0
  %1776 = vmatprep.subr.mxu0 0.0
  %1777 = vmatpush1.msra.mxu0 0.0
  %1778 = vmatprep.subr.mxu0 0.0
  %1779 = vmatpush1.msra.mxu0 0.0
  %1780 = vmatprep.subr.mxu0 0.0
  %1781 = vmatpush1.msra.mxu0 0.0
  %1782 = vmatprep.subr.mxu0 0.0
  %1783 = vmatpush1.msra.mxu0 0.0
  %1784 = vmatprep.subr.mxu0 0.0
  %1785 = vmatpush1.msra.mxu0 0.0
  %1786 = vmatprep.subr.mxu0 0.0
  %1787 = vmatpush1.msra.mxu0 0.0
  %1788 = vmatprep.subr.mxu0 0.0
  %1789 = vmatpush1.msra.mxu0 0.0
  %1790 = vmatprep.mubr.f32.mxu0 0.0
  %v1791 = vand.u32 %v1562, 4294901760
  %v1792 = vsub.f32 %v1562, %v1791
  %1793 = vmatmul.mubr.f32.gmra.mrb[0].mxu0 %v1792
  %v1794 = vpop.f32.mrb[0].mxu0
  %v1795 = vadd.f32 %v1719, %v1794
  %v1796 = vpop.f32.mrb[0].mxu0
  %1797 = vdwg.mxu0
  %1798 = vmatprep.subr.mxu0 0.0
  %v1799 = vand.u32 %v26, 4294901760
  %1800 = vmatpush1.msra.mxu0 %v1799
  %1801 = vmatprep.subr.mxu0 0.0
  %v1802 = vand.u32 %v27, 4294901760
  %1803 = vmatpush1.msra.mxu0 %v1802
  %1804 = vmatprep.subr.mxu0 0.0
  %1805 = vmatpush1.msra.mxu0 0.0
  %1806 = vmatprep.subr.mxu0 0.0
  %1807 = vmatpush1.msra.mxu0 0.0
  %1808 = vmatprep.subr.mxu0 0.0
  %1809 = vmatpush1.msra.mxu0 0.0
  %1810 = vmatprep.subr.mxu0 0.0
  %1811 = vmatpush1.msra.mxu0 0.0
  %1812 = vmatprep.subr.mxu0 0.0
  %1813 = vmatpush1.msra.mxu0 0.0
  %1814 = vmatprep.subr.mxu0 0.0
  %1815 = vmatpush1.msra.mxu0 0.0
  %1816 = vmatprep.subr.mxu0 0.0
  %1817 = vmatpush1.msra.mxu0 0.0
  %1818 = vmatprep.subr.mxu0 0.0
  %1819 = vmatpush1.msra.mxu0 0.0
  %1820 = vmatprep.subr.mxu0 0.0
  %1821 = vmatpush1.msra.mxu0 0.0
  %1822 = vmatprep.subr.mxu0 0.0
  %1823 = vmatpush1.msra.mxu0 0.0
  %1824 = vmatprep.subr.mxu0 0.0
  %1825 = vmatpush1.msra.mxu0 0.0
  %1826 = vmatprep.subr.mxu0 0.0
  %1827 = vmatpush1.msra.mxu0 0.0
  %1828 = vmatprep.subr.mxu0 0.0
  %1829 = vmatpush1.msra.mxu0 0.0
  %1830 = vmatprep.subr.mxu0 0.0
  %1831 = vmatpush1.msra.mxu0 0.0
  %1832 = vmatprep.subr.mxu0 0.0
  %1833 = vmatpush1.msra.mxu0 0.0
  %1834 = vmatprep.subr.mxu0 0.0
  %1835 = vmatpush1.msra.mxu0 0.0
  %1836 = vmatprep.subr.mxu0 0.0
  %1837 = vmatpush1.msra.mxu0 0.0
  %1838 = vmatprep.subr.mxu0 0.0
  %1839 = vmatpush1.msra.mxu0 0.0
  %1840 = vmatprep.subr.mxu0 0.0
  %1841 = vmatpush1.msra.mxu0 0.0
  %1842 = vmatprep.subr.mxu0 0.0
  %1843 = vmatpush1.msra.mxu0 0.0
  %1844 = vmatprep.subr.mxu0 0.0
  %1845 = vmatpush1.msra.mxu0 0.0
  %1846 = vmatprep.subr.mxu0 0.0
  %1847 = vmatpush1.msra.mxu0 0.0
  %1848 = vmatprep.subr.mxu0 0.0
  %1849 = vmatpush1.msra.mxu0 0.0
  %1850 = vmatprep.subr.mxu0 0.0
  %1851 = vmatpush1.msra.mxu0 0.0
  %1852 = vmatprep.subr.mxu0 0.0
  %1853 = vmatpush1.msra.mxu0 0.0
  %1854 = vmatprep.subr.mxu0 0.0
  %1855 = vmatpush1.msra.mxu0 0.0
  %1856 = vmatprep.subr.mxu0 0.0
  %1857 = vmatpush1.msra.mxu0 0.0
  %1858 = vmatprep.subr.mxu0 0.0
  %1859 = vmatpush1.msra.mxu0 0.0
  %1860 = vmatprep.subr.mxu0 0.0
  %1861 = vmatpush1.msra.mxu0 0.0
  %1862 = vmatprep.subr.mxu0 0.0
  %1863 = vmatpush1.msra.mxu0 0.0
  %1864 = vmatprep.mubr.f32.mxu0 0.0
  %v1865 = vand.u32 %v1562, 4294901760
  %v1866 = vsub.f32 %v1562, %v1865
  %v1867 = vand.u32 %v1866, 4294901760
  %1868 = vmatmul.mubr.f32.gmra.mrb[0].mxu0 %v1867
  %v1869 = vpop.f32.mrb[0].mxu0
  %v1870 = vadd.f32 %v1795, %v1869
  %v1871 = vpop.f32.mrb[0].mxu0
  %1872 = vdwg.mxu0
  %1873 = vmatprep.subr.mxu0 0.0
  %v1874 = vand.u32 %v26, 4294901760
  %v1875 = vsub.f32 %v26, %v1874
  %v1876 = vand.u32 %v1875, 4294901760
  %1877 = vmatpush1.msra.mxu0 %v1876
  %1878 = vmatprep.subr.mxu0 0.0
  %v1879 = vand.u32 %v27, 4294901760
  %v1880 = vsub.f32 %v27, %v1879
  %v1881 = vand.u32 %v1880, 4294901760
  %1882 = vmatpush1.msra.mxu0 %v1881
  %1883 = vmatprep.subr.mxu0 0.0
  %1884 = vmatpush1.msra.mxu0 0.0
  %1885 = vmatprep.subr.mxu0 0.0
  %1886 = vmatpush1.msra.mxu0 0.0
  %1887 = vmatprep.subr.mxu0 0.0
  %1888 = vmatpush1.msra.mxu0 0.0
  %1889 = vmatprep.subr.mxu0 0.0
  %1890 = vmatpush1.msra.mxu0 0.0
  %1891 = vmatprep.subr.mxu0 0.0
  %1892 = vmatpush1.msra.mxu0 0.0
  %1893 = vmatprep.subr.mxu0 0.0
  %1894 = vmatpush1.msra.mxu0 0.0
  %1895 = vmatprep.subr.mxu0 0.0
  %1896 = vmatpush1.msra.mxu0 0.0
  %1897 = vmatprep.subr.mxu0 0.0
  %1898 = vmatpush1.msra.mxu0 0.0
  %1899 = vmatprep.subr.mxu0 0.0
  %1900 = vmatpush1.msra.mxu0 0.0
  %1901 = vmatprep.subr.mxu0 0.0
  %1902 = vmatpush1.msra.mxu0 0.0
  %1903 = vmatprep.subr.mxu0 0.0
  %1904 = vmatpush1.msra.mxu0 0.0
  %1905 = vmatprep.subr.mxu0 0.0
  %1906 = vmatpush1.msra.mxu0 0.0
  %1907 = vmatprep.subr.mxu0 0.0
  %1908 = vmatpush1.msra.mxu0 0.0
  %1909 = vmatprep.subr.mxu0 0.0
  %1910 = vmatpush1.msra.mxu0 0.0
  %1911 = vmatprep.subr.mxu0 0.0
  %1912 = vmatpush1.msra.mxu0 0.0
  %1913 = vmatprep.subr.mxu0 0.0
  %1914 = vmatpush1.msra.mxu0 0.0
  %1915 = vmatprep.subr.mxu0 0.0
  %1916 = vmatpush1.msra.mxu0 0.0
  %1917 = vmatprep.subr.mxu0 0.0
  %1918 = vmatpush1.msra.mxu0 0.0
  %1919 = vmatprep.subr.mxu0 0.0
  %1920 = vmatpush1.msra.mxu0 0.0
  %1921 = vmatprep.subr.mxu0 0.0
  %1922 = vmatpush1.msra.mxu0 0.0
  %1923 = vmatprep.subr.mxu0 0.0
  %1924 = vmatpush1.msra.mxu0 0.0
  %1925 = vmatprep.subr.mxu0 0.0
  %1926 = vmatpush1.msra.mxu0 0.0
  %1927 = vmatprep.subr.mxu0 0.0
  %1928 = vmatpush1.msra.mxu0 0.0
  %1929 = vmatprep.subr.mxu0 0.0
  %1930 = vmatpush1.msra.mxu0 0.0
  %1931 = vmatprep.subr.mxu0 0.0
  %1932 = vmatpush1.msra.mxu0 0.0
  %1933 = vmatprep.subr.mxu0 0.0
  %1934 = vmatpush1.msra.mxu0 0.0
  %1935 = vmatprep.subr.mxu0 0.0
  %1936 = vmatpush1.msra.mxu0 0.0
  %1937 = vmatprep.subr.mxu0 0.0
  %1938 = vmatpush1.msra.mxu0 0.0
  %1939 = vmatprep.subr.mxu0 0.0
  %1940 = vmatpush1.msra.mxu0 0.0
  %1941 = vmatprep.subr.mxu0 0.0
  %1942 = vmatpush1.msra.mxu0 0.0
  %1943 = vmatprep.mubr.f32.mxu0 0.0
  %v1944 = vand.u32 %v1562, 4294901760
  %1945 = vmatmul.mubr.f32.gmra.mrb[0].mxu0 %v1944
  %v1946 = vpop.f32.mrb[0].mxu0
  %v1947 = vadd.f32 %v1870, %v1946
  %v1948 = vpop.f32.mrb[0].mxu0
  %1949 = vdwg.mxu0
  %1950 = vmatprep.subr.mxu0 0.0
  %v1951 = vand.u32 %v26, 4294901760
  %1952 = vmatpush1.msra.mxu0 %v1951
  %1953 = vmatprep.subr.mxu0 0.0
  %v1954 = vand.u32 %v27, 4294901760
  %1955 = vmatpush1.msra.mxu0 %v1954
  %1956 = vmatprep.subr.mxu0 0.0
  %1957 = vmatpush1.msra.mxu0 0.0
  %1958 = vmatprep.subr.mxu0 0.0
  %1959 = vmatpush1.msra.mxu0 0.0
  %1960 = vmatprep.subr.mxu0 0.0
  %1961 = vmatpush1.msra.mxu0 0.0
  %1962 = vmatprep.subr.mxu0 0.0
  %1963 = vmatpush1.msra.mxu0 0.0
  %1964 = vmatprep.subr.mxu0 0.0
  %1965 = vmatpush1.msra.mxu0 0.0
  %1966 = vmatprep.subr.mxu0 0.0
  %1967 = vmatpush1.msra.mxu0 0.0
  %1968 = vmatprep.subr.mxu0 0.0
  %1969 = vmatpush1.msra.mxu0 0.0
  %1970 = vmatprep.subr.mxu0 0.0
  %1971 = vmatpush1.msra.mxu0 0.0
  %1972 = vmatprep.subr.mxu0 0.0
  %1973 = vmatpush1.msra.mxu0 0.0
  %1974 = vmatprep.subr.mxu0 0.0
  %1975 = vmatpush1.msra.mxu0 0.0
  %1976 = vmatprep.subr.mxu0 0.0
  %1977 = vmatpush1.msra.mxu0 0.0
  %1978 = vmatprep.subr.mxu0 0.0
  %1979 = vmatpush1.msra.mxu0 0.0
  %1980 = vmatprep.subr.mxu0 0.0
  %1981 = vmatpush1.msra.mxu0 0.0
  %1982 = vmatprep.subr.mxu0 0.0
  %1983 = vmatpush1.msra.mxu0 0.0
  %1984 = vmatprep.subr.mxu0 0.0
  %1985 = vmatpush1.msra.mxu0 0.0
  %1986 = vmatprep.subr.mxu0 0.0
  %1987 = vmatpush1.msra.mxu0 0.0
  %1988 = vmatprep.subr.mxu0 0.0
  %1989 = vmatpush1.msra.mxu0 0.0
  %1990 = vmatprep.subr.mxu0 0.0
  %1991 = vmatpush1.msra.mxu0 0.0
  %1992 = vmatprep.subr.mxu0 0.0
  %1993 = vmatpush1.msra.mxu0 0.0
  %1994 = vmatprep.subr.mxu0 0.0
  %1995 = vmatpush1.msra.mxu0 0.0
  %1996 = vmatprep.subr.mxu0 0.0
  %1997 = vmatpush1.msra.mxu0 0.0
  %1998 = vmatprep.subr.mxu0 0.0
  %1999 = vmatpush1.msra.mxu0 0.0
  %2000 = vmatprep.subr.mxu0 0.0
  %2001 = vmatpush1.msra.mxu0 0.0
  %2002 = vmatprep.subr.mxu0 0.0
  %2003 = vmatpush1.msra.mxu0 0.0
  %2004 = vmatprep.subr.mxu0 0.0
  %2005 = vmatpush1.msra.mxu0 0.0
  %2006 = vmatprep.subr.mxu0 0.0
  %2007 = vmatpush1.msra.mxu0 0.0
  %2008 = vmatprep.subr.mxu0 0.0
  %2009 = vmatpush1.msra.mxu0 0.0
  %2010 = vmatprep.subr.mxu0 0.0
  %2011 = vmatpush1.msra.mxu0 0.0
  %2012 = vmatprep.subr.mxu0 0.0
  %2013 = vmatpush1.msra.mxu0 0.0
  %2014 = vmatprep.subr.mxu0 0.0
  %2015 = vmatpush1.msra.mxu0 0.0
  %2016 = vmatprep.mubr.f32.mxu0 0.0
  %v2017 = vand.u32 %v1562, 4294901760
  %2018 = vmatmul.mubr.f32.gmra.mrb[0].mxu0 %v2017
  %v2019 = vpop.f32.mrb[0].mxu0
  %v2020 = vadd.f32 %v1947, %v2019
  %v2021 = vpop.f32.mrb[0].mxu0
  %2022 = vdwg.mxu0
  %v2023 = vadd.f32 %v100, %v2020
  %v2024 = vtanh.pop %v2023
  %v2025 = vmul.f32 %v2024, 0.5
  %v2026 = vadd.f32 %v2025, 0.5
  %v2027 = vmul.f32 %v2026, %v1552
  %2029 = vrot.lane.b32.xlu0 %v2024, 80
  %v2030 = vpop.permute.xlu0 %2029
  %v2032 = vmul.f32 %v2026, %v2030
  %2034 = vrot.lane.b32.xlu0 %v2032, 16
  %v2035 = vpop.permute.xlu0 %2034
  %v2037 = vadd.f32 %v2027, %v2035
  %v2038 = vtanh.pop %v2037
  %2040 = vrot.lane.b32.xlu0 %v2038, 16
  %v2041 = vpop.permute.xlu0 %2040
  %v2043 = vmul.f32 %v2026, %v2041
  %2045 = vrot.lane.b32.xlu0 %v2043, 96
  %v2046 = vpop.permute.xlu0 %2045
  %v2047 = vsel %vm105, %v2046, 0
  %2049 = vmatprep.subr.mxu0 0.0
  %v2050 = vand.u32 %v26, 4294901760
  %2051 = vmatpush1.msra.mxu0 %v2050
  %2052 = vmatprep.subr.mxu0 0.0
  %v2053 = vand.u32 %v27, 4294901760
  %2054 = vmatpush1.msra.mxu0 %v2053
  %2055 = vmatprep.subr.mxu0 0.0
  %2056 = vmatpush1.msra.mxu0 0.0
  %2057 = vmatprep.subr.mxu0 0.0
  %2058 = vmatpush1.msra.mxu0 0.0
  %2059 = vmatprep.subr.mxu0 0.0
  %2060 = vmatpush1.msra.mxu0 0.0
  %2061 = vmatprep.subr.mxu0 0.0
  %2062 = vmatpush1.msra.mxu0 0.0
  %2063 = vmatprep.subr.mxu0 0.0
  %2064 = vmatpush1.msra.mxu0 0.0
  %2065 = vmatprep.subr.mxu0 0.0
  %2066 = vmatpush1.msra.mxu0 0.0
  %2067 = vmatprep.subr.mxu0 0.0
  %2068 = vmatpush1.msra.mxu0 0.0
  %2069 = vmatprep.subr.mxu0 0.0
  %2070 = vmatpush1.msra.mxu0 0.0
  %2071 = vmatprep.subr.mxu0 0.0
  %2072 = vmatpush1.msra.mxu0 0.0
  %2073 = vmatprep.subr.mxu0 0.0
  %2074 = vmatpush1.msra.mxu0 0.0
  %2075 = vmatprep.subr.mxu0 0.0
  %2076 = vmatpush1.msra.mxu0 0.0
  %2077 = vmatprep.subr.mxu0 0.0
  %2078 = vmatpush1.msra.mxu0 0.0
  %2079 = vmatprep.subr.mxu0 0.0
  %2080 = vmatpush1.msra.mxu0 0.0
  %2081 = vmatprep.subr.mxu0 0.0
  %2082 = vmatpush1.msra.mxu0 0.0
  %2083 = vmatprep.subr.mxu0 0.0
  %2084 = vmatpush1.msra.mxu0 0.0
  %2085 = vmatprep.subr.mxu0 0.0
  %2086 = vmatpush1.msra.mxu0 0.0
  %2087 = vmatprep.subr.mxu0 0.0
  %2088 = vmatpush1.msra.mxu0 0.0
  %2089 = vmatprep.subr.mxu0 0.0
  %2090 = vmatpush1.msra.mxu0 0.0
  %2091 = vmatprep.subr.mxu0 0.0
  %2092 = vmatpush1.msra.mxu0 0.0
  %2093 = vmatprep.subr.mxu0 0.0
  %2094 = vmatpush1.msra.mxu0 0.0
  %2095 = vmatprep.subr.mxu0 0.0
  %2096 = vmatpush1.msra.mxu0 0.0
  %2097 = vmatprep.subr.mxu0 0.0
  %2098 = vmatpush1.msra.mxu0 0.0
  %2099 = vmatprep.subr.mxu0 0.0
  %2100 = vmatpush1.msra.mxu0 0.0
  %2101 = vmatprep.subr.mxu0 0.0
  %2102 = vmatpush1.msra.mxu0 0.0
  %2103 = vmatprep.subr.mxu0 0.0
  %2104 = vmatpush1.msra.mxu0 0.0
  %2105 = vmatprep.subr.mxu0 0.0
  %2106 = vmatpush1.msra.mxu0 0.0
  %2107 = vmatprep.subr.mxu0 0.0
  %2108 = vmatpush1.msra.mxu0 0.0
  %2109 = vmatprep.subr.mxu0 0.0
  %2110 = vmatpush1.msra.mxu0 0.0
  %2111 = vmatprep.subr.mxu0 0.0
  %2112 = vmatpush1.msra.mxu0 0.0
  %2113 = vmatprep.subr.mxu0 0.0
  %2114 = vmatpush1.msra.mxu0 0.0
  %2115 = vmatprep.mubr.f32.mxu0 0.0
  %v2116 = vand.u32 %v2047, 4294901760
  %v2117 = vsub.f32 %v2047, %v2116
  %v2118 = vand.u32 %v2117, 4294901760
  %v2119 = vsub.f32 %v2117, %v2118
  %v2120 = vand.u32 %v2119, 4294901760
  %2121 = vmatmul.mubr.f32.gmra.mrb[0].mxu0 %v2120
  %v2122 = vpop.f32.mrb[0].mxu0
  %v2123 = vadd.f32 0.0, %v2122
  %v2124 = vpop.f32.mrb[0].mxu0
  %2125 = vdwg.mxu0
  %2126 = vmatprep.subr.mxu0 0.0
  %v2127 = vand.u32 %v26, 4294901760
  %v2128 = vsub.f32 %v26, %v2127
  %v2129 = vand.u32 %v2128, 4294901760
  %v2130 = vsub.f32 %v2128, %v2129
  %v2131 = vand.u32 %v2130, 4294901760
  %2132 = vmatpush1.msra.mxu0 %v2131
  %2133 = vmatprep.subr.mxu0 0.0
  %v2134 = vand.u32 %v27, 4294901760
  %v2135 = vsub.f32 %v27, %v2134
  %v2136 = vand.u32 %v2135, 4294901760
  %v2137 = vsub.f32 %v2135, %v2136
  %v2138 = vand.u32 %v2137, 4294901760
  %2139 = vmatpush1.msra.mxu0 %v2138
  %2140 = vmatprep.subr.mxu0 0.0
  %2141 = vmatpush1.msra.mxu0 0.0
  %2142 = vmatprep.subr.mxu0 0.0
  %2143 = vmatpush1.msra.mxu0 0.0
  %2144 = vmatprep.subr.mxu0 0.0
  %2145 = vmatpush1.msra.mxu0 0.0
  %2146 = vmatprep.subr.mxu0 0.0
  %2147 = vmatpush1.msra.mxu0 0.0
  %2148 = vmatprep.subr.mxu0 0.0
  %2149 = vmatpush1.msra.mxu0 0.0
  %2150 = vmatprep.subr.mxu0 0.0
  %2151 = vmatpush1.msra.mxu0 0.0
  %2152 = vmatprep.subr.mxu0 0.0
  %2153 = vmatpush1.msra.mxu0 0.0
  %2154 = vmatprep.subr.mxu0 0.0
  %2155 = vmatpush1.msra.mxu0 0.0
  %2156 = vmatprep.subr.mxu0 0.0
  %2157 = vmatpush1.msra.mxu0 0.0
  %2158 = vmatprep.subr.mxu0 0.0
  %2159 = vmatpush1.msra.mxu0 0.0
  %2160 = vmatprep.subr.mxu0 0.0
  %2161 = vmatpush1.msra.mxu0 0.0
  %2162 = vmatprep.subr.mxu0 0.0
  %2163 = vmatpush1.msra.mxu0 0.0
  %2164 = vmatprep.subr.mxu0 0.0
  %2165 = vmatpush1.msra.mxu0 0.0
  %2166 = vmatprep.subr.mxu0 0.0
  %2167 = vmatpush1.msra.mxu0 0.0
  %2168 = vmatprep.subr.mxu0 0.0
  %2169 = vmatpush1.msra.mxu0 0.0
  %2170 = vmatprep.subr.mxu0 0.0
  %2171 = vmatpush1.msra.mxu0 0.0
  %2172 = vmatprep.subr.mxu0 0.0
  %2173 = vmatpush1.msra.mxu0 0.0
  %2174 = vmatprep.subr.mxu0 0.0
  %2175 = vmatpush1.msra.mxu0 0.0
  %2176 = vmatprep.subr.mxu0 0.0
  %2177 = vmatpush1.msra.mxu0 0.0
  %2178 = vmatprep.subr.mxu0 0.0
  %2179 = vmatpush1.msra.mxu0 0.0
  %2180 = vmatprep.subr.mxu0 0.0
  %2181 = vmatpush1.msra.mxu0 0.0
  %2182 = vmatprep.subr.mxu0 0.0
  %2183 = vmatpush1.msra.mxu0 0.0
  %2184 = vmatprep.subr.mxu0 0.0
  %2185 = vmatpush1.msra.mxu0 0.0
  %2186 = vmatprep.subr.mxu0 0.0
  %2187 = vmatpush1.msra.mxu0 0.0
  %2188 = vmatprep.subr.mxu0 0.0
  %2189 = vmatpush1.msra.mxu0 0.0
  %2190 = vmatprep.subr.mxu0 0.0
  %2191 = vmatpush1.msra.mxu0 0.0
  %2192 = vmatprep.subr.mxu0 0.0
  %2193 = vmatpush1.msra.mxu0 0.0
  %2194 = vmatprep.subr.mxu0 0.0
  %2195 = vmatpush1.msra.mxu0 0.0
  %2196 = vmatprep.subr.mxu0 0.0
  %2197 = vmatpush1.msra.mxu0 0.0
  %2198 = vmatprep.subr.mxu0 0.0
  %2199 = vmatpush1.msra.mxu0 0.0
  %2200 = vmatprep.mubr.f32.mxu0 0.0
  %v2201 = vand.u32 %v2047, 4294901760
  %2202 = vmatmul.mubr.f32.gmra.mrb[0].mxu0 %v2201
  %v2203 = vpop.f32.mrb[0].mxu0
  %v2204 = vadd.f32 %v2123, %v2203
  %v2205 = vpop.f32.mrb[0].mxu0
  %2206 = vdwg.mxu0
  %2207 = vmatprep.subr.mxu0 0.0
  %v2208 = vand.u32 %v26, 4294901760
  %v2209 = vsub.f32 %v26, %v2208
  %2210 = vmatpush1.msra.mxu0 %v2209
  %2211 = vmatprep.subr.mxu0 0.0
  %v2212 = vand.u32 %v27, 4294901760
  %v2213 = vsub.f32 %v27, %v2212
  %2214 = vmatpush1.msra.mxu0 %v2213
  %2215 = vmatprep.subr.mxu0 0.0
  %2216 = vmatpush1.msra.mxu0 0.0
  %2217 = vmatprep.subr.mxu0 0.0
  %2218 = vmatpush1.msra.mxu0 0.0
  %2219 = vmatprep.subr.mxu0 0.0
  %2220 = vmatpush1.msra.mxu0 0.0
  %2221 = vmatprep.subr.mxu0 0.0
  %2222 = vmatpush1.msra.mxu0 0.0
  %2223 = vmatprep.subr.mxu0 0.0
  %2224 = vmatpush1.msra.mxu0 0.0
  %2225 = vmatprep.subr.mxu0 0.0
  %2226 = vmatpush1.msra.mxu0 0.0
  %2227 = vmatprep.subr.mxu0 0.0
  %2228 = vmatpush1.msra.mxu0 0.0
  %2229 = vmatprep.subr.mxu0 0.0
  %2230 = vmatpush1.msra.mxu0 0.0
  %2231 = vmatprep.subr.mxu0 0.0
  %2232 = vmatpush1.msra.mxu0 0.0
  %2233 = vmatprep.subr.mxu0 0.0
  %2234 = vmatpush1.msra.mxu0 0.0
  %2235 = vmatprep.subr.mxu0 0.0
  %2236 = vmatpush1.msra.mxu0 0.0
  %2237 = vmatprep.subr.mxu0 0.0
  %2238 = vmatpush1.msra.mxu0 0.0
  %2239 = vmatprep.subr.mxu0 0.0
  %2240 = vmatpush1.msra.mxu0 0.0
  %2241 = vmatprep.subr.mxu0 0.0
  %2242 = vmatpush1.msra.mxu0 0.0
  %2243 = vmatprep.subr.mxu0 0.0
  %2244 = vmatpush1.msra.mxu0 0.0
  %2245 = vmatprep.subr.mxu0 0.0
  %2246 = vmatpush1.msra.mxu0 0.0
  %2247 = vmatprep.subr.mxu0 0.0
  %2248 = vmatpush1.msra.mxu0 0.0
  %2249 = vmatprep.subr.mxu0 0.0
  %2250 = vmatpush1.msra.mxu0 0.0
  %2251 = vmatprep.subr.mxu0 0.0
  %2252 = vmatpush1.msra.mxu0 0.0
  %2253 = vmatprep.subr.mxu0 0.0
  %2254 = vmatpush1.msra.mxu0 0.0
  %2255 = vmatprep.subr.mxu0 0.0
  %2256 = vmatpush1.msra.mxu0 0.0
  %2257 = vmatprep.subr.mxu0 0.0
  %2258 = vmatpush1.msra.mxu0 0.0
  %2259 = vmatprep.subr.mxu0 0.0
  %2260 = vmatpush1.msra.mxu0 0.0
  %2261 = vmatprep.subr.mxu0 0.0
  %2262 = vmatpush1.msra.mxu0 0.0
  %2263 = vmatprep.subr.mxu0 0.0
  %2264 = vmatpush1.msra.mxu0 0.0
  %2265 = vmatprep.subr.mxu0 0.0
  %2266 = vmatpush1.msra.mxu0 0.0
  %2267 = vmatprep.subr.mxu0 0.0
  %2268 = vmatpush1.msra.mxu0 0.0
  %2269 = vmatprep.subr.mxu0 0.0
  %2270 = vmatpush1.msra.mxu0 0.0
  %2271 = vmatprep.subr.mxu0 0.0
  %2272 = vmatpush1.msra.mxu0 0.0
  %2273 = vmatprep.subr.mxu0 0.0
  %2274 = vmatpush1.msra.mxu0 0.0
  %2275 = vmatprep.mubr.f32.mxu0 0.0
  %v2276 = vand.u32 %v2047, 4294901760
  %v2277 = vsub.f32 %v2047, %v2276
  %2278 = vmatmul.mubr.f32.gmra.mrb[0].mxu0 %v2277
  %v2279 = vpop.f32.mrb[0].mxu0
  %v2280 = vadd.f32 %v2204, %v2279
  %v2281 = vpop.f32.mrb[0].mxu0
  %2282 = vdwg.mxu0
  %2283 = vmatprep.subr.mxu0 0.0
  %v2284 = vand.u32 %v26, 4294901760
  %2285 = vmatpush1.msra.mxu0 %v2284
  %2286 = vmatprep.subr.mxu0 0.0
  %v2287 = vand.u32 %v27, 4294901760
  %2288 = vmatpush1.msra.mxu0 %v2287
  %2289 = vmatprep.subr.mxu0 0.0
  %2290 = vmatpush1.msra.mxu0 0.0
  %2291 = vmatprep.subr.mxu0 0.0
  %2292 = vmatpush1.msra.mxu0 0.0
  %2293 = vmatprep.subr.mxu0 0.0
  %2294 = vmatpush1.msra.mxu0 0.0
  %2295 = vmatprep.subr.mxu0 0.0
  %2296 = vmatpush1.msra.mxu0 0.0
  %2297 = vmatprep.subr.mxu0 0.0
  %2298 = vmatpush1.msra.mxu0 0.0
  %2299 = vmatprep.subr.mxu0 0.0
  %2300 = vmatpush1.msra.mxu0 0.0
  %2301 = vmatprep.subr.mxu0 0.0
  %2302 = vmatpush1.msra.mxu0 0.0
  %2303 = vmatprep.subr.mxu0 0.0
  %2304 = vmatpush1.msra.mxu0 0.0
  %2305 = vmatprep.subr.mxu0 0.0
  %2306 = vmatpush1.msra.mxu0 0.0
  %2307 = vmatprep.subr.mxu0 0.0
  %2308 = vmatpush1.msra.mxu0 0.0
  %2309 = vmatprep.subr.mxu0 0.0
  %2310 = vmatpush1.msra.mxu0 0.0
  %2311 = vmatprep.subr.mxu0 0.0
  %2312 = vmatpush1.msra.mxu0 0.0
  %2313 = vmatprep.subr.mxu0 0.0
  %2314 = vmatpush1.msra.mxu0 0.0
  %2315 = vmatprep.subr.mxu0 0.0
  %2316 = vmatpush1.msra.mxu0 0.0
  %2317 = vmatprep.subr.mxu0 0.0
  %2318 = vmatpush1.msra.mxu0 0.0
  %2319 = vmatprep.subr.mxu0 0.0
  %2320 = vmatpush1.msra.mxu0 0.0
  %2321 = vmatprep.subr.mxu0 0.0
  %2322 = vmatpush1.msra.mxu0 0.0
  %2323 = vmatprep.subr.mxu0 0.0
  %2324 = vmatpush1.msra.mxu0 0.0
  %2325 = vmatprep.subr.mxu0 0.0
  %2326 = vmatpush1.msra.mxu0 0.0
  %2327 = vmatprep.subr.mxu0 0.0
  %2328 = vmatpush1.msra.mxu0 0.0
  %2329 = vmatprep.subr.mxu0 0.0
  %2330 = vmatpush1.msra.mxu0 0.0
  %2331 = vmatprep.subr.mxu0 0.0
  %2332 = vmatpush1.msra.mxu0 0.0
  %2333 = vmatprep.subr.mxu0 0.0
  %2334 = vmatpush1.msra.mxu0 0.0
  %2335 = vmatprep.subr.mxu0 0.0
  %2336 = vmatpush1.msra.mxu0 0.0
  %2337 = vmatprep.subr.mxu0 0.0
  %2338 = vmatpush1.msra.mxu0 0.0
  %2339 = vmatprep.subr.mxu0 0.0
  %2340 = vmatpush1.msra.mxu0 0.0
  %2341 = vmatprep.subr.mxu0 0.0
  %2342 = vmatpush1.msra.mxu0 0.0
  %2343 = vmatprep.subr.mxu0 0.0
  %2344 = vmatpush1.msra.mxu0 0.0
  %2345 = vmatprep.subr.mxu0 0.0
  %2346 = vmatpush1.msra.mxu0 0.0
  %2347 = vmatprep.subr.mxu0 0.0
  %2348 = vmatpush1.msra.mxu0 0.0
  %2349 = vmatprep.mubr.f32.mxu0 0.0
  %v2350 = vand.u32 %v2047, 4294901760
  %v2351 = vsub.f32 %v2047, %v2350
  %v2352 = vand.u32 %v2351, 4294901760
  %2353 = vmatmul.mubr.f32.gmra.mrb[0].mxu0 %v2352
  %v2354 = vpop.f32.mrb[0].mxu0
  %v2355 = vadd.f32 %v2280, %v2354
  %v2356 = vpop.f32.mrb[0].mxu0
  %2357 = vdwg.mxu0
  %2358 = vmatprep.subr.mxu0 0.0
  %v2359 = vand.u32 %v26, 4294901760
  %v2360 = vsub.f32 %v26, %v2359
  %v2361 = vand.u32 %v2360, 4294901760
  %2362 = vmatpush1.msra.mxu0 %v2361
  %2363 = vmatprep.subr.mxu0 0.0
  %v2364 = vand.u32 %v27, 4294901760
  %v2365 = vsub.f32 %v27, %v2364
  %v2366 = vand.u32 %v2365, 4294901760
  %2367 = vmatpush1.msra.mxu0 %v2366
  %2368 = vmatprep.subr.mxu0 0.0
  %2369 = vmatpush1.msra.mxu0 0.0
  %2370 = vmatprep.subr.mxu0 0.0
  %2371 = vmatpush1.msra.mxu0 0.0
  %2372 = vmatprep.subr.mxu0 0.0
  %2373 = vmatpush1.msra.mxu0 0.0
  %2374 = vmatprep.subr.mxu0 0.0
  %2375 = vmatpush1.msra.mxu0 0.0
  %2376 = vmatprep.subr.mxu0 0.0
  %2377 = vmatpush1.msra.mxu0 0.0
  %2378 = vmatprep.subr.mxu0 0.0
  %2379 = vmatpush1.msra.mxu0 0.0
  %2380 = vmatprep.subr.mxu0 0.0
  %2381 = vmatpush1.msra.mxu0 0.0
  %2382 = vmatprep.subr.mxu0 0.0
  %2383 = vmatpush1.msra.mxu0 0.0
  %2384 = vmatprep.subr.mxu0 0.0
  %2385 = vmatpush1.msra.mxu0 0.0
  %2386 = vmatprep.subr.mxu0 0.0
  %2387 = vmatpush1.msra.mxu0 0.0
  %2388 = vmatprep.subr.mxu0 0.0
  %2389 = vmatpush1.msra.mxu0 0.0
  %2390 = vmatprep.subr.mxu0 0.0
  %2391 = vmatpush1.msra.mxu0 0.0
  %2392 = vmatprep.subr.mxu0 0.0
  %2393 = vmatpush1.msra.mxu0 0.0
  %2394 = vmatprep.subr.mxu0 0.0
  %2395 = vmatpush1.msra.mxu0 0.0
  %2396 = vmatprep.subr.mxu0 0.0
  %2397 = vmatpush1.msra.mxu0 0.0
  %2398 = vmatprep.subr.mxu0 0.0
  %2399 = vmatpush1.msra.mxu0 0.0
  %2400 = vmatprep.subr.mxu0 0.0
  %2401 = vmatpush1.msra.mxu0 0.0
  %2402 = vmatprep.subr.mxu0 0.0
  %2403 = vmatpush1.msra.mxu0 0.0
  %2404 = vmatprep.subr.mxu0 0.0
  %2405 = vmatpush1.msra.mxu0 0.0
  %2406 = vmatprep.subr.mxu0 0.0
  %2407 = vmatpush1.msra.mxu0 0.0
  %2408 = vmatprep.subr.mxu0 0.0
  %2409 = vmatpush1.msra.mxu0 0.0
  %2410 = vmatprep.subr.mxu0 0.0
  %2411 = vmatpush1.msra.mxu0 0.0
  %2412 = vmatprep.subr.mxu0 0.0
  %2413 = vmatpush1.msra.mxu0 0.0
  %2414 = vmatprep.subr.mxu0 0.0
  %2415 = vmatpush1.msra.mxu0 0.0
  %2416 = vmatprep.subr.mxu0 0.0
  %2417 = vmatpush1.msra.mxu0 0.0
  %2418 = vmatprep.subr.mxu0 0.0
  %2419 = vmatpush1.msra.mxu0 0.0
  %2420 = vmatprep.subr.mxu0 0.0
  %2421 = vmatpush1.msra.mxu0 0.0
  %2422 = vmatprep.subr.mxu0 0.0
  %2423 = vmatpush1.msra.mxu0 0.0
  %2424 = vmatprep.subr.mxu0 0.0
  %2425 = vmatpush1.msra.mxu0 0.0
  %2426 = vmatprep.subr.mxu0 0.0
  %2427 = vmatpush1.msra.mxu0 0.0
  %2428 = vmatprep.mubr.f32.mxu0 0.0
  %v2429 = vand.u32 %v2047, 4294901760
  %2430 = vmatmul.mubr.f32.gmra.mrb[0].mxu0 %v2429
  %v2431 = vpop.f32.mrb[0].mxu0
  %v2432 = vadd.f32 %v2355, %v2431
  %v2433 = vpop.f32.mrb[0].mxu0
  %2434 = vdwg.mxu0
  %2435 = vmatprep.subr.mxu0 0.0
  %v2436 = vand.u32 %v26, 4294901760
  %2437 = vmatpush1.msra.mxu0 %v2436
  %2438 = vmatprep.subr.mxu0 0.0
  %v2439 = vand.u32 %v27, 4294901760
  %2440 = vmatpush1.msra.mxu0 %v2439
  %2441 = vmatprep.subr.mxu0 0.0
  %2442 = vmatpush1.msra.mxu0 0.0
  %2443 = vmatprep.subr.mxu0 0.0
  %2444 = vmatpush1.msra.mxu0 0.0
  %2445 = vmatprep.subr.mxu0 0.0
  %2446 = vmatpush1.msra.mxu0 0.0
  %2447 = vmatprep.subr.mxu0 0.0
  %2448 = vmatpush1.msra.mxu0 0.0
  %2449 = vmatprep.subr.mxu0 0.0
  %2450 = vmatpush1.msra.mxu0 0.0
  %2451 = vmatprep.subr.mxu0 0.0
  %2452 = vmatpush1.msra.mxu0 0.0
  %2453 = vmatprep.subr.mxu0 0.0
  %2454 = vmatpush1.msra.mxu0 0.0
  %2455 = vmatprep.subr.mxu0 0.0
  %2456 = vmatpush1.msra.mxu0 0.0
  %2457 = vmatprep.subr.mxu0 0.0
  %2458 = vmatpush1.msra.mxu0 0.0
  %2459 = vmatprep.subr.mxu0 0.0
  %2460 = vmatpush1.msra.mxu0 0.0
  %2461 = vmatprep.subr.mxu0 0.0
  %2462 = vmatpush1.msra.mxu0 0.0
  %2463 = vmatprep.subr.mxu0 0.0
  %2464 = vmatpush1.msra.mxu0 0.0
  %2465 = vmatprep.subr.mxu0 0.0
  %2466 = vmatpush1.msra.mxu0 0.0
  %2467 = vmatprep.subr.mxu0 0.0
  %2468 = vmatpush1.msra.mxu0 0.0
  %2469 = vmatprep.subr.mxu0 0.0
  %2470 = vmatpush1.msra.mxu0 0.0
  %2471 = vmatprep.subr.mxu0 0.0
  %2472 = vmatpush1.msra.mxu0 0.0
  %2473 = vmatprep.subr.mxu0 0.0
  %2474 = vmatpush1.msra.mxu0 0.0
  %2475 = vmatprep.subr.mxu0 0.0
  %2476 = vmatpush1.msra.mxu0 0.0
  %2477 = vmatprep.subr.mxu0 0.0
  %2478 = vmatpush1.msra.mxu0 0.0
  %2479 = vmatprep.subr.mxu0 0.0
  %2480 = vmatpush1.msra.mxu0 0.0
  %2481 = vmatprep.subr.mxu0 0.0
  %2482 = vmatpush1.msra.mxu0 0.0
  %2483 = vmatprep.subr.mxu0 0.0
  %2484 = vmatpush1.msra.mxu0 0.0
  %2485 = vmatprep.subr.mxu0 0.0
  %2486 = vmatpush1.msra.mxu0 0.0
  %2487 = vmatprep.subr.mxu0 0.0
  %2488 = vmatpush1.msra.mxu0 0.0
  %2489 = vmatprep.subr.mxu0 0.0
  %2490 = vmatpush1.msra.mxu0 0.0
  %2491 = vmatprep.subr.mxu0 0.0
  %2492 = vmatpush1.msra.mxu0 0.0
  %2493 = vmatprep.subr.mxu0 0.0
  %2494 = vmatpush1.msra.mxu0 0.0
  %2495 = vmatprep.subr.mxu0 0.0
  %2496 = vmatpush1.msra.mxu0 0.0
  %2497 = vmatprep.subr.mxu0 0.0
  %2498 = vmatpush1.msra.mxu0 0.0
  %2499 = vmatprep.subr.mxu0 0.0
  %2500 = vmatpush1.msra.mxu0 0.0
  %2501 = vmatprep.mubr.f32.mxu0 0.0
  %v2502 = vand.u32 %v2047, 4294901760
  %2503 = vmatmul.mubr.f32.gmra.mrb[0].mxu0 %v2502
  %v2504 = vpop.f32.mrb[0].mxu0
  %v2505 = vadd.f32 %v2432, %v2504
  %v2506 = vpop.f32.mrb[0].mxu0
  %2507 = vdwg.mxu0
  %v2508 = vadd.f32 %v101, %v2505
  %v2509 = vtanh.pop %v2508
  %v2510 = vmul.f32 %v2509, 0.5
  %v2511 = vadd.f32 %v2510, 0.5
  %v2512 = vmul.f32 %v2511, %v2037
  %2514 = vrot.lane.b32.xlu0 %v2509, 80
  %v2515 = vpop.permute.xlu0 %2514
  %v2517 = vmul.f32 %v2511, %v2515
  %2519 = vrot.lane.b32.xlu0 %v2517, 16
  %v2520 = vpop.permute.xlu0 %2519
  %v2522 = vadd.f32 %v2512, %v2520
  %v2523 = vtanh.pop %v2522
  %2525 = vrot.lane.b32.xlu0 %v2523, 16
  %v2526 = vpop.permute.xlu0 %2525
  %v2528 = vmul.f32 %v2511, %v2526
  %2530 = vrot.lane.b32.xlu0 %v2528, 96
  %v2531 = vpop.permute.xlu0 %2530
  %v2532 = vsel %vm105, %v2531, 0
  %2534 = vmatprep.subr.mxu0 0.0
  %v2535 = vand.u32 %v26, 4294901760
  %2536 = vmatpush1.msra.mxu0 %v2535
  %2537 = vmatprep.subr.mxu0 0.0
  %v2538 = vand.u32 %v27, 4294901760
  %2539 = vmatpush1.msra.mxu0 %v2538
  %2540 = vmatprep.subr.mxu0 0.0
  %2541 = vmatpush1.msra.mxu0 0.0
  %2542 = vmatprep.subr.mxu0 0.0
  %2543 = vmatpush1.msra.mxu0 0.0
  %2544 = vmatprep.subr.mxu0 0.0
  %2545 = vmatpush1.msra.mxu0 0.0
  %2546 = vmatprep.subr.mxu0 0.0
  %2547 = vmatpush1.msra.mxu0 0.0
  %2548 = vmatprep.subr.mxu0 0.0
  %2549 = vmatpush1.msra.mxu0 0.0
  %2550 = vmatprep.subr.mxu0 0.0
  %2551 = vmatpush1.msra.mxu0 0.0
  %2552 = vmatprep.subr.mxu0 0.0
  %2553 = vmatpush1.msra.mxu0 0.0
  %2554 = vmatprep.subr.mxu0 0.0
  %2555 = vmatpush1.msra.mxu0 0.0
  %2556 = vmatprep.subr.mxu0 0.0
  %2557 = vmatpush1.msra.mxu0 0.0
  %2558 = vmatprep.subr.mxu0 0.0
  %2559 = vmatpush1.msra.mxu0 0.0
  %2560 = vmatprep.subr.mxu0 0.0
  %2561 = vmatpush1.msra.mxu0 0.0
  %2562 = vmatprep.subr.mxu0 0.0
  %2563 = vmatpush1.msra.mxu0 0.0
  %2564 = vmatprep.subr.mxu0 0.0
  %2565 = vmatpush1.msra.mxu0 0.0
  %2566 = vmatprep.subr.mxu0 0.0
  %2567 = vmatpush1.msra.mxu0 0.0
  %2568 = vmatprep.subr.mxu0 0.0
  %2569 = vmatpush1.msra.mxu0 0.0
  %2570 = vmatprep.subr.mxu0 0.0
  %2571 = vmatpush1.msra.mxu0 0.0
  %2572 = vmatprep.subr.mxu0 0.0
  %2573 = vmatpush1.msra.mxu0 0.0
  %2574 = vmatprep.subr.mxu0 0.0
  %2575 = vmatpush1.msra.mxu0 0.0
  %2576 = vmatprep.subr.mxu0 0.0
  %2577 = vmatpush1.msra.mxu0 0.0
  %2578 = vmatprep.subr.mxu0 0.0
  %2579 = vmatpush1.msra.mxu0 0.0
  %2580 = vmatprep.subr.mxu0 0.0
  %2581 = vmatpush1.msra.mxu0 0.0
  %2582 = vmatprep.subr.mxu0 0.0
  %2583 = vmatpush1.msra.mxu0 0.0
  %2584 = vmatprep.subr.mxu0 0.0
  %2585 = vmatpush1.msra.mxu0 0.0
  %2586 = vmatprep.subr.mxu0 0.0
  %2587 = vmatpush1.msra.mxu0 0.0
  %2588 = vmatprep.subr.mxu0 0.0
  %2589 = vmatpush1.msra.mxu0 0.0
  %2590 = vmatprep.subr.mxu0 0.0
  %2591 = vmatpush1.msra.mxu0 0.0
  %2592 = vmatprep.subr.mxu0 0.0
  %2593 = vmatpush1.msra.mxu0 0.0
  %2594 = vmatprep.subr.mxu0 0.0
  %2595 = vmatpush1.msra.mxu0 0.0
  %2596 = vmatprep.subr.mxu0 0.0
  %2597 = vmatpush1.msra.mxu0 0.0
  %2598 = vmatprep.subr.mxu0 0.0
  %2599 = vmatpush1.msra.mxu0 0.0
  %2600 = vmatprep.mubr.f32.mxu0 0.0
  %v2601 = vand.u32 %v2532, 4294901760
  %v2602 = vsub.f32 %v2532, %v2601
  %v2603 = vand.u32 %v2602, 4294901760
  %v2604 = vsub.f32 %v2602, %v2603
  %v2605 = vand.u32 %v2604, 4294901760
  %2606 = vmatmul.mubr.f32.gmra.mrb[0].mxu0 %v2605
  %v2607 = vpop.f32.mrb[0].mxu0
  %v2608 = vadd.f32 0.0, %v2607
  %v2609 = vpop.f32.mrb[0].mxu0
  %2610 = vdwg.mxu0
  %2611 = vmatprep.subr.mxu0 0.0
  %v2612 = vand.u32 %v26, 4294901760
  %v2613 = vsub.f32 %v26, %v2612
  %v2614 = vand.u32 %v2613, 4294901760
  %v2615 = vsub.f32 %v2613, %v2614
  %v2616 = vand.u32 %v2615, 4294901760
  %2617 = vmatpush1.msra.mxu0 %v2616
  %2618 = vmatprep.subr.mxu0 0.0
  %v2619 = vand.u32 %v27, 4294901760
  %v2620 = vsub.f32 %v27, %v2619
  %v2621 = vand.u32 %v2620, 4294901760
  %v2622 = vsub.f32 %v2620, %v2621
  %v2623 = vand.u32 %v2622, 4294901760
  %2624 = vmatpush1.msra.mxu0 %v2623
  %2625 = vmatprep.subr.mxu0 0.0
  %2626 = vmatpush1.msra.mxu0 0.0
  %2627 = vmatprep.subr.mxu0 0.0
  %2628 = vmatpush1.msra.mxu0 0.0
  %2629 = vmatprep.subr.mxu0 0.0
  %2630 = vmatpush1.msra.mxu0 0.0
  %2631 = vmatprep.subr.mxu0 0.0
  %2632 = vmatpush1.msra.mxu0 0.0
  %2633 = vmatprep.subr.mxu0 0.0
  %2634 = vmatpush1.msra.mxu0 0.0
  %2635 = vmatprep.subr.mxu0 0.0
  %2636 = vmatpush1.msra.mxu0 0.0
  %2637 = vmatprep.subr.mxu0 0.0
  %2638 = vmatpush1.msra.mxu0 0.0
  %2639 = vmatprep.subr.mxu0 0.0
  %2640 = vmatpush1.msra.mxu0 0.0
  %2641 = vmatprep.subr.mxu0 0.0
  %2642 = vmatpush1.msra.mxu0 0.0
  %2643 = vmatprep.subr.mxu0 0.0
  %2644 = vmatpush1.msra.mxu0 0.0
  %2645 = vmatprep.subr.mxu0 0.0
  %2646 = vmatpush1.msra.mxu0 0.0
  %2647 = vmatprep.subr.mxu0 0.0
  %2648 = vmatpush1.msra.mxu0 0.0
  %2649 = vmatprep.subr.mxu0 0.0
  %2650 = vmatpush1.msra.mxu0 0.0
  %2651 = vmatprep.subr.mxu0 0.0
  %2652 = vmatpush1.msra.mxu0 0.0
  %2653 = vmatprep.subr.mxu0 0.0
  %2654 = vmatpush1.msra.mxu0 0.0
  %2655 = vmatprep.subr.mxu0 0.0
  %2656 = vmatpush1.msra.mxu0 0.0
  %2657 = vmatprep.subr.mxu0 0.0
  %2658 = vmatpush1.msra.mxu0 0.0
  %2659 = vmatprep.subr.mxu0 0.0
  %2660 = vmatpush1.msra.mxu0 0.0
  %2661 = vmatprep.subr.mxu0 0.0
  %2662 = vmatpush1.msra.mxu0 0.0
  %2663 = vmatprep.subr.mxu0 0.0
  %2664 = vmatpush1.msra.mxu0 0.0
  %2665 = vmatprep.subr.mxu0 0.0
  %2666 = vmatpush1.msra.mxu0 0.0
  %2667 = vmatprep.subr.mxu0 0.0
  %2668 = vmatpush1.msra.mxu0 0.0
  %2669 = vmatprep.subr.mxu0 0.0
  %2670 = vmatpush1.msra.mxu0 0.0
  %2671 = vmatprep.subr.mxu0 0.0
  %2672 = vmatpush1.msra.mxu0 0.0
  %2673 = vmatprep.subr.mxu0 0.0
  %2674 = vmatpush1.msra.mxu0 0.0
  %2675 = vmatprep.subr.mxu0 0.0
  %2676 = vmatpush1.msra.mxu0 0.0
  %2677 = vmatprep.subr.mxu0 0.0
  %2678 = vmatpush1.msra.mxu0 0.0
  %2679 = vmatprep.subr.mxu0 0.0
  %2680 = vmatpush1.msra.mxu0 0.0
  %2681 = vmatprep.subr.mxu0 0.0
  %2682 = vmatpush1.msra.mxu0 0.0
  %2683 = vmatprep.subr.mxu0 0.0
  %2684 = vmatpush1.msra.mxu0 0.0
  %2685 = vmatprep.mubr.f32.mxu0 0.0
  %v2686 = vand.u32 %v2532, 4294901760
  %2687 = vmatmul.mubr.f32.gmra.mrb[0].mxu0 %v2686
  %v2688 = vpop.f32.mrb[0].mxu0
  %v2689 = vadd.f32 %v2608, %v2688
  %v2690 = vpop.f32.mrb[0].mxu0
  %2691 = vdwg.mxu0
  %2692 = vmatprep.subr.mxu0 0.0
  %v2693 = vand.u32 %v26, 4294901760
  %v2694 = vsub.f32 %v26, %v2693
  %2695 = vmatpush1.msra.mxu0 %v2694
  %2696 = vmatprep.subr.mxu0 0.0
  %v2697 = vand.u32 %v27, 4294901760
  %v2698 = vsub.f32 %v27, %v2697
  %2699 = vmatpush1.msra.mxu0 %v2698
  %2700 = vmatprep.subr.mxu0 0.0
  %2701 = vmatpush1.msra.mxu0 0.0
  %2702 = vmatprep.subr.mxu0 0.0
  %2703 = vmatpush1.msra.mxu0 0.0
  %2704 = vmatprep.subr.mxu0 0.0
  %2705 = vmatpush1.msra.mxu0 0.0
  %2706 = vmatprep.subr.mxu0 0.0
  %2707 = vmatpush1.msra.mxu0 0.0
  %2708 = vmatprep.subr.mxu0 0.0
  %2709 = vmatpush1.msra.mxu0 0.0
  %2710 = vmatprep.subr.mxu0 0.0
  %2711 = vmatpush1.msra.mxu0 0.0
  %2712 = vmatprep.subr.mxu0 0.0
  %2713 = vmatpush1.msra.mxu0 0.0
  %2714 = vmatprep.subr.mxu0 0.0
  %2715 = vmatpush1.msra.mxu0 0.0
  %2716 = vmatprep.subr.mxu0 0.0
  %2717 = vmatpush1.msra.mxu0 0.0
  %2718 = vmatprep.subr.mxu0 0.0
  %2719 = vmatpush1.msra.mxu0 0.0
  %2720 = vmatprep.subr.mxu0 0.0
  %2721 = vmatpush1.msra.mxu0 0.0
  %2722 = vmatprep.subr.mxu0 0.0
  %2723 = vmatpush1.msra.mxu0 0.0
  %2724 = vmatprep.subr.mxu0 0.0
  %2725 = vmatpush1.msra.mxu0 0.0
  %2726 = vmatprep.subr.mxu0 0.0
  %2727 = vmatpush1.msra.mxu0 0.0
  %2728 = vmatprep.subr.mxu0 0.0
  %2729 = vmatpush1.msra.mxu0 0.0
  %2730 = vmatprep.subr.mxu0 0.0
  %2731 = vmatpush1.msra.mxu0 0.0
  %2732 = vmatprep.subr.mxu0 0.0
  %2733 = vmatpush1.msra.mxu0 0.0
  %2734 = vmatprep.subr.mxu0 0.0
  %2735 = vmatpush1.msra.mxu0 0.0
  %2736 = vmatprep.subr.mxu0 0.0
  %2737 = vmatpush1.msra.mxu0 0.0
  %2738 = vmatprep.subr.mxu0 0.0
  %2739 = vmatpush1.msra.mxu0 0.0
  %2740 = vmatprep.subr.mxu0 0.0
  %2741 = vmatpush1.msra.mxu0 0.0
  %2742 = vmatprep.subr.mxu0 0.0
  %2743 = vmatpush1.msra.mxu0 0.0
  %2744 = vmatprep.subr.mxu0 0.0
  %2745 = vmatpush1.msra.mxu0 0.0
  %2746 = vmatprep.subr.mxu0 0.0
  %2747 = vmatpush1.msra.mxu0 0.0
  %2748 = vmatprep.subr.mxu0 0.0
  %2749 = vmatpush1.msra.mxu0 0.0
  %2750 = vmatprep.subr.mxu0 0.0
  %2751 = vmatpush1.msra.mxu0 0.0
  %2752 = vmatprep.subr.mxu0 0.0
  %2753 = vmatpush1.msra.mxu0 0.0
  %2754 = vmatprep.subr.mxu0 0.0
  %2755 = vmatpush1.msra.mxu0 0.0
  %2756 = vmatprep.subr.mxu0 0.0
  %2757 = vmatpush1.msra.mxu0 0.0
  %2758 = vmatprep.subr.mxu0 0.0
  %2759 = vmatpush1.msra.mxu0 0.0
  %2760 = vmatprep.mubr.f32.mxu0 0.0
  %v2761 = vand.u32 %v2532, 4294901760
  %v2762 = vsub.f32 %v2532, %v2761
  %2763 = vmatmul.mubr.f32.gmra.mrb[0].mxu0 %v2762
  %v2764 = vpop.f32.mrb[0].mxu0
  %v2765 = vadd.f32 %v2689, %v2764
  %v2766 = vpop.f32.mrb[0].mxu0
  %2767 = vdwg.mxu0
  %2768 = vmatprep.subr.mxu0 0.0
  %v2769 = vand.u32 %v26, 4294901760
  %2770 = vmatpush1.msra.mxu0 %v2769
  %2771 = vmatprep.subr.mxu0 0.0
  %v2772 = vand.u32 %v27, 4294901760
  %2773 = vmatpush1.msra.mxu0 %v2772
  %2774 = vmatprep.subr.mxu0 0.0
  %2775 = vmatpush1.msra.mxu0 0.0
  %2776 = vmatprep.subr.mxu0 0.0
  %2777 = vmatpush1.msra.mxu0 0.0
  %2778 = vmatprep.subr.mxu0 0.0
  %2779 = vmatpush1.msra.mxu0 0.0
  %2780 = vmatprep.subr.mxu0 0.0
  %2781 = vmatpush1.msra.mxu0 0.0
  %2782 = vmatprep.subr.mxu0 0.0
  %2783 = vmatpush1.msra.mxu0 0.0
  %2784 = vmatprep.subr.mxu0 0.0
  %2785 = vmatpush1.msra.mxu0 0.0
  %2786 = vmatprep.subr.mxu0 0.0
  %2787 = vmatpush1.msra.mxu0 0.0
  %2788 = vmatprep.subr.mxu0 0.0
  %2789 = vmatpush1.msra.mxu0 0.0
  %2790 = vmatprep.subr.mxu0 0.0
  %2791 = vmatpush1.msra.mxu0 0.0
  %2792 = vmatprep.subr.mxu0 0.0
  %2793 = vmatpush1.msra.mxu0 0.0
  %2794 = vmatprep.subr.mxu0 0.0
  %2795 = vmatpush1.msra.mxu0 0.0
  %2796 = vmatprep.subr.mxu0 0.0
  %2797 = vmatpush1.msra.mxu0 0.0
  %2798 = vmatprep.subr.mxu0 0.0
  %2799 = vmatpush1.msra.mxu0 0.0
  %2800 = vmatprep.subr.mxu0 0.0
  %2801 = vmatpush1.msra.mxu0 0.0
  %2802 = vmatprep.subr.mxu0 0.0
  %2803 = vmatpush1.msra.mxu0 0.0
  %2804 = vmatprep.subr.mxu0 0.0
  %2805 = vmatpush1.msra.mxu0 0.0
  %2806 = vmatprep.subr.mxu0 0.0
  %2807 = vmatpush1.msra.mxu0 0.0
  %2808 = vmatprep.subr.mxu0 0.0
  %2809 = vmatpush1.msra.mxu0 0.0
  %2810 = vmatprep.subr.mxu0 0.0
  %2811 = vmatpush1.msra.mxu0 0.0
  %2812 = vmatprep.subr.mxu0 0.0
  %2813 = vmatpush1.msra.mxu0 0.0
  %2814 = vmatprep.subr.mxu0 0.0
  %2815 = vmatpush1.msra.mxu0 0.0
  %2816 = vmatprep.subr.mxu0 0.0
  %2817 = vmatpush1.msra.mxu0 0.0
  %2818 = vmatprep.subr.mxu0 0.0
  %2819 = vmatpush1.msra.mxu0 0.0
  %2820 = vmatprep.subr.mxu0 0.0
  %2821 = vmatpush1.msra.mxu0 0.0
  %2822 = vmatprep.subr.mxu0 0.0
  %2823 = vmatpush1.msra.mxu0 0.0
  %2824 = vmatprep.subr.mxu0 0.0
  %2825 = vmatpush1.msra.mxu0 0.0
  %2826 = vmatprep.subr.mxu0 0.0
  %2827 = vmatpush1.msra.mxu0 0.0
  %2828 = vmatprep.subr.mxu0 0.0
  %2829 = vmatpush1.msra.mxu0 0.0
  %2830 = vmatprep.subr.mxu0 0.0
  %2831 = vmatpush1.msra.mxu0 0.0
  %2832 = vmatprep.subr.mxu0 0.0
  %2833 = vmatpush1.msra.mxu0 0.0
  %2834 = vmatprep.mubr.f32.mxu0 0.0
  %v2835 = vand.u32 %v2532, 4294901760
  %v2836 = vsub.f32 %v2532, %v2835
  %v2837 = vand.u32 %v2836, 4294901760
  %2838 = vmatmul.mubr.f32.gmra.mrb[0].mxu0 %v2837
  %v2839 = vpop.f32.mrb[0].mxu0
  %v2840 = vadd.f32 %v2765, %v2839
  %v2841 = vpop.f32.mrb[0].mxu0
  %2842 = vdwg.mxu0
  %2843 = vmatprep.subr.mxu0 0.0
  %v2844 = vand.u32 %v26, 4294901760
  %v2845 = vsub.f32 %v26, %v2844
  %v2846 = vand.u32 %v2845, 4294901760
  %2847 = vmatpush1.msra.mxu0 %v2846
  %2848 = vmatprep.subr.mxu0 0.0
  %v2849 = vand.u32 %v27, 4294901760
  %v2850 = vsub.f32 %v27, %v2849
  %v2851 = vand.u32 %v2850, 4294901760
  %2852 = vmatpush1.msra.mxu0 %v2851
  %2853 = vmatprep.subr.mxu0 0.0
  %2854 = vmatpush1.msra.mxu0 0.0
  %2855 = vmatprep.subr.mxu0 0.0
  %2856 = vmatpush1.msra.mxu0 0.0
  %2857 = vmatprep.subr.mxu0 0.0
  %2858 = vmatpush1.msra.mxu0 0.0
  %2859 = vmatprep.subr.mxu0 0.0
  %2860 = vmatpush1.msra.mxu0 0.0
  %2861 = vmatprep.subr.mxu0 0.0
  %2862 = vmatpush1.msra.mxu0 0.0
  %2863 = vmatprep.subr.mxu0 0.0
  %2864 = vmatpush1.msra.mxu0 0.0
  %2865 = vmatprep.subr.mxu0 0.0
  %2866 = vmatpush1.msra.mxu0 0.0
  %2867 = vmatprep.subr.mxu0 0.0
  %2868 = vmatpush1.msra.mxu0 0.0
  %2869 = vmatprep.subr.mxu0 0.0
  %2870 = vmatpush1.msra.mxu0 0.0
  %2871 = vmatprep.subr.mxu0 0.0
  %2872 = vmatpush1.msra.mxu0 0.0
  %2873 = vmatprep.subr.mxu0 0.0
  %2874 = vmatpush1.msra.mxu0 0.0
  %2875 = vmatprep.subr.mxu0 0.0
  %2876 = vmatpush1.msra.mxu0 0.0
  %2877 = vmatprep.subr.mxu0 0.0
  %2878 = vmatpush1.msra.mxu0 0.0
  %2879 = vmatprep.subr.mxu0 0.0
  %2880 = vmatpush1.msra.mxu0 0.0
  %2881 = vmatprep.subr.mxu0 0.0
  %2882 = vmatpush1.msra.mxu0 0.0
  %2883 = vmatprep.subr.mxu0 0.0
  %2884 = vmatpush1.msra.mxu0 0.0
  %2885 = vmatprep.subr.mxu0 0.0
  %2886 = vmatpush1.msra.mxu0 0.0
  %2887 = vmatprep.subr.mxu0 0.0
  %2888 = vmatpush1.msra.mxu0 0.0
  %2889 = vmatprep.subr.mxu0 0.0
  %2890 = vmatpush1.msra.mxu0 0.0
  %2891 = vmatprep.subr.mxu0 0.0
  %2892 = vmatpush1.msra.mxu0 0.0
  %2893 = vmatprep.subr.mxu0 0.0
  %2894 = vmatpush1.msra.mxu0 0.0
  %2895 = vmatprep.subr.mxu0 0.0
  %2896 = vmatpush1.msra.mxu0 0.0
  %2897 = vmatprep.subr.mxu0 0.0
  %2898 = vmatpush1.msra.mxu0 0.0
  %2899 = vmatprep.subr.mxu0 0.0
  %2900 = vmatpush1.msra.mxu0 0.0
  %2901 = vmatprep.subr.mxu0 0.0
  %2902 = vmatpush1.msra.mxu0 0.0
  %2903 = vmatprep.subr.mxu0 0.0
  %2904 = vmatpush1.msra.mxu0 0.0
  %2905 = vmatprep.subr.mxu0 0.0
  %2906 = vmatpush1.msra.mxu0 0.0
  %2907 = vmatprep.subr.mxu0 0.0
  %2908 = vmatpush1.msra.mxu0 0.0
  %2909 = vmatprep.subr.mxu0 0.0
  %2910 = vmatpush1.msra.mxu0 0.0
  %2911 = vmatprep.subr.mxu0 0.0
  %2912 = vmatpush1.msra.mxu0 0.0
  %2913 = vmatprep.mubr.f32.mxu0 0.0
  %v2914 = vand.u32 %v2532, 4294901760
  %2915 = vmatmul.mubr.f32.gmra.mrb[0].mxu0 %v2914
  %v2916 = vpop.f32.mrb[0].mxu0
  %v2917 = vadd.f32 %v2840, %v2916
  %v2918 = vpop.f32.mrb[0].mxu0
  %2919 = vdwg.mxu0
  %2920 = vmatprep.subr.mxu0 0.0
  %v2921 = vand.u32 %v26, 4294901760
  %2922 = vmatpush1.msra.mxu0 %v2921
  %2923 = vmatprep.subr.mxu0 0.0
  %v2924 = vand.u32 %v27, 4294901760
  %2925 = vmatpush1.msra.mxu0 %v2924
  %2926 = vmatprep.subr.mxu0 0.0
  %2927 = vmatpush1.msra.mxu0 0.0
  %2928 = vmatprep.subr.mxu0 0.0
  %2929 = vmatpush1.msra.mxu0 0.0
  %2930 = vmatprep.subr.mxu0 0.0
  %2931 = vmatpush1.msra.mxu0 0.0
  %2932 = vmatprep.subr.mxu0 0.0
  %2933 = vmatpush1.msra.mxu0 0.0
  %2934 = vmatprep.subr.mxu0 0.0
  %2935 = vmatpush1.msra.mxu0 0.0
  %2936 = vmatprep.subr.mxu0 0.0
  %2937 = vmatpush1.msra.mxu0 0.0
  %2938 = vmatprep.subr.mxu0 0.0
  %2939 = vmatpush1.msra.mxu0 0.0
  %2940 = vmatprep.subr.mxu0 0.0
  %2941 = vmatpush1.msra.mxu0 0.0
  %2942 = vmatprep.subr.mxu0 0.0
  %2943 = vmatpush1.msra.mxu0 0.0
  %2944 = vmatprep.subr.mxu0 0.0
  %2945 = vmatpush1.msra.mxu0 0.0
  %2946 = vmatprep.subr.mxu0 0.0
  %2947 = vmatpush1.msra.mxu0 0.0
  %2948 = vmatprep.subr.mxu0 0.0
  %2949 = vmatpush1.msra.mxu0 0.0
  %2950 = vmatprep.subr.mxu0 0.0
  %2951 = vmatpush1.msra.mxu0 0.0
  %2952 = vmatprep.subr.mxu0 0.0
  %2953 = vmatpush1.msra.mxu0 0.0
  %2954 = vmatprep.subr.mxu0 0.0
  %2955 = vmatpush1.msra.mxu0 0.0
  %2956 = vmatprep.subr.mxu0 0.0
  %2957 = vmatpush1.msra.mxu0 0.0
  %2958 = vmatprep.subr.mxu0 0.0
  %2959 = vmatpush1.msra.mxu0 0.0
  %2960 = vmatprep.subr.mxu0 0.0
  %2961 = vmatpush1.msra.mxu0 0.0
  %2962 = vmatprep.subr.mxu0 0.0
  %2963 = vmatpush1.msra.mxu0 0.0
  %2964 = vmatprep.subr.mxu0 0.0
  %2965 = vmatpush1.msra.mxu0 0.0
  %2966 = vmatprep.subr.mxu0 0.0
  %2967 = vmatpush1.msra.mxu0 0.0
  %2968 = vmatprep.subr.mxu0 0.0
  %2969 = vmatpush1.msra.mxu0 0.0
  %2970 = vmatprep.subr.mxu0 0.0
  %2971 = vmatpush1.msra.mxu0 0.0
  %2972 = vmatprep.subr.mxu0 0.0
  %2973 = vmatpush1.msra.mxu0 0.0
  %2974 = vmatprep.subr.mxu0 0.0
  %2975 = vmatpush1.msra.mxu0 0.0
  %2976 = vmatprep.subr.mxu0 0.0
  %2977 = vmatpush1.msra.mxu0 0.0
  %2978 = vmatprep.subr.mxu0 0.0
  %2979 = vmatpush1.msra.mxu0 0.0
  %2980 = vmatprep.subr.mxu0 0.0
  %2981 = vmatpush1.msra.mxu0 0.0
  %2982 = vmatprep.subr.mxu0 0.0
  %2983 = vmatpush1.msra.mxu0 0.0
  %2984 = vmatprep.subr.mxu0 0.0
  %2985 = vmatpush1.msra.mxu0 0.0
  %2986 = vmatprep.mubr.f32.mxu0 0.0
  %v2987 = vand.u32 %v2532, 4294901760
  %2988 = vmatmul.mubr.f32.gmra.mrb[0].mxu0 %v2987
  %v2989 = vpop.f32.mrb[0].mxu0
  %v2990 = vadd.f32 %v2917, %v2989
  %v2991 = vpop.f32.mrb[0].mxu0
  %2992 = vdwg.mxu0
  %v2993 = vadd.f32 %v102, %v2990
  %v2994 = vtanh.pop %v2993
  %v2995 = vmul.f32 %v2994, 0.5
  %v2996 = vadd.f32 %v2995, 0.5
  %v2997 = vmul.f32 %v2996, %v2522
  %2999 = vrot.lane.b32.xlu0 %v2994, 80
  %v3000 = vpop.permute.xlu0 %2999
  %v3002 = vmul.f32 %v2996, %v3000
  %3004 = vrot.lane.b32.xlu0 %v3002, 16
  %v3005 = vpop.permute.xlu0 %3004
  %v3007 = vadd.f32 %v2997, %v3005
  %v3008 = vtanh.pop %v3007
  %3010 = vrot.lane.b32.xlu0 %v3008, 16
  %v3011 = vpop.permute.xlu0 %3010
  %v3013 = vmul.f32 %v2996, %v3011
  %3015 = vrot.lane.b32.xlu0 %v3013, 96
  %v3016 = vpop.permute.xlu0 %3015
  %v3017 = vsel %vm105, %v3016, 0
  %3019 = vmatprep.subr.mxu0 0.0
  %v3020 = vand.u32 %v26, 4294901760
  %3021 = vmatpush1.msra.mxu0 %v3020
  %3022 = vmatprep.subr.mxu0 0.0
  %v3023 = vand.u32 %v27, 4294901760
  %3024 = vmatpush1.msra.mxu0 %v3023
  %3025 = vmatprep.subr.mxu0 0.0
  %3026 = vmatpush1.msra.mxu0 0.0
  %3027 = vmatprep.subr.mxu0 0.0
  %3028 = vmatpush1.msra.mxu0 0.0
  %3029 = vmatprep.subr.mxu0 0.0
  %3030 = vmatpush1.msra.mxu0 0.0
  %3031 = vmatprep.subr.mxu0 0.0
  %3032 = vmatpush1.msra.mxu0 0.0
  %3033 = vmatprep.subr.mxu0 0.0
  %3034 = vmatpush1.msra.mxu0 0.0
  %3035 = vmatprep.subr.mxu0 0.0
  %3036 = vmatpush1.msra.mxu0 0.0
  %3037 = vmatprep.subr.mxu0 0.0
  %3038 = vmatpush1.msra.mxu0 0.0
  %3039 = vmatprep.subr.mxu0 0.0
  %3040 = vmatpush1.msra.mxu0 0.0
  %3041 = vmatprep.subr.mxu0 0.0
  %3042 = vmatpush1.msra.mxu0 0.0
  %3043 = vmatprep.subr.mxu0 0.0
  %3044 = vmatpush1.msra.mxu0 0.0
  %3045 = vmatprep.subr.mxu0 0.0
  %3046 = vmatpush1.msra.mxu0 0.0
  %3047 = vmatprep.subr.mxu0 0.0
  %3048 = vmatpush1.msra.mxu0 0.0
  %3049 = vmatprep.subr.mxu0 0.0
  %3050 = vmatpush1.msra.mxu0 0.0
  %3051 = vmatprep.subr.mxu0 0.0
  %3052 = vmatpush1.msra.mxu0 0.0
  %3053 = vmatprep.subr.mxu0 0.0
  %3054 = vmatpush1.msra.mxu0 0.0
  %3055 = vmatprep.subr.mxu0 0.0
  %3056 = vmatpush1.msra.mxu0 0.0
  %3057 = vmatprep.subr.mxu0 0.0
  %3058 = vmatpush1.msra.mxu0 0.0
  %3059 = vmatprep.subr.mxu0 0.0
  %3060 = vmatpush1.msra.mxu0 0.0
  %3061 = vmatprep.subr.mxu0 0.0
  %3062 = vmatpush1.msra.mxu0 0.0
  %3063 = vmatprep.subr.mxu0 0.0
  %3064 = vmatpush1.msra.mxu0 0.0
  %3065 = vmatprep.subr.mxu0 0.0
  %3066 = vmatpush1.msra.mxu0 0.0
  %3067 = vmatprep.subr.mxu0 0.0
  %3068 = vmatpush1.msra.mxu0 0.0
  %3069 = vmatprep.subr.mxu0 0.0
  %3070 = vmatpush1.msra.mxu0 0.0
  %3071 = vmatprep.subr.mxu0 0.0
  %3072 = vmatpush1.msra.mxu0 0.0
  %3073 = vmatprep.subr.mxu0 0.0
  %3074 = vmatpush1.msra.mxu0 0.0
  %3075 = vmatprep.subr.mxu0 0.0
  %3076 = vmatpush1.msra.mxu0 0.0
  %3077 = vmatprep.subr.mxu0 0.0
  %3078 = vmatpush1.msra.mxu0 0.0
  %3079 = vmatprep.subr.mxu0 0.0
  %3080 = vmatpush1.msra.mxu0 0.0
  %3081 = vmatprep.subr.mxu0 0.0
  %3082 = vmatpush1.msra.mxu0 0.0
  %3083 = vmatprep.subr.mxu0 0.0
  %3084 = vmatpush1.msra.mxu0 0.0
  %3085 = vmatprep.mubr.f32.mxu0 0.0
  %v3086 = vand.u32 %v3017, 4294901760
  %v3087 = vsub.f32 %v3017, %v3086
  %v3088 = vand.u32 %v3087, 4294901760
  %v3089 = vsub.f32 %v3087, %v3088
  %v3090 = vand.u32 %v3089, 4294901760
  %3091 = vmatmul.mubr.f32.gmra.mrb[0].mxu0 %v3090
  %v3092 = vpop.f32.mrb[0].mxu0
  %v3093 = vadd.f32 0.0, %v3092
  %v3094 = vpop.f32.mrb[0].mxu0
  %3095 = vdwg.mxu0
  %3096 = vmatprep.subr.mxu0 0.0
  %v3097 = vand.u32 %v26, 4294901760
  %v3098 = vsub.f32 %v26, %v3097
  %v3099 = vand.u32 %v3098, 4294901760
  %v3100 = vsub.f32 %v3098, %v3099
  %v3101 = vand.u32 %v3100, 4294901760
  %3102 = vmatpush1.msra.mxu0 %v3101
  %3103 = vmatprep.subr.mxu0 0.0
  %v3104 = vand.u32 %v27, 4294901760
  %v3105 = vsub.f32 %v27, %v3104
  %v3106 = vand.u32 %v3105, 4294901760
  %v3107 = vsub.f32 %v3105, %v3106
  %v3108 = vand.u32 %v3107, 4294901760
  %3109 = vmatpush1.msra.mxu0 %v3108
  %3110 = vmatprep.subr.mxu0 0.0
  %3111 = vmatpush1.msra.mxu0 0.0
  %3112 = vmatprep.subr.mxu0 0.0
  %3113 = vmatpush1.msra.mxu0 0.0
  %3114 = vmatprep.subr.mxu0 0.0
  %3115 = vmatpush1.msra.mxu0 0.0
  %3116 = vmatprep.subr.mxu0 0.0
  %3117 = vmatpush1.msra.mxu0 0.0
  %3118 = vmatprep.subr.mxu0 0.0
  %3119 = vmatpush1.msra.mxu0 0.0
  %3120 = vmatprep.subr.mxu0 0.0
  %3121 = vmatpush1.msra.mxu0 0.0
  %3122 = vmatprep.subr.mxu0 0.0
  %3123 = vmatpush1.msra.mxu0 0.0
  %3124 = vmatprep.subr.mxu0 0.0
  %3125 = vmatpush1.msra.mxu0 0.0
  %3126 = vmatprep.subr.mxu0 0.0
  %3127 = vmatpush1.msra.mxu0 0.0
  %3128 = vmatprep.subr.mxu0 0.0
  %3129 = vmatpush1.msra.mxu0 0.0
  %3130 = vmatprep.subr.mxu0 0.0
  %3131 = vmatpush1.msra.mxu0 0.0
  %3132 = vmatprep.subr.mxu0 0.0
  %3133 = vmatpush1.msra.mxu0 0.0
  %3134 = vmatprep.subr.mxu0 0.0
  %3135 = vmatpush1.msra.mxu0 0.0
  %3136 = vmatprep.subr.mxu0 0.0
  %3137 = vmatpush1.msra.mxu0 0.0
  %3138 = vmatprep.subr.mxu0 0.0
  %3139 = vmatpush1.msra.mxu0 0.0
  %3140 = vmatprep.subr.mxu0 0.0
  %3141 = vmatpush1.msra.mxu0 0.0
  %3142 = vmatprep.subr.mxu0 0.0
  %3143 = vmatpush1.msra.mxu0 0.0
  %3144 = vmatprep.subr.mxu0 0.0
  %3145 = vmatpush1.msra.mxu0 0.0
  %3146 = vmatprep.subr.mxu0 0.0
  %3147 = vmatpush1.msra.mxu0 0.0
  %3148 = vmatprep.subr.mxu0 0.0
  %3149 = vmatpush1.msra.mxu0 0.0
  %3150 = vmatprep.subr.mxu0 0.0
  %3151 = vmatpush1.msra.mxu0 0.0
  %3152 = vmatprep.subr.mxu0 0.0
  %3153 = vmatpush1.msra.mxu0 0.0
  %3154 = vmatprep.subr.mxu0 0.0
  %3155 = vmatpush1.msra.mxu0 0.0
  %3156 = vmatprep.subr.mxu0 0.0
  %3157 = vmatpush1.msra.mxu0 0.0
  %3158 = vmatprep.subr.mxu0 0.0
  %3159 = vmatpush1.msra.mxu0 0.0
  %3160 = vmatprep.subr.mxu0 0.0
  %3161 = vmatpush1.msra.mxu0 0.0
  %3162 = vmatprep.subr.mxu0 0.0
  %3163 = vmatpush1.msra.mxu0 0.0
  %3164 = vmatprep.subr.mxu0 0.0
  %3165 = vmatpush1.msra.mxu0 0.0
  %3166 = vmatprep.subr.mxu0 0.0
  %3167 = vmatpush1.msra.mxu0 0.0
  %3168 = vmatprep.subr.mxu0 0.0
  %3169 = vmatpush1.msra.mxu0 0.0
  %3170 = vmatprep.mubr.f32.mxu0 0.0
  %v3171 = vand.u32 %v3017, 4294901760
  %3172 = vmatmul.mubr.f32.gmra.mrb[0].mxu0 %v3171
  %v3173 = vpop.f32.mrb[0].mxu0
  %v3174 = vadd.f32 %v3093, %v3173
  %v3175 = vpop.f32.mrb[0].mxu0
  %3176 = vdwg.mxu0
  %3177 = vmatprep.subr.mxu0 0.0
  %v3178 = vand.u32 %v26, 4294901760
  %v3179 = vsub.f32 %v26, %v3178
  %3180 = vmatpush1.msra.mxu0 %v3179
  %3181 = vmatprep.subr.mxu0 0.0
  %v3182 = vand.u32 %v27, 4294901760
  %v3183 = vsub.f32 %v27, %v3182
  %3184 = vmatpush1.msra.mxu0 %v3183
  %3185 = vmatprep.subr.mxu0 0.0
  %3186 = vmatpush1.msra.mxu0 0.0
  %3187 = vmatprep.subr.mxu0 0.0
  %3188 = vmatpush1.msra.mxu0 0.0
  %3189 = vmatprep.subr.mxu0 0.0
  %3190 = vmatpush1.msra.mxu0 0.0
  %3191 = vmatprep.subr.mxu0 0.0
  %3192 = vmatpush1.msra.mxu0 0.0
  %3193 = vmatprep.subr.mxu0 0.0
  %3194 = vmatpush1.msra.mxu0 0.0
  %3195 = vmatprep.subr.mxu0 0.0
  %3196 = vmatpush1.msra.mxu0 0.0
  %3197 = vmatprep.subr.mxu0 0.0
  %3198 = vmatpush1.msra.mxu0 0.0
  %3199 = vmatprep.subr.mxu0 0.0
  %3200 = vmatpush1.msra.mxu0 0.0
  %3201 = vmatprep.subr.mxu0 0.0
  %3202 = vmatpush1.msra.mxu0 0.0
  %3203 = vmatprep.subr.mxu0 0.0
  %3204 = vmatpush1.msra.mxu0 0.0
  %3205 = vmatprep.subr.mxu0 0.0
  %3206 = vmatpush1.msra.mxu0 0.0
  %3207 = vmatprep.subr.mxu0 0.0
  %3208 = vmatpush1.msra.mxu0 0.0
  %3209 = vmatprep.subr.mxu0 0.0
  %3210 = vmatpush1.msra.mxu0 0.0
  %3211 = vmatprep.subr.mxu0 0.0
  %3212 = vmatpush1.msra.mxu0 0.0
  %3213 = vmatprep.subr.mxu0 0.0
  %3214 = vmatpush1.msra.mxu0 0.0
  %3215 = vmatprep.subr.mxu0 0.0
  %3216 = vmatpush1.msra.mxu0 0.0
  %3217 = vmatprep.subr.mxu0 0.0
  %3218 = vmatpush1.msra.mxu0 0.0
  %3219 = vmatprep.subr.mxu0 0.0
  %3220 = vmatpush1.msra.mxu0 0.0
  %3221 = vmatprep.subr.mxu0 0.0
  %3222 = vmatpush1.msra.mxu0 0.0
  %3223 = vmatprep.subr.mxu0 0.0
  %3224 = vmatpush1.msra.mxu0 0.0
  %3225 = vmatprep.subr.mxu0 0.0
  %3226 = vmatpush1.msra.mxu0 0.0
  %3227 = vmatprep.subr.mxu0 0.0
  %3228 = vmatpush1.msra.mxu0 0.0
  %3229 = vmatprep.subr.mxu0 0.0
  %3230 = vmatpush1.msra.mxu0 0.0
  %3231 = vmatprep.subr.mxu0 0.0
  %3232 = vmatpush1.msra.mxu0 0.0
  %3233 = vmatprep.subr.mxu0 0.0
  %3234 = vmatpush1.msra.mxu0 0.0
  %3235 = vmatprep.subr.mxu0 0.0
  %3236 = vmatpush1.msra.mxu0 0.0
  %3237 = vmatprep.subr.mxu0 0.0
  %3238 = vmatpush1.msra.mxu0 0.0
  %3239 = vmatprep.subr.mxu0 0.0
  %3240 = vmatpush1.msra.mxu0 0.0
  %3241 = vmatprep.subr.mxu0 0.0
  %3242 = vmatpush1.msra.mxu0 0.0
  %3243 = vmatprep.subr.mxu0 0.0
  %3244 = vmatpush1.msra.mxu0 0.0
  %3245 = vmatprep.mubr.f32.mxu0 0.0
  %v3246 = vand.u32 %v3017, 4294901760
  %v3247 = vsub.f32 %v3017, %v3246
  %3248 = vmatmul.mubr.f32.gmra.mrb[0].mxu0 %v3247
  %v3249 = vpop.f32.mrb[0].mxu0
  %v3250 = vadd.f32 %v3174, %v3249
  %v3251 = vpop.f32.mrb[0].mxu0
  %3252 = vdwg.mxu0
  %3253 = vmatprep.subr.mxu0 0.0
  %v3254 = vand.u32 %v26, 4294901760
  %3255 = vmatpush1.msra.mxu0 %v3254
  %3256 = vmatprep.subr.mxu0 0.0
  %v3257 = vand.u32 %v27, 4294901760
  %3258 = vmatpush1.msra.mxu0 %v3257
  %3259 = vmatprep.subr.mxu0 0.0
  %3260 = vmatpush1.msra.mxu0 0.0
  %3261 = vmatprep.subr.mxu0 0.0
  %3262 = vmatpush1.msra.mxu0 0.0
  %3263 = vmatprep.subr.mxu0 0.0
  %3264 = vmatpush1.msra.mxu0 0.0
  %3265 = vmatprep.subr.mxu0 0.0
  %3266 = vmatpush1.msra.mxu0 0.0
  %3267 = vmatprep.subr.mxu0 0.0
  %3268 = vmatpush1.msra.mxu0 0.0
  %3269 = vmatprep.subr.mxu0 0.0
  %3270 = vmatpush1.msra.mxu0 0.0
  %3271 = vmatprep.subr.mxu0 0.0
  %3272 = vmatpush1.msra.mxu0 0.0
  %3273 = vmatprep.subr.mxu0 0.0
  %3274 = vmatpush1.msra.mxu0 0.0
  %3275 = vmatprep.subr.mxu0 0.0
  %3276 = vmatpush1.msra.mxu0 0.0
  %3277 = vmatprep.subr.mxu0 0.0
  %3278 = vmatpush1.msra.mxu0 0.0
  %3279 = vmatprep.subr.mxu0 0.0
  %3280 = vmatpush1.msra.mxu0 0.0
  %3281 = vmatprep.subr.mxu0 0.0
  %3282 = vmatpush1.msra.mxu0 0.0
  %3283 = vmatprep.subr.mxu0 0.0
  %3284 = vmatpush1.msra.mxu0 0.0
  %3285 = vmatprep.subr.mxu0 0.0
  %3286 = vmatpush1.msra.mxu0 0.0
  %3287 = vmatprep.subr.mxu0 0.0
  %3288 = vmatpush1.msra.mxu0 0.0
  %3289 = vmatprep.subr.mxu0 0.0
  %3290 = vmatpush1.msra.mxu0 0.0
  %3291 = vmatprep.subr.mxu0 0.0
  %3292 = vmatpush1.msra.mxu0 0.0
  %3293 = vmatprep.subr.mxu0 0.0
  %3294 = vmatpush1.msra.mxu0 0.0
  %3295 = vmatprep.subr.mxu0 0.0
  %3296 = vmatpush1.msra.mxu0 0.0
  %3297 = vmatprep.subr.mxu0 0.0
  %3298 = vmatpush1.msra.mxu0 0.0
  %3299 = vmatprep.subr.mxu0 0.0
  %3300 = vmatpush1.msra.mxu0 0.0
  %3301 = vmatprep.subr.mxu0 0.0
  %3302 = vmatpush1.msra.mxu0 0.0
  %3303 = vmatprep.subr.mxu0 0.0
  %3304 = vmatpush1.msra.mxu0 0.0
  %3305 = vmatprep.subr.mxu0 0.0
  %3306 = vmatpush1.msra.mxu0 0.0
  %3307 = vmatprep.subr.mxu0 0.0
  %3308 = vmatpush1.msra.mxu0 0.0
  %3309 = vmatprep.subr.mxu0 0.0
  %3310 = vmatpush1.msra.mxu0 0.0
  %3311 = vmatprep.subr.mxu0 0.0
  %3312 = vmatpush1.msra.mxu0 0.0
  %3313 = vmatprep.subr.mxu0 0.0
  %3314 = vmatpush1.msra.mxu0 0.0
  %3315 = vmatprep.subr.mxu0 0.0
  %3316 = vmatpush1.msra.mxu0 0.0
  %3317 = vmatprep.subr.mxu0 0.0
  %3318 = vmatpush1.msra.mxu0 0.0
  %3319 = vmatprep.mubr.f32.mxu0 0.0
  %v3320 = vand.u32 %v3017, 4294901760
  %v3321 = vsub.f32 %v3017, %v3320
  %v3322 = vand.u32 %v3321, 4294901760
  %3323 = vmatmul.mubr.f32.gmra.mrb[0].mxu0 %v3322
  %v3324 = vpop.f32.mrb[0].mxu0
  %v3325 = vadd.f32 %v3250, %v3324
  %v3326 = vpop.f32.mrb[0].mxu0
  %3327 = vdwg.mxu0
  %3328 = vmatprep.subr.mxu0 0.0
  %v3329 = vand.u32 %v26, 4294901760
  %v3330 = vsub.f32 %v26, %v3329
  %v3331 = vand.u32 %v3330, 4294901760
  %3332 = vmatpush1.msra.mxu0 %v3331
  %3333 = vmatprep.subr.mxu0 0.0
  %v3334 = vand.u32 %v27, 4294901760
  %v3335 = vsub.f32 %v27, %v3334
  %v3336 = vand.u32 %v3335, 4294901760
  %3337 = vmatpush1.msra.mxu0 %v3336
  %3338 = vmatprep.subr.mxu0 0.0
  %3339 = vmatpush1.msra.mxu0 0.0
  %3340 = vmatprep.subr.mxu0 0.0
  %3341 = vmatpush1.msra.mxu0 0.0
  %3342 = vmatprep.subr.mxu0 0.0
  %3343 = vmatpush1.msra.mxu0 0.0
  %3344 = vmatprep.subr.mxu0 0.0
  %3345 = vmatpush1.msra.mxu0 0.0
  %3346 = vmatprep.subr.mxu0 0.0
  %3347 = vmatpush1.msra.mxu0 0.0
  %3348 = vmatprep.subr.mxu0 0.0
  %3349 = vmatpush1.msra.mxu0 0.0
  %3350 = vmatprep.subr.mxu0 0.0
  %3351 = vmatpush1.msra.mxu0 0.0
  %3352 = vmatprep.subr.mxu0 0.0
  %3353 = vmatpush1.msra.mxu0 0.0
  %3354 = vmatprep.subr.mxu0 0.0
  %3355 = vmatpush1.msra.mxu0 0.0
  %3356 = vmatprep.subr.mxu0 0.0
  %3357 = vmatpush1.msra.mxu0 0.0
  %3358 = vmatprep.subr.mxu0 0.0
  %3359 = vmatpush1.msra.mxu0 0.0
  %3360 = vmatprep.subr.mxu0 0.0
  %3361 = vmatpush1.msra.mxu0 0.0
  %3362 = vmatprep.subr.mxu0 0.0
  %3363 = vmatpush1.msra.mxu0 0.0
  %3364 = vmatprep.subr.mxu0 0.0
  %3365 = vmatpush1.msra.mxu0 0.0
  %3366 = vmatprep.subr.mxu0 0.0
  %3367 = vmatpush1.msra.mxu0 0.0
  %3368 = vmatprep.subr.mxu0 0.0
  %3369 = vmatpush1.msra.mxu0 0.0
  %3370 = vmatprep.subr.mxu0 0.0
  %3371 = vmatpush1.msra.mxu0 0.0
  %3372 = vmatprep.subr.mxu0 0.0
  %3373 = vmatpush1.msra.mxu0 0.0
  %3374 = vmatprep.subr.mxu0 0.0
  %3375 = vmatpush1.msra.mxu0 0.0
  %3376 = vmatprep.subr.mxu0 0.0
  %3377 = vmatpush1.msra.mxu0 0.0
  %3378 = vmatprep.subr.mxu0 0.0
  %3379 = vmatpush1.msra.mxu0 0.0
  %3380 = vmatprep.subr.mxu0 0.0
  %3381 = vmatpush1.msra.mxu0 0.0
  %3382 = vmatprep.subr.mxu0 0.0
  %3383 = vmatpush1.msra.mxu0 0.0
  %3384 = vmatprep.subr.mxu0 0.0
  %3385 = vmatpush1.msra.mxu0 0.0
  %3386 = vmatprep.subr.mxu0 0.0
  %3387 = vmatpush1.msra.mxu0 0.0
  %3388 = vmatprep.subr.mxu0 0.0
  %3389 = vmatpush1.msra.mxu0 0.0
  %3390 = vmatprep.subr.mxu0 0.0
  %3391 = vmatpush1.msra.mxu0 0.0
  %3392 = vmatprep.subr.mxu0 0.0
  %3393 = vmatpush1.msra.mxu0 0.0
  %3394 = vmatprep.subr.mxu0 0.0
  %3395 = vmatpush1.msra.mxu0 0.0
  %3396 = vmatprep.subr.mxu0 0.0
  %3397 = vmatpush1.msra.mxu0 0.0
  %3398 = vmatprep.mubr.f32.mxu0 0.0
  %v3399 = vand.u32 %v3017, 4294901760
  %3400 = vmatmul.mubr.f32.gmra.mrb[0].mxu0 %v3399
  %v3401 = vpop.f32.mrb[0].mxu0
  %v3402 = vadd.f32 %v3325, %v3401
  %v3403 = vpop.f32.mrb[0].mxu0
  %3404 = vdwg.mxu0
  %3405 = vmatprep.subr.mxu0 0.0
  %v3406 = vand.u32 %v26, 4294901760
  %3407 = vmatpush1.msra.mxu0 %v3406
  %3408 = vmatprep.subr.mxu0 0.0
  %v3409 = vand.u32 %v27, 4294901760
  %3410 = vmatpush1.msra.mxu0 %v3409
  %3411 = vmatprep.subr.mxu0 0.0
  %3412 = vmatpush1.msra.mxu0 0.0
  %3413 = vmatprep.subr.mxu0 0.0
  %3414 = vmatpush1.msra.mxu0 0.0
  %3415 = vmatprep.subr.mxu0 0.0
  %3416 = vmatpush1.msra.mxu0 0.0
  %3417 = vmatprep.subr.mxu0 0.0
  %3418 = vmatpush1.msra.mxu0 0.0
  %3419 = vmatprep.subr.mxu0 0.0
  %3420 = vmatpush1.msra.mxu0 0.0
  %3421 = vmatprep.subr.mxu0 0.0
  %3422 = vmatpush1.msra.mxu0 0.0
  %3423 = vmatprep.subr.mxu0 0.0
  %3424 = vmatpush1.msra.mxu0 0.0
  %3425 = vmatprep.subr.mxu0 0.0
  %3426 = vmatpush1.msra.mxu0 0.0
  %3427 = vmatprep.subr.mxu0 0.0
  %3428 = vmatpush1.msra.mxu0 0.0
  %3429 = vmatprep.subr.mxu0 0.0
  %3430 = vmatpush1.msra.mxu0 0.0
  %3431 = vmatprep.subr.mxu0 0.0
  %3432 = vmatpush1.msra.mxu0 0.0
  %3433 = vmatprep.subr.mxu0 0.0
  %3434 = vmatpush1.msra.mxu0 0.0
  %3435 = vmatprep.subr.mxu0 0.0
  %3436 = vmatpush1.msra.mxu0 0.0
  %3437 = vmatprep.subr.mxu0 0.0
  %3438 = vmatpush1.msra.mxu0 0.0
  %3439 = vmatprep.subr.mxu0 0.0
  %3440 = vmatpush1.msra.mxu0 0.0
  %3441 = vmatprep.subr.mxu0 0.0
  %3442 = vmatpush1.msra.mxu0 0.0
  %3443 = vmatprep.subr.mxu0 0.0
  %3444 = vmatpush1.msra.mxu0 0.0
  %3445 = vmatprep.subr.mxu0 0.0
  %3446 = vmatpush1.msra.mxu0 0.0
  %3447 = vmatprep.subr.mxu0 0.0
  %3448 = vmatpush1.msra.mxu0 0.0
  %3449 = vmatprep.subr.mxu0 0.0
  %3450 = vmatpush1.msra.mxu0 0.0
  %3451 = vmatprep.subr.mxu0 0.0
  %3452 = vmatpush1.msra.mxu0 0.0
  %3453 = vmatprep.subr.mxu0 0.0
  %3454 = vmatpush1.msra.mxu0 0.0
  %3455 = vmatprep.subr.mxu0 0.0
  %3456 = vmatpush1.msra.mxu0 0.0
  %3457 = vmatprep.subr.mxu0 0.0
  %3458 = vmatpush1.msra.mxu0 0.0
  %3459 = vmatprep.subr.mxu0 0.0
  %3460 = vmatpush1.msra.mxu0 0.0
  %3461 = vmatprep.subr.mxu0 0.0
  %3462 = vmatpush1.msra.mxu0 0.0
  %3463 = vmatprep.subr.mxu0 0.0
  %3464 = vmatpush1.msra.mxu0 0.0
  %3465 = vmatprep.subr.mxu0 0.0
  %3466 = vmatpush1.msra.mxu0 0.0
  %3467 = vmatprep.subr.mxu0 0.0
  %3468 = vmatpush1.msra.mxu0 0.0
  %3469 = vmatprep.subr.mxu0 0.0
  %3470 = vmatpush1.msra.mxu0 0.0
  %3471 = vmatprep.mubr.f32.mxu0 0.0
  %v3472 = vand.u32 %v3017, 4294901760
  %3473 = vmatmul.mubr.f32.gmra.mrb[0].mxu0 %v3472
  %v3474 = vpop.f32.mrb[0].mxu0
  %v3475 = vadd.f32 %v3402, %v3474
  %v3476 = vpop.f32.mrb[0].mxu0
  %3477 = vdwg.mxu0
  %v3478 = vadd.f32 %v103, %v3475
  %v3479 = vtanh.pop %v3478
  %v3480 = vmul.f32 %v3479, 0.5
  %v3481 = vadd.f32 %v3480, 0.5
  %v3482 = vmul.f32 %v3481, %v3007
  %3484 = vrot.lane.b32.xlu0 %v3479, 80
  %v3485 = vpop.permute.xlu0 %3484
  %v3487 = vmul.f32 %v3481, %v3485
  %3489 = vrot.lane.b32.xlu0 %v3487, 16
  %v3490 = vpop.permute.xlu0 %3489
  %v3492 = vadd.f32 %v3482, %v3490
  %v3493 = vtanh.pop %v3492
  %3495 = vrot.lane.b32.xlu0 %v3493, 16
  %v3496 = vpop.permute.xlu0 %3495
  %v3498 = vmul.f32 %v3481, %v3496
  %3500 = vrot.lane.b32.xlu0 %v3498, 96
  %v3501 = vpop.permute.xlu0 %3500
  %v3502 = vsel %vm105, %v3501, 0
  %3504 = vmatprep.subr.mxu0 0.0
  %v3505 = vand.u32 %v26, 4294901760
  %3506 = vmatpush1.msra.mxu0 %v3505
  %3507 = vmatprep.subr.mxu0 0.0
  %v3508 = vand.u32 %v27, 4294901760
  %3509 = vmatpush1.msra.mxu0 %v3508
  %3510 = vmatprep.subr.mxu0 0.0
  %3511 = vmatpush1.msra.mxu0 0.0
  %3512 = vmatprep.subr.mxu0 0.0
  %3513 = vmatpush1.msra.mxu0 0.0
  %3514 = vmatprep.subr.mxu0 0.0
  %3515 = vmatpush1.msra.mxu0 0.0
  %3516 = vmatprep.subr.mxu0 0.0
  %3517 = vmatpush1.msra.mxu0 0.0
  %3518 = vmatprep.subr.mxu0 0.0
  %3519 = vmatpush1.msra.mxu0 0.0
  %3520 = vmatprep.subr.mxu0 0.0
  %3521 = vmatpush1.msra.mxu0 0.0
  %3522 = vmatprep.subr.mxu0 0.0
  %3523 = vmatpush1.msra.mxu0 0.0
  %3524 = vmatprep.subr.mxu0 0.0
  %3525 = vmatpush1.msra.mxu0 0.0
  %3526 = vmatprep.subr.mxu0 0.0
  %3527 = vmatpush1.msra.mxu0 0.0
  %3528 = vmatprep.subr.mxu0 0.0
  %3529 = vmatpush1.msra.mxu0 0.0
  %3530 = vmatprep.subr.mxu0 0.0
  %3531 = vmatpush1.msra.mxu0 0.0
  %3532 = vmatprep.subr.mxu0 0.0
  %3533 = vmatpush1.msra.mxu0 0.0
  %3534 = vmatprep.subr.mxu0 0.0
  %3535 = vmatpush1.msra.mxu0 0.0
  %3536 = vmatprep.subr.mxu0 0.0
  %3537 = vmatpush1.msra.mxu0 0.0
  %3538 = vmatprep.subr.mxu0 0.0
  %3539 = vmatpush1.msra.mxu0 0.0
  %3540 = vmatprep.subr.mxu0 0.0
  %3541 = vmatpush1.msra.mxu0 0.0
  %3542 = vmatprep.subr.mxu0 0.0
  %3543 = vmatpush1.msra.mxu0 0.0
  %3544 = vmatprep.subr.mxu0 0.0
  %3545 = vmatpush1.msra.mxu0 0.0
  %3546 = vmatprep.subr.mxu0 0.0
  %3547 = vmatpush1.msra.mxu0 0.0
  %3548 = vmatprep.subr.mxu0 0.0
  %3549 = vmatpush1.msra.mxu0 0.0
  %3550 = vmatprep.subr.mxu0 0.0
  %3551 = vmatpush1.msra.mxu0 0.0
  %3552 = vmatprep.subr.mxu0 0.0
  %3553 = vmatpush1.msra.mxu0 0.0
  %3554 = vmatprep.subr.mxu0 0.0
  %3555 = vmatpush1.msra.mxu0 0.0
  %3556 = vmatprep.subr.mxu0 0.0
  %3557 = vmatpush1.msra.mxu0 0.0
  %3558 = vmatprep.subr.mxu0 0.0
  %3559 = vmatpush1.msra.mxu0 0.0
  %3560 = vmatprep.subr.mxu0 0.0
  %3561 = vmatpush1.msra.mxu0 0.0
  %3562 = vmatprep.subr.mxu0 0.0
  %3563 = vmatpush1.msra.mxu0 0.0
  %3564 = vmatprep.subr.mxu0 0.0
  %3565 = vmatpush1.msra.mxu0 0.0
  %3566 = vmatprep.subr.mxu0 0.0
  %3567 = vmatpush1.msra.mxu0 0.0
  %3568 = vmatprep.subr.mxu0 0.0
  %3569 = vmatpush1.msra.mxu0 0.0
  %3570 = vmatprep.mubr.f32.mxu0 0.0
  %v3571 = vand.u32 %v3502, 4294901760
  %v3572 = vsub.f32 %v3502, %v3571
  %v3573 = vand.u32 %v3572, 4294901760
  %v3574 = vsub.f32 %v3572, %v3573
  %v3575 = vand.u32 %v3574, 4294901760
  %3576 = vmatmul.mubr.f32.gmra.mrb[0].mxu0 %v3575
  %v3577 = vpop.f32.mrb[0].mxu0
  %v3578 = vadd.f32 0.0, %v3577
  %v3579 = vpop.f32.mrb[0].mxu0
  %3580 = vdwg.mxu0
  %3581 = vmatprep.subr.mxu0 0.0
  %v3582 = vand.u32 %v26, 4294901760
  %v3583 = vsub.f32 %v26, %v3582
  %v3584 = vand.u32 %v3583, 4294901760
  %v3585 = vsub.f32 %v3583, %v3584
  %v3586 = vand.u32 %v3585, 4294901760
  %3587 = vmatpush1.msra.mxu0 %v3586
  %3588 = vmatprep.subr.mxu0 0.0
  %v3589 = vand.u32 %v27, 4294901760
  %v3590 = vsub.f32 %v27, %v3589
  %v3591 = vand.u32 %v3590, 4294901760
  %v3592 = vsub.f32 %v3590, %v3591
  %v3593 = vand.u32 %v3592, 4294901760
  %3594 = vmatpush1.msra.mxu0 %v3593
  %3595 = vmatprep.subr.mxu0 0.0
  %3596 = vmatpush1.msra.mxu0 0.0
  %3597 = vmatprep.subr.mxu0 0.0
  %3598 = vmatpush1.msra.mxu0 0.0
  %3599 = vmatprep.subr.mxu0 0.0
  %3600 = vmatpush1.msra.mxu0 0.0
  %3601 = vmatprep.subr.mxu0 0.0
  %3602 = vmatpush1.msra.mxu0 0.0
  %3603 = vmatprep.subr.mxu0 0.0
  %3604 = vmatpush1.msra.mxu0 0.0
  %3605 = vmatprep.subr.mxu0 0.0
  %3606 = vmatpush1.msra.mxu0 0.0
  %3607 = vmatprep.subr.mxu0 0.0
  %3608 = vmatpush1.msra.mxu0 0.0
  %3609 = vmatprep.subr.mxu0 0.0
  %3610 = vmatpush1.msra.mxu0 0.0
  %3611 = vmatprep.subr.mxu0 0.0
  %3612 = vmatpush1.msra.mxu0 0.0
  %3613 = vmatprep.subr.mxu0 0.0
  %3614 = vmatpush1.msra.mxu0 0.0
  %3615 = vmatprep.subr.mxu0 0.0
  %3616 = vmatpush1.msra.mxu0 0.0
  %3617 = vmatprep.subr.mxu0 0.0
  %3618 = vmatpush1.msra.mxu0 0.0
  %3619 = vmatprep.subr.mxu0 0.0
  %3620 = vmatpush1.msra.mxu0 0.0
  %3621 = vmatprep.subr.mxu0 0.0
  %3622 = vmatpush1.msra.mxu0 0.0
  %3623 = vmatprep.subr.mxu0 0.0
  %3624 = vmatpush1.msra.mxu0 0.0
  %3625 = vmatprep.subr.mxu0 0.0
  %3626 = vmatpush1.msra.mxu0 0.0
  %3627 = vmatprep.subr.mxu0 0.0
  %3628 = vmatpush1.msra.mxu0 0.0
  %3629 = vmatprep.subr.mxu0 0.0
  %3630 = vmatpush1.msra.mxu0 0.0
  %3631 = vmatprep.subr.mxu0 0.0
  %3632 = vmatpush1.msra.mxu0 0.0
  %3633 = vmatprep.subr.mxu0 0.0
  %3634 = vmatpush1.msra.mxu0 0.0
  %3635 = vmatprep.subr.mxu0 0.0
  %3636 = vmatpush1.msra.mxu0 0.0
  %3637 = vmatprep.subr.mxu0 0.0
  %3638 = vmatpush1.msra.mxu0 0.0
  %3639 = vmatprep.subr.mxu0 0.0
  %3640 = vmatpush1.msra.mxu0 0.0
  %3641 = vmatprep.subr.mxu0 0.0
  %3642 = vmatpush1.msra.mxu0 0.0
  %3643 = vmatprep.subr.mxu0 0.0
  %3644 = vmatpush1.msra.mxu0 0.0
  %3645 = vmatprep.subr.mxu0 0.0
  %3646 = vmatpush1.msra.mxu0 0.0
  %3647 = vmatprep.subr.mxu0 0.0
  %3648 = vmatpush1.msra.mxu0 0.0
  %3649 = vmatprep.subr.mxu0 0.0
  %3650 = vmatpush1.msra.mxu0 0.0
  %3651 = vmatprep.subr.mxu0 0.0
  %3652 = vmatpush1.msra.mxu0 0.0
  %3653 = vmatprep.subr.mxu0 0.0
  %3654 = vmatpush1.msra.mxu0 0.0
  %3655 = vmatprep.mubr.f32.mxu0 0.0
  %v3656 = vand.u32 %v3502, 4294901760
  %3657 = vmatmul.mubr.f32.gmra.mrb[0].mxu0 %v3656
  %v3658 = vpop.f32.mrb[0].mxu0
  %v3659 = vadd.f32 %v3578, %v3658
  %v3660 = vpop.f32.mrb[0].mxu0
  %3661 = vdwg.mxu0
  %3662 = vmatprep.subr.mxu0 0.0
  %v3663 = vand.u32 %v26, 4294901760
  %v3664 = vsub.f32 %v26, %v3663
  %3665 = vmatpush1.msra.mxu0 %v3664
  %3666 = vmatprep.subr.mxu0 0.0
  %v3667 = vand.u32 %v27, 4294901760
  %v3668 = vsub.f32 %v27, %v3667
  %3669 = vmatpush1.msra.mxu0 %v3668
  %3670 = vmatprep.subr.mxu0 0.0
  %3671 = vmatpush1.msra.mxu0 0.0
  %3672 = vmatprep.subr.mxu0 0.0
  %3673 = vmatpush1.msra.mxu0 0.0
  %3674 = vmatprep.subr.mxu0 0.0
  %3675 = vmatpush1.msra.mxu0 0.0
  %3676 = vmatprep.subr.mxu0 0.0
  %3677 = vmatpush1.msra.mxu0 0.0
  %3678 = vmatprep.subr.mxu0 0.0
  %3679 = vmatpush1.msra.mxu0 0.0
  %3680 = vmatprep.subr.mxu0 0.0
  %3681 = vmatpush1.msra.mxu0 0.0
  %3682 = vmatprep.subr.mxu0 0.0
  %3683 = vmatpush1.msra.mxu0 0.0
  %3684 = vmatprep.subr.mxu0 0.0
  %3685 = vmatpush1.msra.mxu0 0.0
  %3686 = vmatprep.subr.mxu0 0.0
  %3687 = vmatpush1.msra.mxu0 0.0
  %3688 = vmatprep.subr.mxu0 0.0
  %3689 = vmatpush1.msra.mxu0 0.0
  %3690 = vmatprep.subr.mxu0 0.0
  %3691 = vmatpush1.msra.mxu0 0.0
  %3692 = vmatprep.subr.mxu0 0.0
  %3693 = vmatpush1.msra.mxu0 0.0
  %3694 = vmatprep.subr.mxu0 0.0
  %3695 = vmatpush1.msra.mxu0 0.0
  %3696 = vmatprep.subr.mxu0 0.0
  %3697 = vmatpush1.msra.mxu0 0.0
  %3698 = vmatprep.subr.mxu0 0.0
  %3699 = vmatpush1.msra.mxu0 0.0
  %3700 = vmatprep.subr.mxu0 0.0
  %3701 = vmatpush1.msra.mxu0 0.0
  %3702 = vmatprep.subr.mxu0 0.0
  %3703 = vmatpush1.msra.mxu0 0.0
  %3704 = vmatprep.subr.mxu0 0.0
  %3705 = vmatpush1.msra.mxu0 0.0
  %3706 = vmatprep.subr.mxu0 0.0
  %3707 = vmatpush1.msra.mxu0 0.0
  %3708 = vmatprep.subr.mxu0 0.0
  %3709 = vmatpush1.msra.mxu0 0.0
  %3710 = vmatprep.subr.mxu0 0.0
  %3711 = vmatpush1.msra.mxu0 0.0
  %3712 = vmatprep.subr.mxu0 0.0
  %3713 = vmatpush1.msra.mxu0 0.0
  %3714 = vmatprep.subr.mxu0 0.0
  %3715 = vmatpush1.msra.mxu0 0.0
  %3716 = vmatprep.subr.mxu0 0.0
  %3717 = vmatpush1.msra.mxu0 0.0
  %3718 = vmatprep.subr.mxu0 0.0
  %3719 = vmatpush1.msra.mxu0 0.0
  %3720 = vmatprep.subr.mxu0 0.0
  %3721 = vmatpush1.msra.mxu0 0.0
  %3722 = vmatprep.subr.mxu0 0.0
  %3723 = vmatpush1.msra.mxu0 0.0
  %3724 = vmatprep.subr.mxu0 0.0
  %3725 = vmatpush1.msra.mxu0 0.0
  %3726 = vmatprep.subr.mxu0 0.0
  %3727 = vmatpush1.msra.mxu0 0.0
  %3728 = vmatprep.subr.mxu0 0.0
  %3729 = vmatpush1.msra.mxu0 0.0
  %3730 = vmatprep.mubr.f32.mxu0 0.0
  %v3731 = vand.u32 %v3502, 4294901760
  %v3732 = vsub.f32 %v3502, %v3731
  %3733 = vmatmul.mubr.f32.gmra.mrb[0].mxu0 %v3732
  %v3734 = vpop.f32.mrb[0].mxu0
  %v3735 = vadd.f32 %v3659, %v3734
  %v3736 = vpop.f32.mrb[0].mxu0
  %3737 = vdwg.mxu0
  %3738 = vmatprep.subr.mxu0 0.0
  %v3739 = vand.u32 %v26, 4294901760
  %3740 = vmatpush1.msra.mxu0 %v3739
  %3741 = vmatprep.subr.mxu0 0.0
  %v3742 = vand.u32 %v27, 4294901760
  %3743 = vmatpush1.msra.mxu0 %v3742
  %3744 = vmatprep.subr.mxu0 0.0
  %3745 = vmatpush1.msra.mxu0 0.0
  %3746 = vmatprep.subr.mxu0 0.0
  %3747 = vmatpush1.msra.mxu0 0.0
  %3748 = vmatprep.subr.mxu0 0.0
  %3749 = vmatpush1.msra.mxu0 0.0
  %3750 = vmatprep.subr.mxu0 0.0
  %3751 = vmatpush1.msra.mxu0 0.0
  %3752 = vmatprep.subr.mxu0 0.0
  %3753 = vmatpush1.msra.mxu0 0.0
  %3754 = vmatprep.subr.mxu0 0.0
  %3755 = vmatpush1.msra.mxu0 0.0
  %3756 = vmatprep.subr.mxu0 0.0
  %3757 = vmatpush1.msra.mxu0 0.0
  %3758 = vmatprep.subr.mxu0 0.0
  %3759 = vmatpush1.msra.mxu0 0.0
  %3760 = vmatprep.subr.mxu0 0.0
  %3761 = vmatpush1.msra.mxu0 0.0
  %3762 = vmatprep.subr.mxu0 0.0
  %3763 = vmatpush1.msra.mxu0 0.0
  %3764 = vmatprep.subr.mxu0 0.0
  %3765 = vmatpush1.msra.mxu0 0.0
  %3766 = vmatprep.subr.mxu0 0.0
  %3767 = vmatpush1.msra.mxu0 0.0
  %3768 = vmatprep.subr.mxu0 0.0
  %3769 = vmatpush1.msra.mxu0 0.0
  %3770 = vmatprep.subr.mxu0 0.0
  %3771 = vmatpush1.msra.mxu0 0.0
  %3772 = vmatprep.subr.mxu0 0.0
  %3773 = vmatpush1.msra.mxu0 0.0
  %3774 = vmatprep.subr.mxu0 0.0
  %3775 = vmatpush1.msra.mxu0 0.0
  %3776 = vmatprep.subr.mxu0 0.0
  %3777 = vmatpush1.msra.mxu0 0.0
  %3778 = vmatprep.subr.mxu0 0.0
  %3779 = vmatpush1.msra.mxu0 0.0
  %3780 = vmatprep.subr.mxu0 0.0
  %3781 = vmatpush1.msra.mxu0 0.0
  %3782 = vmatprep.subr.mxu0 0.0
  %3783 = vmatpush1.msra.mxu0 0.0
  %3784 = vmatprep.subr.mxu0 0.0
  %3785 = vmatpush1.msra.mxu0 0.0
  %3786 = vmatprep.subr.mxu0 0.0
  %3787 = vmatpush1.msra.mxu0 0.0
  %3788 = vmatprep.subr.mxu0 0.0
  %3789 = vmatpush1.msra.mxu0 0.0
  %3790 = vmatprep.subr.mxu0 0.0
  %3791 = vmatpush1.msra.mxu0 0.0
  %3792 = vmatprep.subr.mxu0 0.0
  %3793 = vmatpush1.msra.mxu0 0.0
  %3794 = vmatprep.subr.mxu0 0.0
  %3795 = vmatpush1.msra.mxu0 0.0
  %3796 = vmatprep.subr.mxu0 0.0
  %3797 = vmatpush1.msra.mxu0 0.0
  %3798 = vmatprep.subr.mxu0 0.0
  %3799 = vmatpush1.msra.mxu0 0.0
  %3800 = vmatprep.subr.mxu0 0.0
  %3801 = vmatpush1.msra.mxu0 0.0
  %3802 = vmatprep.subr.mxu0 0.0
  %3803 = vmatpush1.msra.mxu0 0.0
  %3804 = vmatprep.mubr.f32.mxu0 0.0
  %v3805 = vand.u32 %v3502, 4294901760
  %v3806 = vsub.f32 %v3502, %v3805
  %v3807 = vand.u32 %v3806, 4294901760
  %3808 = vmatmul.mubr.f32.gmra.mrb[0].mxu0 %v3807
  %v3809 = vpop.f32.mrb[0].mxu0
  %v3810 = vadd.f32 %v3735, %v3809
  %v3811 = vpop.f32.mrb[0].mxu0
  %3812 = vdwg.mxu0
  %3813 = vmatprep.subr.mxu0 0.0
  %v3814 = vand.u32 %v26, 4294901760
  %v3815 = vsub.f32 %v26, %v3814
  %v3816 = vand.u32 %v3815, 4294901760
  %3817 = vmatpush1.msra.mxu0 %v3816
  %3818 = vmatprep.subr.mxu0 0.0
  %v3819 = vand.u32 %v27, 4294901760
  %v3820 = vsub.f32 %v27, %v3819
  %v3821 = vand.u32 %v3820, 4294901760
  %3822 = vmatpush1.msra.mxu0 %v3821
  %3823 = vmatprep.subr.mxu0 0.0
  %3824 = vmatpush1.msra.mxu0 0.0
  %3825 = vmatprep.subr.mxu0 0.0
  %3826 = vmatpush1.msra.mxu0 0.0
  %3827 = vmatprep.subr.mxu0 0.0
  %3828 = vmatpush1.msra.mxu0 0.0
  %3829 = vmatprep.subr.mxu0 0.0
  %3830 = vmatpush1.msra.mxu0 0.0
  %3831 = vmatprep.subr.mxu0 0.0
  %3832 = vmatpush1.msra.mxu0 0.0
  %3833 = vmatprep.subr.mxu0 0.0
  %3834 = vmatpush1.msra.mxu0 0.0
  %3835 = vmatprep.subr.mxu0 0.0
  %3836 = vmatpush1.msra.mxu0 0.0
  %3837 = vmatprep.subr.mxu0 0.0
  %3838 = vmatpush1.msra.mxu0 0.0
  %3839 = vmatprep.subr.mxu0 0.0
  %3840 = vmatpush1.msra.mxu0 0.0
  %3841 = vmatprep.subr.mxu0 0.0
  %3842 = vmatpush1.msra.mxu0 0.0
  %3843 = vmatprep.subr.mxu0 0.0
  %3844 = vmatpush1.msra.mxu0 0.0
  %3845 = vmatprep.subr.mxu0 0.0
  %3846 = vmatpush1.msra.mxu0 0.0
  %3847 = vmatprep.subr.mxu0 0.0
  %3848 = vmatpush1.msra.mxu0 0.0
  %3849 = vmatprep.subr.mxu0 0.0
  %3850 = vmatpush1.msra.mxu0 0.0
  %3851 = vmatprep.subr.mxu0 0.0
  %3852 = vmatpush1.msra.mxu0 0.0
  %3853 = vmatprep.subr.mxu0 0.0
  %3854 = vmatpush1.msra.mxu0 0.0
  %3855 = vmatprep.subr.mxu0 0.0
  %3856 = vmatpush1.msra.mxu0 0.0
  %3857 = vmatprep.subr.mxu0 0.0
  %3858 = vmatpush1.msra.mxu0 0.0
  %3859 = vmatprep.subr.mxu0 0.0
  %3860 = vmatpush1.msra.mxu0 0.0
  %3861 = vmatprep.subr.mxu0 0.0
  %3862 = vmatpush1.msra.mxu0 0.0
  %3863 = vmatprep.subr.mxu0 0.0
  %3864 = vmatpush1.msra.mxu0 0.0
  %3865 = vmatprep.subr.mxu0 0.0
  %3866 = vmatpush1.msra.mxu0 0.0
  %3867 = vmatprep.subr.mxu0 0.0
  %3868 = vmatpush1.msra.mxu0 0.0
  %3869 = vmatprep.subr.mxu0 0.0
  %3870 = vmatpush1.msra.mxu0 0.0
  %3871 = vmatprep.subr.mxu0 0.0
  %3872 = vmatpush1.msra.mxu0 0.0
  %3873 = vmatprep.subr.mxu0 0.0
  %3874 = vmatpush1.msra.mxu0 0.0
  %3875 = vmatprep.subr.mxu0 0.0
  %3876 = vmatpush1.msra.mxu0 0.0
  %3877 = vmatprep.subr.mxu0 0.0
  %3878 = vmatpush1.msra.mxu0 0.0
  %3879 = vmatprep.subr.mxu0 0.0
  %3880 = vmatpush1.msra.mxu0 0.0
  %3881 = vmatprep.subr.mxu0 0.0
  %3882 = vmatpush1.msra.mxu0 0.0
  %3883 = vmatprep.mubr.f32.mxu0 0.0
  %v3884 = vand.u32 %v3502, 4294901760
  %3885 = vmatmul.mubr.f32.gmra.mrb[0].mxu0 %v3884
  %v3886 = vpop.f32.mrb[0].mxu0
  %v3887 = vadd.f32 %v3810, %v3886
  %v3888 = vpop.f32.mrb[0].mxu0
  %3889 = vdwg.mxu0
  %3890 = vmatprep.subr.mxu0 0.0
  %v3891 = vand.u32 %v26, 4294901760
  %3892 = vmatpush1.msra.mxu0 %v3891
  %3893 = vmatprep.subr.mxu0 0.0
  %v3894 = vand.u32 %v27, 4294901760
  %3895 = vmatpush1.msra.mxu0 %v3894
  %3896 = vmatprep.subr.mxu0 0.0
  %3897 = vmatpush1.msra.mxu0 0.0
  %3898 = vmatprep.subr.mxu0 0.0
  %3899 = vmatpush1.msra.mxu0 0.0
  %3900 = vmatprep.subr.mxu0 0.0
  %3901 = vmatpush1.msra.mxu0 0.0
  %3902 = vmatprep.subr.mxu0 0.0
  %3903 = vmatpush1.msra.mxu0 0.0
  %3904 = vmatprep.subr.mxu0 0.0
  %3905 = vmatpush1.msra.mxu0 0.0
  %3906 = vmatprep.subr.mxu0 0.0
  %3907 = vmatpush1.msra.mxu0 0.0
  %3908 = vmatprep.subr.mxu0 0.0
  %3909 = vmatpush1.msra.mxu0 0.0
  %3910 = vmatprep.subr.mxu0 0.0
  %3911 = vmatpush1.msra.mxu0 0.0
  %3912 = vmatprep.subr.mxu0 0.0
  %3913 = vmatpush1.msra.mxu0 0.0
  %3914 = vmatprep.subr.mxu0 0.0
  %3915 = vmatpush1.msra.mxu0 0.0
  %3916 = vmatprep.subr.mxu0 0.0
  %3917 = vmatpush1.msra.mxu0 0.0
  %3918 = vmatprep.subr.mxu0 0.0
  %3919 = vmatpush1.msra.mxu0 0.0
  %3920 = vmatprep.subr.mxu0 0.0
  %3921 = vmatpush1.msra.mxu0 0.0
  %3922 = vmatprep.subr.mxu0 0.0
  %3923 = vmatpush1.msra.mxu0 0.0
  %3924 = vmatprep.subr.mxu0 0.0
  %3925 = vmatpush1.msra.mxu0 0.0
  %3926 = vmatprep.subr.mxu0 0.0
  %3927 = vmatpush1.msra.mxu0 0.0
  %3928 = vmatprep.subr.mxu0 0.0
  %3929 = vmatpush1.msra.mxu0 0.0
  %3930 = vmatprep.subr.mxu0 0.0
  %3931 = vmatpush1.msra.mxu0 0.0
  %3932 = vmatprep.subr.mxu0 0.0
  %3933 = vmatpush1.msra.mxu0 0.0
  %3934 = vmatprep.subr.mxu0 0.0
  %3935 = vmatpush1.msra.mxu0 0.0
  %3936 = vmatprep.subr.mxu0 0.0
  %3937 = vmatpush1.msra.mxu0 0.0
  %3938 = vmatprep.subr.mxu0 0.0
  %3939 = vmatpush1.msra.mxu0 0.0
  %3940 = vmatprep.subr.mxu0 0.0
  %3941 = vmatpush1.msra.mxu0 0.0
  %3942 = vmatprep.subr.mxu0 0.0
  %3943 = vmatpush1.msra.mxu0 0.0
  %3944 = vmatprep.subr.mxu0 0.0
  %3945 = vmatpush1.msra.mxu0 0.0
  %3946 = vmatprep.subr.mxu0 0.0
  %3947 = vmatpush1.msra.mxu0 0.0
  %3948 = vmatprep.subr.mxu0 0.0
  %3949 = vmatpush1.msra.mxu0 0.0
  %3950 = vmatprep.subr.mxu0 0.0
  %3951 = vmatpush1.msra.mxu0 0.0
  %3952 = vmatprep.subr.mxu0 0.0
  %3953 = vmatpush1.msra.mxu0 0.0
  %3954 = vmatprep.subr.mxu0 0.0
  %3955 = vmatpush1.msra.mxu0 0.0
  %3956 = vmatprep.mubr.f32.mxu0 0.0
  %v3957 = vand.u32 %v3502, 4294901760
  %3958 = vmatmul.mubr.f32.gmra.mrb[0].mxu0 %v3957
  %v3959 = vpop.f32.mrb[0].mxu0
  %v3960 = vadd.f32 %v3887, %v3959
  %v3961 = vpop.f32.mrb[0].mxu0
  %3962 = vdwg.mxu0
  %v3963 = vadd.f32 %v104, %v3960
  %v3964 = vtanh.pop %v3963
  %v3965 = vmul.f32 %v3964, 0.5
  %v3966 = vadd.f32 %v3965, 0.5
  %v3967 = vmul.f32 %v3966, %v3492
  %3969 = vrot.lane.b32.xlu0 %v3964, 80
  %v3970 = vpop.permute.xlu0 %3969
  %v3972 = vmul.f32 %v3966, %v3970
  %3974 = vrot.lane.b32.xlu0 %v3972, 16
  %v3975 = vpop.permute.xlu0 %3974
  %v3977 = vadd.f32 %v3967, %v3975
  %v3978 = vtanh.pop %v3977
  %3980 = vrot.lane.b32.xlu0 %v3978, 16
  %v3981 = vpop.permute.xlu0 %3980
  %v3983 = vmul.f32 %v3966, %v3981
  %v3984 = vld [vmem:[%s4] sm:$0x1]
  %v3986 = vlaneseq
  %v3987 = vshrl.u32 %v3986, 7
  %v3988 = vsub.s32 0, %v3987
  %v3989 = vrot.slane %v3984, %v3988
  %3990 = vrot.lane.b32.xlu0 %v3989, 32
  %v3991 = vpop.permute.xlu0 %3990
  %v3993 = vmul.f32 %v3983, %v3991
  %3995 = vrot.lane.b32.xlu0 %v3993, 96
  %v3996 = vpop.permute.xlu0 %3995
  %vm3998 = vcmask 123904
  %v3999 = vsel %vm3998, %v3996, 0.0
  %4000 = vadd.xlane.f32.xlu0 %v3999
  %v4001 = vpop.xlane.xlu0 %4000
  %v4002 = vld [vmem:[#allocation2] sm:$0x1]
  %v4004 = vlaneseq
  %v4005 = vshrl.u32 %v4004, 7
  %v4006 = vsub.s32 0, %v4005
  %v4007 = vrot.slane %v4002, %v4006
  %v4009 = vadd.f32 %v4001, %v4007
  %vm4010 = vcmask 1024
  %4011 = vst.msk [vmem:[%s6] sm:$0x3] %vm4010, %v4009
  // Predicated region
  $region26: #{tpu_custom_call.1} parent=0 // pred_check
    _
  $region27: #{tpu_custom_call.1} parent=0 // pred_check_branch
    %4013 = sbr.rel (0) target = $region29
  $region28: #{tpu_custom_call.1} parent=0 // pred_region
    _
  $region29: #{tpu_custom_call.1} parent=0 // pred_fallthru
    _
  // Predicated region
  $region30: #{tpu_custom_call.1} parent=0 // pred_check
    _
  $region31: #{tpu_custom_call.1} parent=0 // pred_check_branch
    %4015 = sbr.rel (0) target = $region33
  $region32: #{tpu_custom_call.1} parent=0 // pred_region
    _
  $region33: #{tpu_custom_call.1} parent=0 // pred_fallthru
    _

</llo_original>
